<compile_context>
chip_gen: v7x
topology: tpu7x:2x2x1
jax: 0.10.0
libtpu: 0.0.40
codegen_flags: <defaults>
</compile_context>

<pallas_src>
import functools

import jax
import jax.numpy as jnp
import numpy as np
from jax.experimental import pallas as pl
from jax.experimental.pallas import tpu as pltpu


# -----------------------------------------------------------------------------
# The fused kernel: one grid step == one batch element, full network.
# -----------------------------------------------------------------------------
def _layernorm(z, g, b, eps=1e-5):
    mu = jnp.mean(z, axis=-1, keepdims=True)
    var = jnp.mean((z - mu) ** 2, axis=-1, keepdims=True)
    return (z - mu) * jax.lax.rsqrt(var + eps) * g + b


def _vit_kernel(patches_ref, bias_ref, wp_ref,
                wqkv_ref, wo_ref, bo_ref, g1_ref, be1_ref,
                w1_ref, b1_ref, w2_ref, b2_ref, g2_ref, be2_ref,
                hw_ref, hb_ref, out_ref, *, heads, layers, embed):
    f32 = jnp.float32
    bf16 = jnp.bfloat16
    S = patches_ref.shape[1]
    D = embed // heads

    # --- patch embedding.  Row 0 of `patches` is all-zero, and bias_ref row 0
    #     carries (cls_token + pos[0]); rows 1.. carry (patch_bias + pos[i]).
    x = (jnp.dot(patches_ref[0], wp_ref[...], preferred_element_type=f32)
         + bias_ref[...])                                          # (S, E) f32

    # --- transformer blocks (static unroll; weights stacked over layers) -----
    for l in range(layers):
        xb = x.astype(bf16)

        # fused Q|K|V: one lane-dense (S,E)x(E,3E) matmul (scale folded in Wq).
        qkv = jnp.dot(xb, wqkv_ref[l], preferred_element_type=f32)  # (S, 3E)
        q = qkv[:, :embed]
        k = qkv[:, embed:2 * embed]
        v = qkv[:, 2 * embed:]

        # per-head attention (K=D matmuls are inherent to attention); context
        # is re-assembled lane-dense for a single fc_out matmul.
        ctx_parts = []
        for h in range(heads):
            sl = slice(h * D, (h + 1) * D)
            qh = q[:, sl].astype(bf16)
            kh = k[:, sl].astype(bf16)
            vh = v[:, sl].astype(bf16)
            s = jnp.einsum("qd,kd->qk", qh, kh,
                           preferred_element_type=f32)             # (S, S)
            m = jnp.max(s, axis=-1, keepdims=True)
            p = jnp.exp(s - m)
            attn = p * pl.reciprocal(jnp.sum(p, axis=-1, keepdims=True),
                                     approx=True)
            ctx_parts.append(jnp.dot(attn.astype(bf16), vh,
                                     preferred_element_type=f32))  # (S, D)
        ctx = jnp.concatenate(ctx_parts, axis=-1)                  # (S, E) f32

        attn_out = (jnp.dot(ctx.astype(bf16), wo_ref[l],
                            preferred_element_type=f32) + bo_ref[l])

        # residual + norm1 (dropout p=0 -> identity)
        x1 = _layernorm(attn_out + x, g1_ref[l], be1_ref[l])

        # feed forward
        h1 = jnp.maximum(
            jnp.dot(x1.astype(bf16), w1_ref[l], preferred_element_type=f32)
            + b1_ref[l], 0.0)
        ff = (jnp.dot(h1.astype(bf16), w2_ref[l], preferred_element_type=f32)
              + b2_ref[l])

        # residual + norm2
        x = _layernorm(ff + x1, g2_ref[l], be2_ref[l])

    # --- classification head: mean pool, fc_out, exact softmax ---------------
    pooled = jnp.mean(x, axis=0, keepdims=True)                    # (1, E)
    logits = (jnp.dot(pooled, hw_ref[...], preferred_element_type=f32)
              + hb_ref[...])                                       # (1, classes)
    m = jnp.max(logits, axis=-1, keepdims=True)
    p = jnp.exp(logits - m)
    out_ref[0] = p / jnp.sum(p, axis=-1, keepdims=True)


# -----------------------------------------------------------------------------
# One-time weight packing (outside the per-forward path).
# -----------------------------------------------------------------------------
def pack_params(params, *, heads, n_patch):
    E = params["pos"].shape[-1]
    S = n_patch + 1
    bf16 = jnp.bfloat16
    f32 = jnp.float32
    blocks = params["blocks"]
    eye = jnp.eye(heads, dtype=f32)
    scale = 1.0 / (float(E) ** 0.5)

    def bdiag(w):  # shared per-head (D,D) torch weight -> block-diag (E,E), pre-T
        return jnp.kron(eye, w.T)

    wqkv = jnp.stack([
        jnp.concatenate([bdiag(b["wq"]) * scale, bdiag(b["wk"]), bdiag(b["wv"])],
                        axis=1)
        for b in blocks]).astype(bf16)                             # (L, E, 3E)

    packed = dict(
        wp=params["patch_w"].reshape(E, -1).T.astype(bf16),        # (CPP, E)
        wqkv=wqkv,
        wo=jnp.stack([b["wo"].T for b in blocks]).astype(bf16),    # (L, E, E)
        bo=jnp.stack([b["bo"] for b in blocks]).astype(f32),       # (L, 1, E)
        g1=jnp.stack([b["g1"] for b in blocks]).astype(f32),
        be1=jnp.stack([b["be1"] for b in blocks]).astype(f32),
        w1=jnp.stack([b["w1"].T for b in blocks]).astype(bf16),    # (L, E, hid)
        b1=jnp.stack([b["b1"] for b in blocks]).astype(f32),       # (L, 1, hid)
        w2=jnp.stack([b["w2"].T for b in blocks]).astype(bf16),    # (L, hid, E)
        b2=jnp.stack([b["b2"] for b in blocks]).astype(f32),
        g2=jnp.stack([b["g2"] for b in blocks]).astype(f32),
        be2=jnp.stack([b["be2"] for b in blocks]).astype(f32),
        head_w=params["head_w"].T.astype(f32),                     # (E, classes)
        head_b=params["head_b"].reshape(1, -1).astype(f32),
    )
    # cls token + positional embedding + patch bias folded into one additive
    # (S, E) term (row 0: cls + pos0; rows 1..: patch_b + pos_i).
    pos = params["pos"][0, :S].astype(f32)
    bias_full = pos.at[0].add(params["cls"][0, 0])
    bias_full = bias_full.at[1:].add(params["patch_b"])
    packed["bias_full"] = bias_full
    return packed


# -----------------------------------------------------------------------------
# Forward wrapper: patch extraction (layout plumbing) + one pallas_call.
# -----------------------------------------------------------------------------
def policy_network_forward(x_img, packed, *, patch_size, heads, layers):
    N, C, H, W = x_img.shape
    E = packed["bias_full"].shape[-1]
    num_classes = packed["head_w"].shape[-1]
    hidden = packed["w1"].shape[-1]
    ph, pw = H // patch_size, W // patch_size
    n_patch = ph * pw
    S = n_patch + 1
    CPP = C * patch_size * patch_size

    # Conv2d(k=s=P) == non-overlapping patch extraction + Linear (the Linear is
    # done inside the kernel).  Prepend a zero row so the class-token position
    # gets no patch contribution; its value comes from bias_full row 0.
    patches = x_img.reshape(N, C, ph, patch_size, pw, patch_size)
    patches = patches.transpose(0, 2, 4, 1, 3, 5).reshape(N, n_patch, CPP)
    patches = jnp.pad(patches, ((0, 0), (1, 0), (0, 0))).astype(jnp.bfloat16)

    def _full(shape):
        zeros = (0,) * len(shape)
        return pl.BlockSpec(shape, lambda n, _z=zeros: _z)

    L = layers
    in_specs = [
        pl.BlockSpec((1, S, CPP), lambda n: (n, 0, 0)),   # patches (per batch)
        _full((S, E)),                                    # bias_full
        _full((CPP, E)),                                  # wp
        _full((L, E, 3 * E)),                             # wqkv
        _full((L, E, E)),                                 # wo
        _full((L, 1, E)),                                 # bo
        _full((L, 1, E)),                                 # gamma1
        _full((L, 1, E)),                                 # beta1
        _full((L, E, hidden)),                            # w1
        _full((L, 1, hidden)),                            # b1
        _full((L, hidden, E)),                            # w2
        _full((L, 1, E)),                                 # b2
        _full((L, 1, E)),                                 # gamma2
        _full((L, 1, E)),                                 # beta2
        _full((E, num_classes)),                          # head_w
        _full((1, num_classes)),                          # head_b
    ]
    out_spec = pl.BlockSpec((1, 1, num_classes), lambda n: (n, 0, 0))

    kernel = functools.partial(_vit_kernel, heads=heads, layers=layers, embed=E)

    out = pl.pallas_call(
        kernel,
        out_shape=jax.ShapeDtypeStruct((N, 1, num_classes), jnp.float32),
        grid_spec=pltpu.PrefetchScalarGridSpec(
            num_scalar_prefetch=0,
            grid=(N,),
            in_specs=in_specs,
            out_specs=out_spec),
        compiler_params=pltpu.CompilerParams(
            dimension_semantics=("parallel",)),
    )(patches, packed["bias_full"], packed["wp"], packed["wqkv"],
      packed["wo"], packed["bo"], packed["g1"], packed["be1"],
      packed["w1"], packed["b1"], packed["w2"], packed["b2"],
      packed["g2"], packed["be2"], packed["head_w"], packed["head_b"])
    return out.reshape(N, num_classes)


# -----------------------------------------------------------------------------
# Pure-JAX reference mirroring the PyTorch forward (bf16 matmuls like the
# kernel so the comparison is apples-to-apples).
# -----------------------------------------------------------------------------
def _ref_mm(a, b):
    return jnp.matmul(a.astype(jnp.bfloat16), b.astype(jnp.bfloat16),
                      preferred_element_type=jnp.float32)


def _ref_block(x, p, *, heads, embed_size):
    N, S, E = x.shape
    D = E // heads
    bf16 = jnp.bfloat16
    xh = x.reshape(N, S, heads, D)

    def proj(w):
        return jnp.einsum("nshd,fd->nshf", xh.astype(bf16), w.astype(bf16),
                          preferred_element_type=jnp.float32)

    q, k, v = proj(p["wq"]), proj(p["wk"]), proj(p["wv"])
    energy = jnp.einsum("nqhd,nkhd->nhqk", q.astype(bf16), k.astype(bf16),
                        preferred_element_type=jnp.float32)
    attn = jax.nn.softmax(energy / (float(embed_size) ** 0.5), axis=3)
    out = jnp.einsum("nhql,nlhd->nqhd", attn.astype(bf16), v.astype(bf16),
                     preferred_element_type=jnp.float32).reshape(N, S, E)
    out = _ref_mm(out, p["wo"].T) + p["bo"]

    def ln(z, g, b):
        mu = jnp.mean(z, axis=-1, keepdims=True)
        var = jnp.mean((z - mu) ** 2, axis=-1, keepdims=True)
        return (z - mu) * jax.lax.rsqrt(var + 1e-5) * g + b

    x1 = ln(out + x, p["g1"], p["be1"])
    h1 = jnp.maximum(_ref_mm(x1, p["w1"].T) + p["b1"], 0.0)
    ff = _ref_mm(h1, p["w2"].T) + p["b2"]
    return ln(ff + x1, p["g2"], p["be2"])


def reference_forward(x_img, params, *, patch_size, heads):
    N, C, Hh, Ww = x_img.shape
    E = params["pos"].shape[-1]
    ph, pw = Hh // patch_size, Ww // patch_size
    n_patch = ph * pw
    patches = x_img.reshape(N, C, ph, patch_size, pw, patch_size)
    patches = patches.transpose(0, 2, 4, 1, 3, 5).reshape(N, n_patch, -1)
    emb = _ref_mm(patches, params["patch_w"].reshape(E, -1).T) + params["patch_b"]
    cls = jnp.broadcast_to(params["cls"], (N, 1, E))
    xs = jnp.concatenate([cls, emb], axis=1) + params["pos"][:, :n_patch + 1, :]
    for blk in params["blocks"]:
        xs = _ref_block(xs, blk, heads=heads, embed_size=E)
    pooled = jnp.mean(xs, axis=1)
    logits = pooled @ params["head_w"].T + params["head_b"]
    return jax.nn.softmax(logits, axis=1)


# -----------------------------------------------------------------------------
def make_params(rng, cfg):
    E = cfg["embed_size"]
    H = cfg["heads"]
    D = E // H
    hidden = cfg["forward_expansion"] * E
    C = cfg["in_channels"]
    P = cfg["patch_size"]
    n_tok = (cfg["image_size"] // P) ** 2 + 1
    keys = iter(jax.random.split(rng, 9 * cfg["layers"] + 8))
    s = 0.05

    def rnd(shape):
        return s * jax.random.normal(next(keys), shape, jnp.float32)

    blocks = []
    for _ in range(cfg["layers"]):
        blocks.append(dict(
            wq=rnd((D, D)), wk=rnd((D, D)), wv=rnd((D, D)),
            wo=rnd((E, E)), bo=rnd((1, E)),
            g1=jnp.ones((1, E), jnp.float32), be1=jnp.zeros((1, E), jnp.float32),
            w1=rnd((hidden, E)), b1=rnd((1, hidden)),
            w2=rnd((E, hidden)), b2=rnd((1, E)),
            g2=jnp.ones((1, E), jnp.float32), be2=jnp.zeros((1, E), jnp.float32),
        ))
    return dict(
        patch_w=rnd((E, C, P, P)),
        patch_b=rnd((E,)),
        cls=jax.random.normal(next(keys), (1, 1, E), jnp.float32),
        pos=jax.random.normal(next(keys), (1, n_tok, E), jnp.float32),
        blocks=blocks,
        head_w=rnd((cfg["num_classes"], E)),
        head_b=rnd((cfg["num_classes"],)),
    )


if __name__ == "__main__":
    # Small, shape-consistent config: 64x64 RGB image, 16x16 patches ->
    # 16 patches + 1 class token = 17 tokens; embed 128, 4 heads, 2 layers,
    # ffn expansion 4, 4 classes.
    cfg = dict(batch=2, in_channels=3, image_size=64, patch_size=16,
               embed_size=128, heads=4, layers=2, forward_expansion=4,
               num_classes=4)

    root = jax.random.PRNGKey(0)
    k_x, k_p = jax.random.split(root)
    x_img = jax.random.normal(
        k_x,
        (cfg["batch"], cfg["in_channels"], cfg["image_size"], cfg["image_size"]),
        jnp.float32)
    params = make_params(k_p, cfg)

    n_patch = (cfg["image_size"] // cfg["patch_size"]) ** 2
    packed = pack_params(params, heads=cfg["heads"], n_patch=n_patch)

    fwd = jax.jit(functools.partial(policy_network_forward,
                                    patch_size=cfg["patch_size"],
                                    heads=cfg["heads"],
                                    layers=cfg["layers"]))
    out = jax.block_until_ready(fwd(x_img, packed))

    ref = reference_forward(x_img, params,
                            patch_size=cfg["patch_size"], heads=cfg["heads"])

    assert out.shape == (cfg["batch"], cfg["num_classes"])
    np.testing.assert_allclose(np.asarray(out), np.asarray(ref),
                               rtol=2e-2, atol=2e-2)
    print("KERNEL_OK")
</pallas_src>

<mosaic_0001>
module attributes {stable_mosaic.version = 11 : i64} {
  func.func @_vit_kernel(%arg0: i32, %arg1: memref<1x17x768xbf16, #tpu.memory_space<vmem>>, %arg2: memref<17x128xf32, #tpu.memory_space<vmem>>, %arg3: memref<768x128xbf16, #tpu.memory_space<vmem>>, %arg4: memref<2x128x384xbf16, #tpu.memory_space<vmem>>, %arg5: memref<2x128x128xbf16, #tpu.memory_space<vmem>>, %arg6: memref<2x1x128xf32, #tpu.memory_space<vmem>>, %arg7: memref<2x1x128xf32, #tpu.memory_space<vmem>>, %arg8: memref<2x1x128xf32, #tpu.memory_space<vmem>>, %arg9: memref<2x128x512xbf16, #tpu.memory_space<vmem>>, %arg10: memref<2x1x512xf32, #tpu.memory_space<vmem>>, %arg11: memref<2x512x128xbf16, #tpu.memory_space<vmem>>, %arg12: memref<2x1x128xf32, #tpu.memory_space<vmem>>, %arg13: memref<2x1x128xf32, #tpu.memory_space<vmem>>, %arg14: memref<2x1x128xf32, #tpu.memory_space<vmem>>, %arg15: memref<128x4xf32, #tpu.memory_space<vmem>>, %arg16: memref<1x4xf32, #tpu.memory_space<vmem>>, %arg17: memref<1x1x4xf32, #tpu.memory_space<vmem>>) attributes {dimension_semantics = [#tpu.dimension_semantics<parallel>], iteration_bounds = array<i64: 2>, scalar_prefetch = 0 : i64, scratch_operands = 0 : i64, tpu.core_type = #tpu.core_type<tc>, window_params = [{transform_indices = @transform_0, window_bounds = array<i64: 1, 17, 768>}, {pipeline_mode = #tpu.pipeline_mode<synchronous>, transform_indices = @transform_1, window_bounds = array<i64: 17, 128>}, {pipeline_mode = #tpu.pipeline_mode<synchronous>, transform_indices = @transform_2, window_bounds = array<i64: 768, 128>}, {pipeline_mode = #tpu.pipeline_mode<synchronous>, transform_indices = @transform_3, window_bounds = array<i64: 2, 128, 384>}, {pipeline_mode = #tpu.pipeline_mode<synchronous>, transform_indices = @transform_4, window_bounds = array<i64: 2, 128, 128>}, {pipeline_mode = #tpu.pipeline_mode<synchronous>, transform_indices = @transform_5, window_bounds = array<i64: 2, 1, 128>}, {pipeline_mode = #tpu.pipeline_mode<synchronous>, transform_indices = @transform_6, window_bounds = array<i64: 2, 1, 128>}, {pipeline_mode = #tpu.pipeline_mode<synchronous>, transform_indices = @transform_7, window_bounds = array<i64: 2, 1, 128>}, {pipeline_mode = #tpu.pipeline_mode<synchronous>, transform_indices = @transform_8, window_bounds = array<i64: 2, 128, 512>}, {pipeline_mode = #tpu.pipeline_mode<synchronous>, transform_indices = @transform_9, window_bounds = array<i64: 2, 1, 512>}, {pipeline_mode = #tpu.pipeline_mode<synchronous>, transform_indices = @transform_10, window_bounds = array<i64: 2, 512, 128>}, {pipeline_mode = #tpu.pipeline_mode<synchronous>, transform_indices = @transform_11, window_bounds = array<i64: 2, 1, 128>}, {pipeline_mode = #tpu.pipeline_mode<synchronous>, transform_indices = @transform_12, window_bounds = array<i64: 2, 1, 128>}, {pipeline_mode = #tpu.pipeline_mode<synchronous>, transform_indices = @transform_13, window_bounds = array<i64: 2, 1, 128>}, {pipeline_mode = #tpu.pipeline_mode<synchronous>, transform_indices = @transform_14, window_bounds = array<i64: 128, 4>}, {pipeline_mode = #tpu.pipeline_mode<synchronous>, transform_indices = @transform_15, window_bounds = array<i64: 1, 4>}, {transform_indices = @transform_16, window_bounds = array<i64: 1, 1, 4>}]} {
    %c0 = arith.constant 0 : index
    %c0_0 = arith.constant 0 : index
    %c0_1 = arith.constant 0 : index
    %0 = vector.load %arg1[%c0, %c0_0, %c0_1] : memref<1x17x768xbf16, #tpu.memory_space<vmem>>, vector<1x17x768xbf16>
    %1 = vector.shape_cast %0 : vector<1x17x768xbf16> to vector<17x768xbf16>
    %c0_2 = arith.constant 0 : index
    %c0_3 = arith.constant 0 : index
    %2 = vector.load %arg3[%c0_2, %c0_3] : memref<768x128xbf16, #tpu.memory_space<vmem>>, vector<768x128xbf16>
    %cst = arith.constant dense<0.000000e+00> : vector<17x128xf32>
    %3 = tpu.matmul %1, %2, %cst {dimension_numbers = #tpu.dot_dimension_numbers<[1], [0], [0], [1], [0, 0, 1, 1], [], []>} : vector<17x768xbf16>, vector<768x128xbf16>, vector<17x128xf32> -> vector<17x128xf32>
    %c0_4 = arith.constant 0 : index
    %c0_5 = arith.constant 0 : index
    %4 = vector.load %arg2[%c0_4, %c0_5] : memref<17x128xf32, #tpu.memory_space<vmem>>, vector<17x128xf32>
    %5 = arith.addf %3, %4 : vector<17x128xf32>
    %6 = arith.truncf %5 : vector<17x128xf32> to vector<17x128xbf16>
    %c0_6 = arith.constant 0 : index
    %c0_7 = arith.constant 0 : index
    %c0_8 = arith.constant 0 : index
    %7 = vector.load %arg4[%c0_6, %c0_7, %c0_8] : memref<2x128x384xbf16, #tpu.memory_space<vmem>>, vector<1x128x384xbf16>
    %8 = vector.shape_cast %7 : vector<1x128x384xbf16> to vector<128x384xbf16>
    %cst_9 = arith.constant dense<0.000000e+00> : vector<17x384xf32>
    %9 = tpu.matmul %6, %8, %cst_9 {dimension_numbers = #tpu.dot_dimension_numbers<[1], [0], [0], [1], [0, 0, 1, 1], [], []>} : vector<17x128xbf16>, vector<128x384xbf16>, vector<17x384xf32> -> vector<17x384xf32>
    %10 = vector.extract_strided_slice %9 {offsets = [0, 0], sizes = [17, 128], strides = [1, 1]} : vector<17x384xf32> to vector<17x128xf32>
    %11 = vector.extract_strided_slice %9 {offsets = [0, 128], sizes = [17, 128], strides = [1, 1]} : vector<17x384xf32> to vector<17x128xf32>
    %12 = vector.extract_strided_slice %9 {offsets = [0, 256], sizes = [17, 128], strides = [1, 1]} : vector<17x384xf32> to vector<17x128xf32>
    %13 = vector.extract_strided_slice %10 {offsets = [0, 0], sizes = [17, 32], strides = [1, 1]} : vector<17x128xf32> to vector<17x32xf32>
    %14 = arith.truncf %13 : vector<17x32xf32> to vector<17x32xbf16>
    %15 = vector.extract_strided_slice %11 {offsets = [0, 0], sizes = [17, 32], strides = [1, 1]} : vector<17x128xf32> to vector<17x32xf32>
    %16 = arith.truncf %15 : vector<17x32xf32> to vector<17x32xbf16>
    %17 = vector.extract_strided_slice %12 {offsets = [0, 0], sizes = [17, 32], strides = [1, 1]} : vector<17x128xf32> to vector<17x32xf32>
    %18 = arith.truncf %17 : vector<17x32xf32> to vector<17x32xbf16>
    "tpu.trace_start"() <{level = 10 : i32, message = "qd,kd->qk"}> : () -> ()
    %cst_10 = arith.constant dense<0.000000e+00> : vector<17x17xf32>
    %19 = tpu.matmul %14, %16, %cst_10 {dimension_numbers = #tpu.dot_dimension_numbers<[1], [1], [0], [0], [0, 0, 1, 0], [], []>} : vector<17x32xbf16>, vector<17x32xbf16>, vector<17x17xf32> -> vector<17x17xf32>
    "tpu.trace_stop"() : () -> ()
    %cst_11 = arith.constant dense<0xFF800000> : vector<17xf32>
    %20 = vector.multi_reduction <maximumf>, %19, %cst_11 [1] : vector<17x17xf32> to vector<17xf32>
    %21 = vector.shape_cast %20 : vector<17xf32> to vector<17x1xf32>
    %22 = vector.broadcast %21 : vector<17x1xf32> to vector<17x17xf32>
    %23 = arith.subf %19, %22 : vector<17x17xf32>
    %24 = math.exp %23 : vector<17x17xf32>
    %cst_12 = arith.constant dense<0.000000e+00> : vector<17xf32>
    %25 = vector.multi_reduction <add>, %24, %cst_12 [1] : vector<17x17xf32> to vector<17xf32>
    %26 = vector.shape_cast %25 : vector<17xf32> to vector<17x1xf32>
    %27 = tpu.reciprocal %26 {approx = true} : vector<17x1xf32> -> vector<17x1xf32>
    %28 = vector.broadcast %27 : vector<17x1xf32> to vector<17x17xf32>
    %29 = arith.mulf %24, %28 : vector<17x17xf32>
    %30 = arith.truncf %29 : vector<17x17xf32> to vector<17x17xbf16>
    %cst_13 = arith.constant dense<0.000000e+00> : vector<17x32xf32>
    %31 = tpu.matmul %30, %18, %cst_13 {dimension_numbers = #tpu.dot_dimension_numbers<[1], [0], [0], [1], [0, 0, 1, 1], [], []>} : vector<17x17xbf16>, vector<17x32xbf16>, vector<17x32xf32> -> vector<17x32xf32>
    %32 = vector.extract_strided_slice %10 {offsets = [0, 32], sizes = [17, 32], strides = [1, 1]} : vector<17x128xf32> to vector<17x32xf32>
    %33 = arith.truncf %32 : vector<17x32xf32> to vector<17x32xbf16>
    %34 = vector.extract_strided_slice %11 {offsets = [0, 32], sizes = [17, 32], strides = [1, 1]} : vector<17x128xf32> to vector<17x32xf32>
    %35 = arith.truncf %34 : vector<17x32xf32> to vector<17x32xbf16>
    %36 = vector.extract_strided_slice %12 {offsets = [0, 32], sizes = [17, 32], strides = [1, 1]} : vector<17x128xf32> to vector<17x32xf32>
    %37 = arith.truncf %36 : vector<17x32xf32> to vector<17x32xbf16>
    "tpu.trace_start"() <{level = 10 : i32, message = "qd,kd->qk"}> : () -> ()
    %cst_14 = arith.constant dense<0.000000e+00> : vector<17x17xf32>
    %38 = tpu.matmul %33, %35, %cst_14 {dimension_numbers = #tpu.dot_dimension_numbers<[1], [1], [0], [0], [0, 0, 1, 0], [], []>} : vector<17x32xbf16>, vector<17x32xbf16>, vector<17x17xf32> -> vector<17x17xf32>
    "tpu.trace_stop"() : () -> ()
    %cst_15 = arith.constant dense<0xFF800000> : vector<17xf32>
    %39 = vector.multi_reduction <maximumf>, %38, %cst_15 [1] : vector<17x17xf32> to vector<17xf32>
    %40 = vector.shape_cast %39 : vector<17xf32> to vector<17x1xf32>
    %41 = vector.broadcast %40 : vector<17x1xf32> to vector<17x17xf32>
    %42 = arith.subf %38, %41 : vector<17x17xf32>
    %43 = math.exp %42 : vector<17x17xf32>
    %cst_16 = arith.constant dense<0.000000e+00> : vector<17xf32>
    %44 = vector.multi_reduction <add>, %43, %cst_16 [1] : vector<17x17xf32> to vector<17xf32>
    %45 = vector.shape_cast %44 : vector<17xf32> to vector<17x1xf32>
    %46 = tpu.reciprocal %45 {approx = true} : vector<17x1xf32> -> vector<17x1xf32>
    %47 = vector.broadcast %46 : vector<17x1xf32> to vector<17x17xf32>
    %48 = arith.mulf %43, %47 : vector<17x17xf32>
    %49 = arith.truncf %48 : vector<17x17xf32> to vector<17x17xbf16>
    %cst_17 = arith.constant dense<0.000000e+00> : vector<17x32xf32>
    %50 = tpu.matmul %49, %37, %cst_17 {dimension_numbers = #tpu.dot_dimension_numbers<[1], [0], [0], [1], [0, 0, 1, 1], [], []>} : vector<17x17xbf16>, vector<17x32xbf16>, vector<17x32xf32> -> vector<17x32xf32>
    %51 = vector.extract_strided_slice %10 {offsets = [0, 64], sizes = [17, 32], strides = [1, 1]} : vector<17x128xf32> to vector<17x32xf32>
    %52 = arith.truncf %51 : vector<17x32xf32> to vector<17x32xbf16>
    %53 = vector.extract_strided_slice %11 {offsets = [0, 64], sizes = [17, 32], strides = [1, 1]} : vector<17x128xf32> to vector<17x32xf32>
    %54 = arith.truncf %53 : vector<17x32xf32> to vector<17x32xbf16>
    %55 = vector.extract_strided_slice %12 {offsets = [0, 64], sizes = [17, 32], strides = [1, 1]} : vector<17x128xf32> to vector<17x32xf32>
    %56 = arith.truncf %55 : vector<17x32xf32> to vector<17x32xbf16>
    "tpu.trace_start"() <{level = 10 : i32, message = "qd,kd->qk"}> : () -> ()
    %cst_18 = arith.constant dense<0.000000e+00> : vector<17x17xf32>
    %57 = tpu.matmul %52, %54, %cst_18 {dimension_numbers = #tpu.dot_dimension_numbers<[1], [1], [0], [0], [0, 0, 1, 0], [], []>} : vector<17x32xbf16>, vector<17x32xbf16>, vector<17x17xf32> -> vector<17x17xf32>
    "tpu.trace_stop"() : () -> ()
    %cst_19 = arith.constant dense<0xFF800000> : vector<17xf32>
    %58 = vector.multi_reduction <maximumf>, %57, %cst_19 [1] : vector<17x17xf32> to vector<17xf32>
    %59 = vector.shape_cast %58 : vector<17xf32> to vector<17x1xf32>
    %60 = vector.broadcast %59 : vector<17x1xf32> to vector<17x17xf32>
    %61 = arith.subf %57, %60 : vector<17x17xf32>
    %62 = math.exp %61 : vector<17x17xf32>
    %cst_20 = arith.constant dense<0.000000e+00> : vector<17xf32>
    %63 = vector.multi_reduction <add>, %62, %cst_20 [1] : vector<17x17xf32> to vector<17xf32>
    %64 = vector.shape_cast %63 : vector<17xf32> to vector<17x1xf32>
    %65 = tpu.reciprocal %64 {approx = true} : vector<17x1xf32> -> vector<17x1xf32>
    %66 = vector.broadcast %65 : vector<17x1xf32> to vector<17x17xf32>
    %67 = arith.mulf %62, %66 : vector<17x17xf32>
    %68 = arith.truncf %67 : vector<17x17xf32> to vector<17x17xbf16>
    %cst_21 = arith.constant dense<0.000000e+00> : vector<17x32xf32>
    %69 = tpu.matmul %68, %56, %cst_21 {dimension_numbers = #tpu.dot_dimension_numbers<[1], [0], [0], [1], [0, 0, 1, 1], [], []>} : vector<17x17xbf16>, vector<17x32xbf16>, vector<17x32xf32> -> vector<17x32xf32>
    %70 = vector.extract_strided_slice %10 {offsets = [0, 96], sizes = [17, 32], strides = [1, 1]} : vector<17x128xf32> to vector<17x32xf32>
    %71 = arith.truncf %70 : vector<17x32xf32> to vector<17x32xbf16>
    %72 = vector.extract_strided_slice %11 {offsets = [0, 96], sizes = [17, 32], strides = [1, 1]} : vector<17x128xf32> to vector<17x32xf32>
    %73 = arith.truncf %72 : vector<17x32xf32> to vector<17x32xbf16>
    %74 = vector.extract_strided_slice %12 {offsets = [0, 96], sizes = [17, 32], strides = [1, 1]} : vector<17x128xf32> to vector<17x32xf32>
    %75 = arith.truncf %74 : vector<17x32xf32> to vector<17x32xbf16>
    "tpu.trace_start"() <{level = 10 : i32, message = "qd,kd->qk"}> : () -> ()
    %cst_22 = arith.constant dense<0.000000e+00> : vector<17x17xf32>
    %76 = tpu.matmul %71, %73, %cst_22 {dimension_numbers = #tpu.dot_dimension_numbers<[1], [1], [0], [0], [0, 0, 1, 0], [], []>} : vector<17x32xbf16>, vector<17x32xbf16>, vector<17x17xf32> -> vector<17x17xf32>
    "tpu.trace_stop"() : () -> ()
    %cst_23 = arith.constant dense<0xFF800000> : vector<17xf32>
    %77 = vector.multi_reduction <maximumf>, %76, %cst_23 [1] : vector<17x17xf32> to vector<17xf32>
    %78 = vector.shape_cast %77 : vector<17xf32> to vector<17x1xf32>
    %79 = vector.broadcast %78 : vector<17x1xf32> to vector<17x17xf32>
    %80 = arith.subf %76, %79 : vector<17x17xf32>
    %81 = math.exp %80 : vector<17x17xf32>
    %cst_24 = arith.constant dense<0.000000e+00> : vector<17xf32>
    %82 = vector.multi_reduction <add>, %81, %cst_24 [1] : vector<17x17xf32> to vector<17xf32>
    %83 = vector.shape_cast %82 : vector<17xf32> to vector<17x1xf32>
    %84 = tpu.reciprocal %83 {approx = true} : vector<17x1xf32> -> vector<17x1xf32>
    %85 = vector.broadcast %84 : vector<17x1xf32> to vector<17x17xf32>
    %86 = arith.mulf %81, %85 : vector<17x17xf32>
    %87 = arith.truncf %86 : vector<17x17xf32> to vector<17x17xbf16>
    %cst_25 = arith.constant dense<0.000000e+00> : vector<17x32xf32>
    %88 = tpu.matmul %87, %75, %cst_25 {dimension_numbers = #tpu.dot_dimension_numbers<[1], [0], [0], [1], [0, 0, 1, 1], [], []>} : vector<17x17xbf16>, vector<17x32xbf16>, vector<17x32xf32> -> vector<17x32xf32>
    %89 = tpu.concatenate %31, %50, %69, %88 in 1 : vector<17x32xf32>, vector<17x32xf32>, vector<17x32xf32>, vector<17x32xf32> -> vector<17x128xf32>
    %90 = arith.truncf %89 : vector<17x128xf32> to vector<17x128xbf16>
    %c0_26 = arith.constant 0 : index
    %c0_27 = arith.constant 0 : index
    %c0_28 = arith.constant 0 : index
    %91 = vector.load %arg5[%c0_26, %c0_27, %c0_28] : memref<2x128x128xbf16, #tpu.memory_space<vmem>>, vector<1x128x128xbf16>
    %92 = vector.shape_cast %91 : vector<1x128x128xbf16> to vector<128x128xbf16>
    %cst_29 = arith.constant dense<0.000000e+00> : vector<17x128xf32>
    %93 = tpu.matmul %90, %92, %cst_29 {dimension_numbers = #tpu.dot_dimension_numbers<[1], [0], [0], [1], [0, 0, 1, 1], [], []>} : vector<17x128xbf16>, vector<128x128xbf16>, vector<17x128xf32> -> vector<17x128xf32>
    %c0_30 = arith.constant 0 : index
    %c0_31 = arith.constant 0 : index
    %c0_32 = arith.constant 0 : index
    %94 = vector.load %arg6[%c0_30, %c0_31, %c0_32] : memref<2x1x128xf32, #tpu.memory_space<vmem>>, vector<1x1x128xf32>
    %95 = vector.shape_cast %94 : vector<1x1x128xf32> to vector<1x128xf32>
    %96 = vector.broadcast %95 : vector<1x128xf32> to vector<17x128xf32>
    %97 = arith.addf %93, %96 : vector<17x128xf32>
    %98 = arith.addf %97, %5 : vector<17x128xf32>
    %c0_33 = arith.constant 0 : index
    %c0_34 = arith.constant 0 : index
    %c0_35 = arith.constant 0 : index
    %99 = vector.load %arg7[%c0_33, %c0_34, %c0_35] : memref<2x1x128xf32, #tpu.memory_space<vmem>>, vector<1x1x128xf32>
    %100 = vector.shape_cast %99 : vector<1x1x128xf32> to vector<1x128xf32>
    %c0_36 = arith.constant 0 : index
    %c0_37 = arith.constant 0 : index
    %c0_38 = arith.constant 0 : index
    %101 = vector.load %arg8[%c0_36, %c0_37, %c0_38] : memref<2x1x128xf32, #tpu.memory_space<vmem>>, vector<1x1x128xf32>
    %102 = vector.shape_cast %101 : vector<1x1x128xf32> to vector<1x128xf32>
    %cst_39 = arith.constant dense<0.000000e+00> : vector<17xf32>
    %103 = vector.multi_reduction <add>, %98, %cst_39 [1] : vector<17x128xf32> to vector<17xf32>
    %104 = vector.shape_cast %103 : vector<17xf32> to vector<17x1xf32>
    %cst_40 = arith.constant 1.280000e+02 : f32
    %105 = vector.broadcast %cst_40 : f32 to vector<17x1xf32>
    %106 = arith.divf %104, %105 : vector<17x1xf32>
    %107 = vector.broadcast %106 : vector<17x1xf32> to vector<17x128xf32>
    %108 = arith.subf %98, %107 : vector<17x128xf32>
    %109 = arith.mulf %108, %108 : vector<17x128xf32>
    %cst_41 = arith.constant dense<0.000000e+00> : vector<17xf32>
    %110 = vector.multi_reduction <add>, %109, %cst_41 [1] : vector<17x128xf32> to vector<17xf32>
    %111 = vector.shape_cast %110 : vector<17xf32> to vector<17x1xf32>
    %cst_42 = arith.constant 1.280000e+02 : f32
    %112 = vector.broadcast %cst_42 : f32 to vector<17x1xf32>
    %113 = arith.divf %111, %112 : vector<17x1xf32>
    %114 = vector.broadcast %106 : vector<17x1xf32> to vector<17x128xf32>
    %115 = arith.subf %98, %114 : vector<17x128xf32>
    %cst_43 = arith.constant 9.99999974E-6 : f32
    %116 = vector.broadcast %cst_43 : f32 to vector<17x1xf32>
    %117 = arith.addf %113, %116 : vector<17x1xf32>
    %118 = math.rsqrt %117 : vector<17x1xf32>
    %119 = vector.broadcast %118 : vector<17x1xf32> to vector<17x128xf32>
    %120 = arith.mulf %115, %119 : vector<17x128xf32>
    %121 = vector.broadcast %100 : vector<1x128xf32> to vector<17x128xf32>
    %122 = arith.mulf %120, %121 : vector<17x128xf32>
    %123 = vector.broadcast %102 : vector<1x128xf32> to vector<17x128xf32>
    %124 = arith.addf %122, %123 : vector<17x128xf32>
    %125 = arith.truncf %124 : vector<17x128xf32> to vector<17x128xbf16>
    %c0_44 = arith.constant 0 : index
    %c0_45 = arith.constant 0 : index
    %c0_46 = arith.constant 0 : index
    %126 = vector.load %arg9[%c0_44, %c0_45, %c0_46] : memref<2x128x512xbf16, #tpu.memory_space<vmem>>, vector<1x128x512xbf16>
    %127 = vector.shape_cast %126 : vector<1x128x512xbf16> to vector<128x512xbf16>
    %cst_47 = arith.constant dense<0.000000e+00> : vector<17x512xf32>
    %128 = tpu.matmul %125, %127, %cst_47 {dimension_numbers = #tpu.dot_dimension_numbers<[1], [0], [0], [1], [0, 0, 1, 1], [], []>} : vector<17x128xbf16>, vector<128x512xbf16>, vector<17x512xf32> -> vector<17x512xf32>
    %c0_48 = arith.constant 0 : index
    %c0_49 = arith.constant 0 : index
    %c0_50 = arith.constant 0 : index
    %129 = vector.load %arg10[%c0_48, %c0_49, %c0_50] : memref<2x1x512xf32, #tpu.memory_space<vmem>>, vector<1x1x512xf32>
    %130 = vector.shape_cast %129 : vector<1x1x512xf32> to vector<1x512xf32>
    %131 = vector.broadcast %130 : vector<1x512xf32> to vector<17x512xf32>
    %132 = arith.addf %128, %131 : vector<17x512xf32>
    %cst_51 = arith.constant 0.000000e+00 : f32
    %133 = vector.broadcast %cst_51 : f32 to vector<17x512xf32>
    %134 = arith.maximumf %132, %133 : vector<17x512xf32>
    %135 = arith.truncf %134 : vector<17x512xf32> to vector<17x512xbf16>
    %c0_52 = arith.constant 0 : index
    %c0_53 = arith.constant 0 : index
    %c0_54 = arith.constant 0 : index
    %136 = vector.load %arg11[%c0_52, %c0_53, %c0_54] : memref<2x512x128xbf16, #tpu.memory_space<vmem>>, vector<1x512x128xbf16>
    %137 = vector.shape_cast %136 : vector<1x512x128xbf16> to vector<512x128xbf16>
    %cst_55 = arith.constant dense<0.000000e+00> : vector<17x128xf32>
    %138 = tpu.matmul %135, %137, %cst_55 {dimension_numbers = #tpu.dot_dimension_numbers<[1], [0], [0], [1], [0, 0, 1, 1], [], []>} : vector<17x512xbf16>, vector<512x128xbf16>, vector<17x128xf32> -> vector<17x128xf32>
    %c0_56 = arith.constant 0 : index
    %c0_57 = arith.constant 0 : index
    %c0_58 = arith.constant 0 : index
    %139 = vector.load %arg12[%c0_56, %c0_57, %c0_58] : memref<2x1x128xf32, #tpu.memory_space<vmem>>, vector<1x1x128xf32>
    %140 = vector.shape_cast %139 : vector<1x1x128xf32> to vector<1x128xf32>
    %141 = vector.broadcast %140 : vector<1x128xf32> to vector<17x128xf32>
    %142 = arith.addf %138, %141 : vector<17x128xf32>
    %143 = arith.addf %142, %124 : vector<17x128xf32>
    %c0_59 = arith.constant 0 : index
    %c0_60 = arith.constant 0 : index
    %c0_61 = arith.constant 0 : index
    %144 = vector.load %arg13[%c0_59, %c0_60, %c0_61] : memref<2x1x128xf32, #tpu.memory_space<vmem>>, vector<1x1x128xf32>
    %145 = vector.shape_cast %144 : vector<1x1x128xf32> to vector<1x128xf32>
    %c0_62 = arith.constant 0 : index
    %c0_63 = arith.constant 0 : index
    %c0_64 = arith.constant 0 : index
    %146 = vector.load %arg14[%c0_62, %c0_63, %c0_64] : memref<2x1x128xf32, #tpu.memory_space<vmem>>, vector<1x1x128xf32>
    %147 = vector.shape_cast %146 : vector<1x1x128xf32> to vector<1x128xf32>
    %cst_65 = arith.constant dense<0.000000e+00> : vector<17xf32>
    %148 = vector.multi_reduction <add>, %143, %cst_65 [1] : vector<17x128xf32> to vector<17xf32>
    %149 = vector.shape_cast %148 : vector<17xf32> to vector<17x1xf32>
    %cst_66 = arith.constant 1.280000e+02 : f32
    %150 = vector.broadcast %cst_66 : f32 to vector<17x1xf32>
    %151 = arith.divf %149, %150 : vector<17x1xf32>
    %152 = vector.broadcast %151 : vector<17x1xf32> to vector<17x128xf32>
    %153 = arith.subf %143, %152 : vector<17x128xf32>
    %154 = arith.mulf %153, %153 : vector<17x128xf32>
    %cst_67 = arith.constant dense<0.000000e+00> : vector<17xf32>
    %155 = vector.multi_reduction <add>, %154, %cst_67 [1] : vector<17x128xf32> to vector<17xf32>
    %156 = vector.shape_cast %155 : vector<17xf32> to vector<17x1xf32>
    %cst_68 = arith.constant 1.280000e+02 : f32
    %157 = vector.broadcast %cst_68 : f32 to vector<17x1xf32>
    %158 = arith.divf %156, %157 : vector<17x1xf32>
    %159 = vector.broadcast %151 : vector<17x1xf32> to vector<17x128xf32>
    %160 = arith.subf %143, %159 : vector<17x128xf32>
    %cst_69 = arith.constant 9.99999974E-6 : f32
    %161 = vector.broadcast %cst_69 : f32 to vector<17x1xf32>
    %162 = arith.addf %158, %161 : vector<17x1xf32>
    %163 = math.rsqrt %162 : vector<17x1xf32>
    %164 = vector.broadcast %163 : vector<17x1xf32> to vector<17x128xf32>
    %165 = arith.mulf %160, %164 : vector<17x128xf32>
    %166 = vector.broadcast %145 : vector<1x128xf32> to vector<17x128xf32>
    %167 = arith.mulf %165, %166 : vector<17x128xf32>
    %168 = vector.broadcast %147 : vector<1x128xf32> to vector<17x128xf32>
    %169 = arith.addf %167, %168 : vector<17x128xf32>
    %170 = arith.truncf %169 : vector<17x128xf32> to vector<17x128xbf16>
    %c1 = arith.constant 1 : index
    %c0_70 = arith.constant 0 : index
    %c0_71 = arith.constant 0 : index
    %171 = vector.load %arg4[%c1, %c0_70, %c0_71] : memref<2x128x384xbf16, #tpu.memory_space<vmem>>, vector<1x128x384xbf16>
    %172 = vector.shape_cast %171 : vector<1x128x384xbf16> to vector<128x384xbf16>
    %cst_72 = arith.constant dense<0.000000e+00> : vector<17x384xf32>
    %173 = tpu.matmul %170, %172, %cst_72 {dimension_numbers = #tpu.dot_dimension_numbers<[1], [0], [0], [1], [0, 0, 1, 1], [], []>} : vector<17x128xbf16>, vector<128x384xbf16>, vector<17x384xf32> -> vector<17x384xf32>
    %174 = vector.extract_strided_slice %173 {offsets = [0, 0], sizes = [17, 128], strides = [1, 1]} : vector<17x384xf32> to vector<17x128xf32>
    %175 = vector.extract_strided_slice %173 {offsets = [0, 128], sizes = [17, 128], strides = [1, 1]} : vector<17x384xf32> to vector<17x128xf32>
    %176 = vector.extract_strided_slice %173 {offsets = [0, 256], sizes = [17, 128], strides = [1, 1]} : vector<17x384xf32> to vector<17x128xf32>
    %177 = vector.extract_strided_slice %174 {offsets = [0, 0], sizes = [17, 32], strides = [1, 1]} : vector<17x128xf32> to vector<17x32xf32>
    %178 = arith.truncf %177 : vector<17x32xf32> to vector<17x32xbf16>
    %179 = vector.extract_strided_slice %175 {offsets = [0, 0], sizes = [17, 32], strides = [1, 1]} : vector<17x128xf32> to vector<17x32xf32>
    %180 = arith.truncf %179 : vector<17x32xf32> to vector<17x32xbf16>
    %181 = vector.extract_strided_slice %176 {offsets = [0, 0], sizes = [17, 32], strides = [1, 1]} : vector<17x128xf32> to vector<17x32xf32>
    %182 = arith.truncf %181 : vector<17x32xf32> to vector<17x32xbf16>
    "tpu.trace_start"() <{level = 10 : i32, message = "qd,kd->qk"}> : () -> ()
    %cst_73 = arith.constant dense<0.000000e+00> : vector<17x17xf32>
    %183 = tpu.matmul %178, %180, %cst_73 {dimension_numbers = #tpu.dot_dimension_numbers<[1], [1], [0], [0], [0, 0, 1, 0], [], []>} : vector<17x32xbf16>, vector<17x32xbf16>, vector<17x17xf32> -> vector<17x17xf32>
    "tpu.trace_stop"() : () -> ()
    %cst_74 = arith.constant dense<0xFF800000> : vector<17xf32>
    %184 = vector.multi_reduction <maximumf>, %183, %cst_74 [1] : vector<17x17xf32> to vector<17xf32>
    %185 = vector.shape_cast %184 : vector<17xf32> to vector<17x1xf32>
    %186 = vector.broadcast %185 : vector<17x1xf32> to vector<17x17xf32>
    %187 = arith.subf %183, %186 : vector<17x17xf32>
    %188 = math.exp %187 : vector<17x17xf32>
    %cst_75 = arith.constant dense<0.000000e+00> : vector<17xf32>
    %189 = vector.multi_reduction <add>, %188, %cst_75 [1] : vector<17x17xf32> to vector<17xf32>
    %190 = vector.shape_cast %189 : vector<17xf32> to vector<17x1xf32>
    %191 = tpu.reciprocal %190 {approx = true} : vector<17x1xf32> -> vector<17x1xf32>
    %192 = vector.broadcast %191 : vector<17x1xf32> to vector<17x17xf32>
    %193 = arith.mulf %188, %192 : vector<17x17xf32>
    %194 = arith.truncf %193 : vector<17x17xf32> to vector<17x17xbf16>
    %cst_76 = arith.constant dense<0.000000e+00> : vector<17x32xf32>
    %195 = tpu.matmul %194, %182, %cst_76 {dimension_numbers = #tpu.dot_dimension_numbers<[1], [0], [0], [1], [0, 0, 1, 1], [], []>} : vector<17x17xbf16>, vector<17x32xbf16>, vector<17x32xf32> -> vector<17x32xf32>
    %196 = vector.extract_strided_slice %174 {offsets = [0, 32], sizes = [17, 32], strides = [1, 1]} : vector<17x128xf32> to vector<17x32xf32>
    %197 = arith.truncf %196 : vector<17x32xf32> to vector<17x32xbf16>
    %198 = vector.extract_strided_slice %175 {offsets = [0, 32], sizes = [17, 32], strides = [1, 1]} : vector<17x128xf32> to vector<17x32xf32>
    %199 = arith.truncf %198 : vector<17x32xf32> to vector<17x32xbf16>
    %200 = vector.extract_strided_slice %176 {offsets = [0, 32], sizes = [17, 32], strides = [1, 1]} : vector<17x128xf32> to vector<17x32xf32>
    %201 = arith.truncf %200 : vector<17x32xf32> to vector<17x32xbf16>
    "tpu.trace_start"() <{level = 10 : i32, message = "qd,kd->qk"}> : () -> ()
    %cst_77 = arith.constant dense<0.000000e+00> : vector<17x17xf32>
    %202 = tpu.matmul %197, %199, %cst_77 {dimension_numbers = #tpu.dot_dimension_numbers<[1], [1], [0], [0], [0, 0, 1, 0], [], []>} : vector<17x32xbf16>, vector<17x32xbf16>, vector<17x17xf32> -> vector<17x17xf32>
    "tpu.trace_stop"() : () -> ()
    %cst_78 = arith.constant dense<0xFF800000> : vector<17xf32>
    %203 = vector.multi_reduction <maximumf>, %202, %cst_78 [1] : vector<17x17xf32> to vector<17xf32>
    %204 = vector.shape_cast %203 : vector<17xf32> to vector<17x1xf32>
    %205 = vector.broadcast %204 : vector<17x1xf32> to vector<17x17xf32>
    %206 = arith.subf %202, %205 : vector<17x17xf32>
    %207 = math.exp %206 : vector<17x17xf32>
    %cst_79 = arith.constant dense<0.000000e+00> : vector<17xf32>
    %208 = vector.multi_reduction <add>, %207, %cst_79 [1] : vector<17x17xf32> to vector<17xf32>
    %209 = vector.shape_cast %208 : vector<17xf32> to vector<17x1xf32>
    %210 = tpu.reciprocal %209 {approx = true} : vector<17x1xf32> -> vector<17x1xf32>
    %211 = vector.broadcast %210 : vector<17x1xf32> to vector<17x17xf32>
    %212 = arith.mulf %207, %211 : vector<17x17xf32>
    %213 = arith.truncf %212 : vector<17x17xf32> to vector<17x17xbf16>
    %cst_80 = arith.constant dense<0.000000e+00> : vector<17x32xf32>
    %214 = tpu.matmul %213, %201, %cst_80 {dimension_numbers = #tpu.dot_dimension_numbers<[1], [0], [0], [1], [0, 0, 1, 1], [], []>} : vector<17x17xbf16>, vector<17x32xbf16>, vector<17x32xf32> -> vector<17x32xf32>
    %215 = vector.extract_strided_slice %174 {offsets = [0, 64], sizes = [17, 32], strides = [1, 1]} : vector<17x128xf32> to vector<17x32xf32>
    %216 = arith.truncf %215 : vector<17x32xf32> to vector<17x32xbf16>
    %217 = vector.extract_strided_slice %175 {offsets = [0, 64], sizes = [17, 32], strides = [1, 1]} : vector<17x128xf32> to vector<17x32xf32>
    %218 = arith.truncf %217 : vector<17x32xf32> to vector<17x32xbf16>
    %219 = vector.extract_strided_slice %176 {offsets = [0, 64], sizes = [17, 32], strides = [1, 1]} : vector<17x128xf32> to vector<17x32xf32>
    %220 = arith.truncf %219 : vector<17x32xf32> to vector<17x32xbf16>
    "tpu.trace_start"() <{level = 10 : i32, message = "qd,kd->qk"}> : () -> ()
    %cst_81 = arith.constant dense<0.000000e+00> : vector<17x17xf32>
    %221 = tpu.matmul %216, %218, %cst_81 {dimension_numbers = #tpu.dot_dimension_numbers<[1], [1], [0], [0], [0, 0, 1, 0], [], []>} : vector<17x32xbf16>, vector<17x32xbf16>, vector<17x17xf32> -> vector<17x17xf32>
    "tpu.trace_stop"() : () -> ()
    %cst_82 = arith.constant dense<0xFF800000> : vector<17xf32>
    %222 = vector.multi_reduction <maximumf>, %221, %cst_82 [1] : vector<17x17xf32> to vector<17xf32>
    %223 = vector.shape_cast %222 : vector<17xf32> to vector<17x1xf32>
    %224 = vector.broadcast %223 : vector<17x1xf32> to vector<17x17xf32>
    %225 = arith.subf %221, %224 : vector<17x17xf32>
    %226 = math.exp %225 : vector<17x17xf32>
    %cst_83 = arith.constant dense<0.000000e+00> : vector<17xf32>
    %227 = vector.multi_reduction <add>, %226, %cst_83 [1] : vector<17x17xf32> to vector<17xf32>
    %228 = vector.shape_cast %227 : vector<17xf32> to vector<17x1xf32>
    %229 = tpu.reciprocal %228 {approx = true} : vector<17x1xf32> -> vector<17x1xf32>
    %230 = vector.broadcast %229 : vector<17x1xf32> to vector<17x17xf32>
    %231 = arith.mulf %226, %230 : vector<17x17xf32>
    %232 = arith.truncf %231 : vector<17x17xf32> to vector<17x17xbf16>
    %cst_84 = arith.constant dense<0.000000e+00> : vector<17x32xf32>
    %233 = tpu.matmul %232, %220, %cst_84 {dimension_numbers = #tpu.dot_dimension_numbers<[1], [0], [0], [1], [0, 0, 1, 1], [], []>} : vector<17x17xbf16>, vector<17x32xbf16>, vector<17x32xf32> -> vector<17x32xf32>
    %234 = vector.extract_strided_slice %174 {offsets = [0, 96], sizes = [17, 32], strides = [1, 1]} : vector<17x128xf32> to vector<17x32xf32>
    %235 = arith.truncf %234 : vector<17x32xf32> to vector<17x32xbf16>
    %236 = vector.extract_strided_slice %175 {offsets = [0, 96], sizes = [17, 32], strides = [1, 1]} : vector<17x128xf32> to vector<17x32xf32>
    %237 = arith.truncf %236 : vector<17x32xf32> to vector<17x32xbf16>
    %238 = vector.extract_strided_slice %176 {offsets = [0, 96], sizes = [17, 32], strides = [1, 1]} : vector<17x128xf32> to vector<17x32xf32>
    %239 = arith.truncf %238 : vector<17x32xf32> to vector<17x32xbf16>
    "tpu.trace_start"() <{level = 10 : i32, message = "qd,kd->qk"}> : () -> ()
    %cst_85 = arith.constant dense<0.000000e+00> : vector<17x17xf32>
    %240 = tpu.matmul %235, %237, %cst_85 {dimension_numbers = #tpu.dot_dimension_numbers<[1], [1], [0], [0], [0, 0, 1, 0], [], []>} : vector<17x32xbf16>, vector<17x32xbf16>, vector<17x17xf32> -> vector<17x17xf32>
    "tpu.trace_stop"() : () -> ()
    %cst_86 = arith.constant dense<0xFF800000> : vector<17xf32>
    %241 = vector.multi_reduction <maximumf>, %240, %cst_86 [1] : vector<17x17xf32> to vector<17xf32>
    %242 = vector.shape_cast %241 : vector<17xf32> to vector<17x1xf32>
    %243 = vector.broadcast %242 : vector<17x1xf32> to vector<17x17xf32>
    %244 = arith.subf %240, %243 : vector<17x17xf32>
    %245 = math.exp %244 : vector<17x17xf32>
    %cst_87 = arith.constant dense<0.000000e+00> : vector<17xf32>
    %246 = vector.multi_reduction <add>, %245, %cst_87 [1] : vector<17x17xf32> to vector<17xf32>
    %247 = vector.shape_cast %246 : vector<17xf32> to vector<17x1xf32>
    %248 = tpu.reciprocal %247 {approx = true} : vector<17x1xf32> -> vector<17x1xf32>
    %249 = vector.broadcast %248 : vector<17x1xf32> to vector<17x17xf32>
    %250 = arith.mulf %245, %249 : vector<17x17xf32>
    %251 = arith.truncf %250 : vector<17x17xf32> to vector<17x17xbf16>
    %cst_88 = arith.constant dense<0.000000e+00> : vector<17x32xf32>
    %252 = tpu.matmul %251, %239, %cst_88 {dimension_numbers = #tpu.dot_dimension_numbers<[1], [0], [0], [1], [0, 0, 1, 1], [], []>} : vector<17x17xbf16>, vector<17x32xbf16>, vector<17x32xf32> -> vector<17x32xf32>
    %253 = tpu.concatenate %195, %214, %233, %252 in 1 : vector<17x32xf32>, vector<17x32xf32>, vector<17x32xf32>, vector<17x32xf32> -> vector<17x128xf32>
    %254 = arith.truncf %253 : vector<17x128xf32> to vector<17x128xbf16>
    %c1_89 = arith.constant 1 : index
    %c0_90 = arith.constant 0 : index
    %c0_91 = arith.constant 0 : index
    %255 = vector.load %arg5[%c1_89, %c0_90, %c0_91] : memref<2x128x128xbf16, #tpu.memory_space<vmem>>, vector<1x128x128xbf16>
    %256 = vector.shape_cast %255 : vector<1x128x128xbf16> to vector<128x128xbf16>
    %cst_92 = arith.constant dense<0.000000e+00> : vector<17x128xf32>
    %257 = tpu.matmul %254, %256, %cst_92 {dimension_numbers = #tpu.dot_dimension_numbers<[1], [0], [0], [1], [0, 0, 1, 1], [], []>} : vector<17x128xbf16>, vector<128x128xbf16>, vector<17x128xf32> -> vector<17x128xf32>
    %c1_93 = arith.constant 1 : index
    %c0_94 = arith.constant 0 : index
    %c0_95 = arith.constant 0 : index
    %258 = vector.load %arg6[%c1_93, %c0_94, %c0_95] : memref<2x1x128xf32, #tpu.memory_space<vmem>>, vector<1x1x128xf32>
    %259 = vector.shape_cast %258 : vector<1x1x128xf32> to vector<1x128xf32>
    %260 = vector.broadcast %259 : vector<1x128xf32> to vector<17x128xf32>
    %261 = arith.addf %257, %260 : vector<17x128xf32>
    %262 = arith.addf %261, %169 : vector<17x128xf32>
    %c1_96 = arith.constant 1 : index
    %c0_97 = arith.constant 0 : index
    %c0_98 = arith.constant 0 : index
    %263 = vector.load %arg7[%c1_96, %c0_97, %c0_98] : memref<2x1x128xf32, #tpu.memory_space<vmem>>, vector<1x1x128xf32>
    %264 = vector.shape_cast %263 : vector<1x1x128xf32> to vector<1x128xf32>
    %c1_99 = arith.constant 1 : index
    %c0_100 = arith.constant 0 : index
    %c0_101 = arith.constant 0 : index
    %265 = vector.load %arg8[%c1_99, %c0_100, %c0_101] : memref<2x1x128xf32, #tpu.memory_space<vmem>>, vector<1x1x128xf32>
    %266 = vector.shape_cast %265 : vector<1x1x128xf32> to vector<1x128xf32>
    %cst_102 = arith.constant dense<0.000000e+00> : vector<17xf32>
    %267 = vector.multi_reduction <add>, %262, %cst_102 [1] : vector<17x128xf32> to vector<17xf32>
    %268 = vector.shape_cast %267 : vector<17xf32> to vector<17x1xf32>
    %cst_103 = arith.constant 1.280000e+02 : f32
    %269 = vector.broadcast %cst_103 : f32 to vector<17x1xf32>
    %270 = arith.divf %268, %269 : vector<17x1xf32>
    %271 = vector.broadcast %270 : vector<17x1xf32> to vector<17x128xf32>
    %272 = arith.subf %262, %271 : vector<17x128xf32>
    %273 = arith.mulf %272, %272 : vector<17x128xf32>
    %cst_104 = arith.constant dense<0.000000e+00> : vector<17xf32>
    %274 = vector.multi_reduction <add>, %273, %cst_104 [1] : vector<17x128xf32> to vector<17xf32>
    %275 = vector.shape_cast %274 : vector<17xf32> to vector<17x1xf32>
    %cst_105 = arith.constant 1.280000e+02 : f32
    %276 = vector.broadcast %cst_105 : f32 to vector<17x1xf32>
    %277 = arith.divf %275, %276 : vector<17x1xf32>
    %278 = vector.broadcast %270 : vector<17x1xf32> to vector<17x128xf32>
    %279 = arith.subf %262, %278 : vector<17x128xf32>
    %cst_106 = arith.constant 9.99999974E-6 : f32
    %280 = vector.broadcast %cst_106 : f32 to vector<17x1xf32>
    %281 = arith.addf %277, %280 : vector<17x1xf32>
    %282 = math.rsqrt %281 : vector<17x1xf32>
    %283 = vector.broadcast %282 : vector<17x1xf32> to vector<17x128xf32>
    %284 = arith.mulf %279, %283 : vector<17x128xf32>
    %285 = vector.broadcast %264 : vector<1x128xf32> to vector<17x128xf32>
    %286 = arith.mulf %284, %285 : vector<17x128xf32>
    %287 = vector.broadcast %266 : vector<1x128xf32> to vector<17x128xf32>
    %288 = arith.addf %286, %287 : vector<17x128xf32>
    %289 = arith.truncf %288 : vector<17x128xf32> to vector<17x128xbf16>
    %c1_107 = arith.constant 1 : index
    %c0_108 = arith.constant 0 : index
    %c0_109 = arith.constant 0 : index
    %290 = vector.load %arg9[%c1_107, %c0_108, %c0_109] : memref<2x128x512xbf16, #tpu.memory_space<vmem>>, vector<1x128x512xbf16>
    %291 = vector.shape_cast %290 : vector<1x128x512xbf16> to vector<128x512xbf16>
    %cst_110 = arith.constant dense<0.000000e+00> : vector<17x512xf32>
    %292 = tpu.matmul %289, %291, %cst_110 {dimension_numbers = #tpu.dot_dimension_numbers<[1], [0], [0], [1], [0, 0, 1, 1], [], []>} : vector<17x128xbf16>, vector<128x512xbf16>, vector<17x512xf32> -> vector<17x512xf32>
    %c1_111 = arith.constant 1 : index
    %c0_112 = arith.constant 0 : index
    %c0_113 = arith.constant 0 : index
    %293 = vector.load %arg10[%c1_111, %c0_112, %c0_113] : memref<2x1x512xf32, #tpu.memory_space<vmem>>, vector<1x1x512xf32>
    %294 = vector.shape_cast %293 : vector<1x1x512xf32> to vector<1x512xf32>
    %295 = vector.broadcast %294 : vector<1x512xf32> to vector<17x512xf32>
    %296 = arith.addf %292, %295 : vector<17x512xf32>
    %cst_114 = arith.constant 0.000000e+00 : f32
    %297 = vector.broadcast %cst_114 : f32 to vector<17x512xf32>
    %298 = arith.maximumf %296, %297 : vector<17x512xf32>
    %299 = arith.truncf %298 : vector<17x512xf32> to vector<17x512xbf16>
    %c1_115 = arith.constant 1 : index
    %c0_116 = arith.constant 0 : index
    %c0_117 = arith.constant 0 : index
    %300 = vector.load %arg11[%c1_115, %c0_116, %c0_117] : memref<2x512x128xbf16, #tpu.memory_space<vmem>>, vector<1x512x128xbf16>
    %301 = vector.shape_cast %300 : vector<1x512x128xbf16> to vector<512x128xbf16>
    %cst_118 = arith.constant dense<0.000000e+00> : vector<17x128xf32>
    %302 = tpu.matmul %299, %301, %cst_118 {dimension_numbers = #tpu.dot_dimension_numbers<[1], [0], [0], [1], [0, 0, 1, 1], [], []>} : vector<17x512xbf16>, vector<512x128xbf16>, vector<17x128xf32> -> vector<17x128xf32>
    %c1_119 = arith.constant 1 : index
    %c0_120 = arith.constant 0 : index
    %c0_121 = arith.constant 0 : index
    %303 = vector.load %arg12[%c1_119, %c0_120, %c0_121] : memref<2x1x128xf32, #tpu.memory_space<vmem>>, vector<1x1x128xf32>
    %304 = vector.shape_cast %303 : vector<1x1x128xf32> to vector<1x128xf32>
    %305 = vector.broadcast %304 : vector<1x128xf32> to vector<17x128xf32>
    %306 = arith.addf %302, %305 : vector<17x128xf32>
    %307 = arith.addf %306, %288 : vector<17x128xf32>
    %c1_122 = arith.constant 1 : index
    %c0_123 = arith.constant 0 : index
    %c0_124 = arith.constant 0 : index
    %308 = vector.load %arg13[%c1_122, %c0_123, %c0_124] : memref<2x1x128xf32, #tpu.memory_space<vmem>>, vector<1x1x128xf32>
    %309 = vector.shape_cast %308 : vector<1x1x128xf32> to vector<1x128xf32>
    %c1_125 = arith.constant 1 : index
    %c0_126 = arith.constant 0 : index
    %c0_127 = arith.constant 0 : index
    %310 = vector.load %arg14[%c1_125, %c0_126, %c0_127] : memref<2x1x128xf32, #tpu.memory_space<vmem>>, vector<1x1x128xf32>
    %311 = vector.shape_cast %310 : vector<1x1x128xf32> to vector<1x128xf32>
    %cst_128 = arith.constant dense<0.000000e+00> : vector<17xf32>
    %312 = vector.multi_reduction <add>, %307, %cst_128 [1] : vector<17x128xf32> to vector<17xf32>
    %313 = vector.shape_cast %312 : vector<17xf32> to vector<17x1xf32>
    %cst_129 = arith.constant 1.280000e+02 : f32
    %314 = vector.broadcast %cst_129 : f32 to vector<17x1xf32>
    %315 = arith.divf %313, %314 : vector<17x1xf32>
    %316 = vector.broadcast %315 : vector<17x1xf32> to vector<17x128xf32>
    %317 = arith.subf %307, %316 : vector<17x128xf32>
    %318 = arith.mulf %317, %317 : vector<17x128xf32>
    %cst_130 = arith.constant dense<0.000000e+00> : vector<17xf32>
    %319 = vector.multi_reduction <add>, %318, %cst_130 [1] : vector<17x128xf32> to vector<17xf32>
    %320 = vector.shape_cast %319 : vector<17xf32> to vector<17x1xf32>
    %cst_131 = arith.constant 1.280000e+02 : f32
    %321 = vector.broadcast %cst_131 : f32 to vector<17x1xf32>
    %322 = arith.divf %320, %321 : vector<17x1xf32>
    %323 = vector.broadcast %315 : vector<17x1xf32> to vector<17x128xf32>
    %324 = arith.subf %307, %323 : vector<17x128xf32>
    %cst_132 = arith.constant 9.99999974E-6 : f32
    %325 = vector.broadcast %cst_132 : f32 to vector<17x1xf32>
    %326 = arith.addf %322, %325 : vector<17x1xf32>
    %327 = math.rsqrt %326 : vector<17x1xf32>
    %328 = vector.broadcast %327 : vector<17x1xf32> to vector<17x128xf32>
    %329 = arith.mulf %324, %328 : vector<17x128xf32>
    %330 = vector.broadcast %309 : vector<1x128xf32> to vector<17x128xf32>
    %331 = arith.mulf %329, %330 : vector<17x128xf32>
    %332 = vector.broadcast %311 : vector<1x128xf32> to vector<17x128xf32>
    %333 = arith.addf %331, %332 : vector<17x128xf32>
    %cst_133 = arith.constant dense<0.000000e+00> : vector<128xf32>
    %334 = vector.multi_reduction <add>, %333, %cst_133 [0] : vector<17x128xf32> to vector<128xf32>
    %335 = vector.shape_cast %334 : vector<128xf32> to vector<1x128xf32>
    %cst_134 = arith.constant 1.700000e+01 : f32
    %336 = vector.broadcast %cst_134 : f32 to vector<1x128xf32>
    %337 = arith.divf %335, %336 : vector<1x128xf32>
    %c0_135 = arith.constant 0 : index
    %c0_136 = arith.constant 0 : index
    %338 = vector.load %arg15[%c0_135, %c0_136] : memref<128x4xf32, #tpu.memory_space<vmem>>, vector<128x4xf32>
    %cst_137 = arith.constant dense<0.000000e+00> : vector<1x4xf32>
    %339 = tpu.matmul %337, %338, %cst_137 {dimension_numbers = #tpu.dot_dimension_numbers<[1], [0], [0], [1], [0, 0, 1, 1], [], []>} : vector<1x128xf32>, vector<128x4xf32>, vector<1x4xf32> -> vector<1x4xf32>
    %c0_138 = arith.constant 0 : index
    %c0_139 = arith.constant 0 : index
    %340 = vector.load %arg16[%c0_138, %c0_139] : memref<1x4xf32, #tpu.memory_space<vmem>>, vector<1x4xf32>
    %341 = arith.addf %339, %340 : vector<1x4xf32>
    %cst_140 = arith.constant dense<0xFF800000> : vector<1xf32>
    %342 = vector.multi_reduction <maximumf>, %341, %cst_140 [1] : vector<1x4xf32> to vector<1xf32>
    %343 = vector.shape_cast %342 : vector<1xf32> to vector<1x1xf32>
    %344 = vector.broadcast %343 : vector<1x1xf32> to vector<1x4xf32>
    %345 = arith.subf %341, %344 : vector<1x4xf32>
    %346 = math.exp %345 : vector<1x4xf32>
    %cst_141 = arith.constant dense<0.000000e+00> : vector<1xf32>
    %347 = vector.multi_reduction <add>, %346, %cst_141 [1] : vector<1x4xf32> to vector<1xf32>
    %348 = vector.shape_cast %347 : vector<1xf32> to vector<1x1xf32>
    %349 = vector.broadcast %348 : vector<1x1xf32> to vector<1x4xf32>
    %350 = arith.divf %346, %349 : vector<1x4xf32>
    %c0_142 = arith.constant 0 : index
    %c0_143 = arith.constant 0 : index
    %c0_144 = arith.constant 0 : index
    %351 = vector.load %arg17[%c0_142, %c0_143, %c0_144] : memref<1x1x4xf32, #tpu.memory_space<vmem>>, vector<1x1x4xf32>
    %352 = vector.shape_cast %351 : vector<1x1x4xf32> to vector<1x4xf32>
    %353 = vector.shape_cast %350 : vector<1x4xf32> to vector<1x1x4xf32>
    tpu.vector_store %arg17[%c0_142, %c0_143, %c0_144], %353 {strides = array<i32>} : memref<1x1x4xf32, #tpu.memory_space<vmem>>, vector<1x1x4xf32>,
    return
  }
  func.func @transform_0(%arg0: i32) -> (i32, i32, i32) {
    %c0_i32 = arith.constant 0 : i32
    %c0_i32_0 = arith.constant 0 : i32
    %c0_i32_1 = arith.constant 0 : i32
    return %arg0, %c0_i32, %c0_i32_0 : i32, i32, i32
  }
  func.func @transform_1(%arg0: i32) -> (i32, i32) {
    %c0_i32 = arith.constant 0 : i32
    %c0_i32_0 = arith.constant 0 : i32
    %c0_i32_1 = arith.constant 0 : i32
    return %c0_i32, %c0_i32_0 : i32, i32
  }
  func.func @transform_2(%arg0: i32) -> (i32, i32) {
    %c0_i32 = arith.constant 0 : i32
    %c0_i32_0 = arith.constant 0 : i32
    %c0_i32_1 = arith.constant 0 : i32
    return %c0_i32, %c0_i32_0 : i32, i32
  }
  func.func @transform_3(%arg0: i32) -> (i32, i32, i32) {
    %c0_i32 = arith.constant 0 : i32
    %c0_i32_0 = arith.constant 0 : i32
    %c0_i32_1 = arith.constant 0 : i32
    %c0_i32_2 = arith.constant 0 : i32
    return %c0_i32, %c0_i32_0, %c0_i32_1 : i32, i32, i32
  }
  func.func @transform_4(%arg0: i32) -> (i32, i32, i32) {
    %c0_i32 = arith.constant 0 : i32
    %c0_i32_0 = arith.constant 0 : i32
    %c0_i32_1 = arith.constant 0 : i32
    %c0_i32_2 = arith.constant 0 : i32
    return %c0_i32, %c0_i32_0, %c0_i32_1 : i32, i32, i32
  }
  func.func @transform_5(%arg0: i32) -> (i32, i32, i32) {
    %c0_i32 = arith.constant 0 : i32
    %c0_i32_0 = arith.constant 0 : i32
    %c0_i32_1 = arith.constant 0 : i32
    %c0_i32_2 = arith.constant 0 : i32
    return %c0_i32, %c0_i32_0, %c0_i32_1 : i32, i32, i32
  }
  func.func @transform_6(%arg0: i32) -> (i32, i32, i32) {
    %c0_i32 = arith.constant 0 : i32
    %c0_i32_0 = arith.constant 0 : i32
    %c0_i32_1 = arith.constant 0 : i32
    %c0_i32_2 = arith.constant 0 : i32
    return %c0_i32, %c0_i32_0, %c0_i32_1 : i32, i32, i32
  }
  func.func @transform_7(%arg0: i32) -> (i32, i32, i32) {
    %c0_i32 = arith.constant 0 : i32
    %c0_i32_0 = arith.constant 0 : i32
    %c0_i32_1 = arith.constant 0 : i32
    %c0_i32_2 = arith.constant 0 : i32
    return %c0_i32, %c0_i32_0, %c0_i32_1 : i32, i32, i32
  }
  func.func @transform_8(%arg0: i32) -> (i32, i32, i32) {
    %c0_i32 = arith.constant 0 : i32
    %c0_i32_0 = arith.constant 0 : i32
    %c0_i32_1 = arith.constant 0 : i32
    %c0_i32_2 = arith.constant 0 : i32
    return %c0_i32, %c0_i32_0, %c0_i32_1 : i32, i32, i32
  }
  func.func @transform_9(%arg0: i32) -> (i32, i32, i32) {
    %c0_i32 = arith.constant 0 : i32
    %c0_i32_0 = arith.constant 0 : i32
    %c0_i32_1 = arith.constant 0 : i32
    %c0_i32_2 = arith.constant 0 : i32
    return %c0_i32, %c0_i32_0, %c0_i32_1 : i32, i32, i32
  }
  func.func @transform_10(%arg0: i32) -> (i32, i32, i32) {
    %c0_i32 = arith.constant 0 : i32
    %c0_i32_0 = arith.constant 0 : i32
    %c0_i32_1 = arith.constant 0 : i32
    %c0_i32_2 = arith.constant 0 : i32
    return %c0_i32, %c0_i32_0, %c0_i32_1 : i32, i32, i32
  }
  func.func @transform_11(%arg0: i32) -> (i32, i32, i32) {
    %c0_i32 = arith.constant 0 : i32
    %c0_i32_0 = arith.constant 0 : i32
    %c0_i32_1 = arith.constant 0 : i32
    %c0_i32_2 = arith.constant 0 : i32
    return %c0_i32, %c0_i32_0, %c0_i32_1 : i32, i32, i32
  }
  func.func @transform_12(%arg0: i32) -> (i32, i32, i32) {
    %c0_i32 = arith.constant 0 : i32
    %c0_i32_0 = arith.constant 0 : i32
    %c0_i32_1 = arith.constant 0 : i32
    %c0_i32_2 = arith.constant 0 : i32
    return %c0_i32, %c0_i32_0, %c0_i32_1 : i32, i32, i32
  }
  func.func @transform_13(%arg0: i32) -> (i32, i32, i32) {
    %c0_i32 = arith.constant 0 : i32
    %c0_i32_0 = arith.constant 0 : i32
    %c0_i32_1 = arith.constant 0 : i32
    %c0_i32_2 = arith.constant 0 : i32
    return %c0_i32, %c0_i32_0, %c0_i32_1 : i32, i32, i32
  }
  func.func @transform_14(%arg0: i32) -> (i32, i32) {
    %c0_i32 = arith.constant 0 : i32
    %c0_i32_0 = arith.constant 0 : i32
    %c0_i32_1 = arith.constant 0 : i32
    return %c0_i32, %c0_i32_0 : i32, i32
  }
  func.func @transform_15(%arg0: i32) -> (i32, i32) {
    %c0_i32 = arith.constant 0 : i32
    %c0_i32_0 = arith.constant 0 : i32
    %c0_i32_1 = arith.constant 0 : i32
    return %c0_i32, %c0_i32_0 : i32, i32
  }
  func.func @transform_16(%arg0: i32) -> (i32, i32, i32) {
    %c0_i32 = arith.constant 0 : i32
    %c0_i32_0 = arith.constant 0 : i32
    %c0_i32_1 = arith.constant 0 : i32
    return %arg0, %c0_i32, %c0_i32_0 : i32, i32, i32
  }
}

</mosaic_0001>

<llo_original>
// kernel: policy_network_forward.1
$region0: #{policy_network_forward.1}
  #allocation0 [shape = 'u32[]', space=smem, size = 0x4, offset = 0x4, fixed_abs, tag = 'smem constant byte address 0x4 - core index']
  #allocation1 [shape = 'u32[144,128]{1,0:T(1,128)}', space=vmem, size = 0x12000, scoped, tag = 'internal scratch']
  %s0 = inlined_call_operand.vmem [shape: bf16[2,17,768], index: 0, kind: input, shape index: {}]
  %s1 = inlined_call_operand.vmem [shape: f32[17,128], index: 1, kind: input, shape index: {}]
  %s2 = inlined_call_operand.vmem [shape: bf16[768,128], index: 2, kind: input, shape index: {}]
  %s3 = inlined_call_operand.vmem [shape: bf16[2,128,384], index: 3, kind: input, shape index: {}]
  %s4 = inlined_call_operand.vmem [shape: bf16[2,128,128], index: 4, kind: input, shape index: {}]
  %s5 = inlined_call_operand.vmem [shape: f32[2,1,128], index: 5, kind: input, shape index: {}]
  %s6 = inlined_call_operand.vmem [shape: f32[2,1,128], index: 6, kind: input, shape index: {}]
  %s7 = inlined_call_operand.vmem [shape: f32[2,1,128], index: 7, kind: input, shape index: {}]
  %s8 = inlined_call_operand.vmem [shape: bf16[2,128,512], index: 8, kind: input, shape index: {}]
  %s9 = inlined_call_operand.vmem [shape: f32[2,1,512], index: 9, kind: input, shape index: {}]
  %s10 = inlined_call_operand.vmem [shape: bf16[2,512,128], index: 10, kind: input, shape index: {}]
  %s11 = inlined_call_operand.vmem [shape: f32[2,1,128], index: 11, kind: input, shape index: {}]
  %s12 = inlined_call_operand.vmem [shape: f32[2,1,128], index: 12, kind: input, shape index: {}]
  %s13 = inlined_call_operand.vmem [shape: f32[2,1,128], index: 13, kind: input, shape index: {}]
  %s14 = inlined_call_operand.vmem [shape: f32[128,4], index: 14, kind: input, shape index: {}]
  %s15 = inlined_call_operand.vmem [shape: f32[1,4], index: 15, kind: input, shape index: {}]
  %s16 = inlined_call_operand.hbm [shape: f32[2,1,4], index: 16, kind: output, shape index: {}]
  %s17 = sld [smem:[#allocation0]]
  $region97: #{policy_network_forward.1} parent=0
    _
  %s19 = ssub.s32 1, %s17
  %s20 = scalar_select 0, %s19, %s17
  $region1: #{policy_network_forward.1} parent=0
    #allocation2 [shape = 'u8[1024]{0}', space=vmem, size = 0x400, scoped, tag = 'output window, operand 0']
    #allocation3 [shape = 's32[2]{0}', space=sflag, size = 0x8, scoped, tag = 'scoped memory for policy_network_forward.1']
    %21 = vsyncpa [#allocation3], 0
    %s22 = scalar_lea.sflag [#allocation3], 1
    %23 = vsyncpa %s22, 0
    loop: start=0, step=1, limit=4
    $region2: #{policy_network_forward.1} parent=1 // loop_pre_header
      _
    $region3: #{policy_network_forward.1} parent=1 // loop_header
      %s25 = sphi 0, %s29
      %p26 = scmp.ge.s32.totalorder %s25, 4
      %s35 = sphi 0, %s37
      %s38 = sphi 0, %s35
      %s39 = sphi 0, %s38
      %s55 = sphi 0, %s39
      %s59 = sphi 0, %s59
      %s61 = sphi 0, %s59
      %s62 = sphi 0, %s61
      %s76 = sphi 0, %s62
      %s80 = sphi 0, %s80
      %s82 = sphi 0, %s80
      %s83 = sphi 0, %s82
      %s97 = sphi 0, %s83
      %s101 = sphi 0, %s101
      %s103 = sphi 0, %s101
      %s104 = sphi 0, %s103
      %s118 = sphi 0, %s104
      %s122 = sphi 0, %s122
      %s124 = sphi 0, %s122
      %s125 = sphi 0, %s124
      %s139 = sphi 0, %s125
      %s143 = sphi 0, %s143
      %s145 = sphi 0, %s143
      %s146 = sphi 0, %s145
      %s160 = sphi 0, %s146
      %s164 = sphi 0, %s164
      %s166 = sphi 0, %s164
      %s167 = sphi 0, %s166
      %s181 = sphi 0, %s167
      %s185 = sphi 0, %s185
      %s187 = sphi 0, %s185
      %s188 = sphi 0, %s187
      %s202 = sphi 0, %s188
      %s206 = sphi 0, %s206
      %s208 = sphi 0, %s206
      %s209 = sphi 0, %s208
      %s223 = sphi 0, %s209
      %s227 = sphi 0, %s227
      %s229 = sphi 0, %s227
      %s230 = sphi 0, %s229
      %s244 = sphi 0, %s230
      %s248 = sphi 0, %s248
      %s250 = sphi 0, %s248
      %s251 = sphi 0, %s250
      %s265 = sphi 0, %s251
      %s269 = sphi 0, %s269
      %s271 = sphi 0, %s269
      %s272 = sphi 0, %s271
      %s286 = sphi 0, %s272
      %s290 = sphi 0, %s290
      %s292 = sphi 0, %s290
      %s293 = sphi 0, %s292
      %s307 = sphi 0, %s293
      %s311 = sphi 0, %s311
      %s313 = sphi 0, %s311
      %s314 = sphi 0, %s313
      %s328 = sphi 0, %s314
      %s332 = sphi 0, %s332
      %s334 = sphi 0, %s332
      %s335 = sphi 0, %s334
      %s349 = sphi 0, %s335
      %s353 = sphi 0, %s353
      %s355 = sphi 0, %s353
      %s356 = sphi 0, %s355
      %s370 = sphi 0, %s356
      %s376 = sphi 0, %s378
      %s379 = sphi 0, %s376
      %s380 = sphi 0, %s379
      %s396 = sphi 0, %s380
    $region4: #{policy_network_forward.1} parent=1 // loop_header_branch
      %28 = sbr.rel (%p26) target = $region8
    $region5: #{policy_network_forward.1} parent=1 // loop_body
      %s30 = ssub.s32 %s25, 1
      %s31 = ssub.s32 %s25, 2
      %s32 = sadd.s32 %s25, 1
      %s33 = ssub.s32 %s25, %s32
      %p34 = scmp.eq.s32.totalorder %s33, 0
      %s36 = sadd.s32 %s35, 1
      %s37 = scalar_select %p34, %s35, %s36
      %p40 = pneg %p34
      %p41 = scmp.eq.s32.totalorder %s25, 1
      %p42 = por %p40, %p41
      %p43 = scmp.ne.s32.totalorder %s35, %s38
      %p44 = scmp.eq.s32.totalorder %s25, 0
      %p45 = por %p43, %p44
      %p46 = scmp.ne.s32.totalorder %s35, %s38
      %p47 = scmp.eq.s32.totalorder %s30, 1
      %p48 = por %p46, %p47
      %p49 = scmp.ne.s32.totalorder %s38, %s39
      %p50 = scmp.eq.s32.totalorder %s30, 0
      %p51 = por %p49, %p50
      %p52 = scmp.ne.s32.totalorder %s38, %s39
      %p53 = scmp.eq.s32.totalorder %s31, 1
      %p54 = por %p52, %p53
      %p56 = scmp.ne.s32.totalorder %s39, %s55
      %p57 = scmp.eq.s32.totalorder %s31, 0
      %p58 = por %p56, %p57
      %s60 = sadd.s32 %s59, 1
      %p63 = scmp.eq.s32.totalorder %s25, 1
      %p64 = scmp.ne.s32.totalorder %s59, %s61
      %p65 = scmp.eq.s32.totalorder %s25, 0
      %p66 = por %p64, %p65
      %p67 = scmp.ne.s32.totalorder %s59, %s61
      %p68 = scmp.eq.s32.totalorder %s30, 1
      %p69 = por %p67, %p68
      %p70 = scmp.ne.s32.totalorder %s61, %s62
      %p71 = scmp.eq.s32.totalorder %s30, 0
      %p72 = por %p70, %p71
      %p73 = scmp.ne.s32.totalorder %s61, %s62
      %p74 = scmp.eq.s32.totalorder %s31, 1
      %p75 = por %p73, %p74
      %p77 = scmp.ne.s32.totalorder %s62, %s76
      %p78 = scmp.eq.s32.totalorder %s31, 0
      %p79 = por %p77, %p78
      %s81 = sadd.s32 %s80, 1
      %p84 = scmp.eq.s32.totalorder %s25, 1
      %p85 = scmp.ne.s32.totalorder %s80, %s82
      %p86 = scmp.eq.s32.totalorder %s25, 0
      %p87 = por %p85, %p86
      %p88 = scmp.ne.s32.totalorder %s80, %s82
      %p89 = scmp.eq.s32.totalorder %s30, 1
      %p90 = por %p88, %p89
      %p91 = scmp.ne.s32.totalorder %s82, %s83
      %p92 = scmp.eq.s32.totalorder %s30, 0
      %p93 = por %p91, %p92
      %p94 = scmp.ne.s32.totalorder %s82, %s83
      %p95 = scmp.eq.s32.totalorder %s31, 1
      %p96 = por %p94, %p95
      %p98 = scmp.ne.s32.totalorder %s83, %s97
      %p99 = scmp.eq.s32.totalorder %s31, 0
      %p100 = por %p98, %p99
      %s102 = sadd.s32 %s101, 1
      %p105 = scmp.eq.s32.totalorder %s25, 1
      %p106 = scmp.ne.s32.totalorder %s101, %s103
      %p107 = scmp.eq.s32.totalorder %s25, 0
      %p108 = por %p106, %p107
      %p109 = scmp.ne.s32.totalorder %s101, %s103
      %p110 = scmp.eq.s32.totalorder %s30, 1
      %p111 = por %p109, %p110
      %p112 = scmp.ne.s32.totalorder %s103, %s104
      %p113 = scmp.eq.s32.totalorder %s30, 0
      %p114 = por %p112, %p113
      %p115 = scmp.ne.s32.totalorder %s103, %s104
      %p116 = scmp.eq.s32.totalorder %s31, 1
      %p117 = por %p115, %p116
      %p119 = scmp.ne.s32.totalorder %s104, %s118
      %p120 = scmp.eq.s32.totalorder %s31, 0
      %p121 = por %p119, %p120
      %s123 = sadd.s32 %s122, 1
      %p126 = scmp.eq.s32.totalorder %s25, 1
      %p127 = scmp.ne.s32.totalorder %s122, %s124
      %p128 = scmp.eq.s32.totalorder %s25, 0
      %p129 = por %p127, %p128
      %p130 = scmp.ne.s32.totalorder %s122, %s124
      %p131 = scmp.eq.s32.totalorder %s30, 1
      %p132 = por %p130, %p131
      %p133 = scmp.ne.s32.totalorder %s124, %s125
      %p134 = scmp.eq.s32.totalorder %s30, 0
      %p135 = por %p133, %p134
      %p136 = scmp.ne.s32.totalorder %s124, %s125
      %p137 = scmp.eq.s32.totalorder %s31, 1
      %p138 = por %p136, %p137
      %p140 = scmp.ne.s32.totalorder %s125, %s139
      %p141 = scmp.eq.s32.totalorder %s31, 0
      %p142 = por %p140, %p141
      %s144 = sadd.s32 %s143, 1
      %p147 = scmp.eq.s32.totalorder %s25, 1
      %p148 = scmp.ne.s32.totalorder %s143, %s145
      %p149 = scmp.eq.s32.totalorder %s25, 0
      %p150 = por %p148, %p149
      %p151 = scmp.ne.s32.totalorder %s143, %s145
      %p152 = scmp.eq.s32.totalorder %s30, 1
      %p153 = por %p151, %p152
      %p154 = scmp.ne.s32.totalorder %s145, %s146
      %p155 = scmp.eq.s32.totalorder %s30, 0
      %p156 = por %p154, %p155
      %p157 = scmp.ne.s32.totalorder %s145, %s146
      %p158 = scmp.eq.s32.totalorder %s31, 1
      %p159 = por %p157, %p158
      %p161 = scmp.ne.s32.totalorder %s146, %s160
      %p162 = scmp.eq.s32.totalorder %s31, 0
      %p163 = por %p161, %p162
      %s165 = sadd.s32 %s164, 1
      %p168 = scmp.eq.s32.totalorder %s25, 1
      %p169 = scmp.ne.s32.totalorder %s164, %s166
      %p170 = scmp.eq.s32.totalorder %s25, 0
      %p171 = por %p169, %p170
      %p172 = scmp.ne.s32.totalorder %s164, %s166
      %p173 = scmp.eq.s32.totalorder %s30, 1
      %p174 = por %p172, %p173
      %p175 = scmp.ne.s32.totalorder %s166, %s167
      %p176 = scmp.eq.s32.totalorder %s30, 0
      %p177 = por %p175, %p176
      %p178 = scmp.ne.s32.totalorder %s166, %s167
      %p179 = scmp.eq.s32.totalorder %s31, 1
      %p180 = por %p178, %p179
      %p182 = scmp.ne.s32.totalorder %s167, %s181
      %p183 = scmp.eq.s32.totalorder %s31, 0
      %p184 = por %p182, %p183
      %s186 = sadd.s32 %s185, 1
      %p189 = scmp.eq.s32.totalorder %s25, 1
      %p190 = scmp.ne.s32.totalorder %s185, %s187
      %p191 = scmp.eq.s32.totalorder %s25, 0
      %p192 = por %p190, %p191
      %p193 = scmp.ne.s32.totalorder %s185, %s187
      %p194 = scmp.eq.s32.totalorder %s30, 1
      %p195 = por %p193, %p194
      %p196 = scmp.ne.s32.totalorder %s187, %s188
      %p197 = scmp.eq.s32.totalorder %s30, 0
      %p198 = por %p196, %p197
      %p199 = scmp.ne.s32.totalorder %s187, %s188
      %p200 = scmp.eq.s32.totalorder %s31, 1
      %p201 = por %p199, %p200
      %p203 = scmp.ne.s32.totalorder %s188, %s202
      %p204 = scmp.eq.s32.totalorder %s31, 0
      %p205 = por %p203, %p204
      %s207 = sadd.s32 %s206, 1
      %p210 = scmp.eq.s32.totalorder %s25, 1
      %p211 = scmp.ne.s32.totalorder %s206, %s208
      %p212 = scmp.eq.s32.totalorder %s25, 0
      %p213 = por %p211, %p212
      %p214 = scmp.ne.s32.totalorder %s206, %s208
      %p215 = scmp.eq.s32.totalorder %s30, 1
      %p216 = por %p214, %p215
      %p217 = scmp.ne.s32.totalorder %s208, %s209
      %p218 = scmp.eq.s32.totalorder %s30, 0
      %p219 = por %p217, %p218
      %p220 = scmp.ne.s32.totalorder %s208, %s209
      %p221 = scmp.eq.s32.totalorder %s31, 1
      %p222 = por %p220, %p221
      %p224 = scmp.ne.s32.totalorder %s209, %s223
      %p225 = scmp.eq.s32.totalorder %s31, 0
      %p226 = por %p224, %p225
      %s228 = sadd.s32 %s227, 1
      %p231 = scmp.eq.s32.totalorder %s25, 1
      %p232 = scmp.ne.s32.totalorder %s227, %s229
      %p233 = scmp.eq.s32.totalorder %s25, 0
      %p234 = por %p232, %p233
      %p235 = scmp.ne.s32.totalorder %s227, %s229
      %p236 = scmp.eq.s32.totalorder %s30, 1
      %p237 = por %p235, %p236
      %p238 = scmp.ne.s32.totalorder %s229, %s230
      %p239 = scmp.eq.s32.totalorder %s30, 0
      %p240 = por %p238, %p239
      %p241 = scmp.ne.s32.totalorder %s229, %s230
      %p242 = scmp.eq.s32.totalorder %s31, 1
      %p243 = por %p241, %p242
      %p245 = scmp.ne.s32.totalorder %s230, %s244
      %p246 = scmp.eq.s32.totalorder %s31, 0
      %p247 = por %p245, %p246
      %s249 = sadd.s32 %s248, 1
      %p252 = scmp.eq.s32.totalorder %s25, 1
      %p253 = scmp.ne.s32.totalorder %s248, %s250
      %p254 = scmp.eq.s32.totalorder %s25, 0
      %p255 = por %p253, %p254
      %p256 = scmp.ne.s32.totalorder %s248, %s250
      %p257 = scmp.eq.s32.totalorder %s30, 1
      %p258 = por %p256, %p257
      %p259 = scmp.ne.s32.totalorder %s250, %s251
      %p260 = scmp.eq.s32.totalorder %s30, 0
      %p261 = por %p259, %p260
      %p262 = scmp.ne.s32.totalorder %s250, %s251
      %p263 = scmp.eq.s32.totalorder %s31, 1
      %p264 = por %p262, %p263
      %p266 = scmp.ne.s32.totalorder %s251, %s265
      %p267 = scmp.eq.s32.totalorder %s31, 0
      %p268 = por %p266, %p267
      %s270 = sadd.s32 %s269, 1
      %p273 = scmp.eq.s32.totalorder %s25, 1
      %p274 = scmp.ne.s32.totalorder %s269, %s271
      %p275 = scmp.eq.s32.totalorder %s25, 0
      %p276 = por %p274, %p275
      %p277 = scmp.ne.s32.totalorder %s269, %s271
      %p278 = scmp.eq.s32.totalorder %s30, 1
      %p279 = por %p277, %p278
      %p280 = scmp.ne.s32.totalorder %s271, %s272
      %p281 = scmp.eq.s32.totalorder %s30, 0
      %p282 = por %p280, %p281
      %p283 = scmp.ne.s32.totalorder %s271, %s272
      %p284 = scmp.eq.s32.totalorder %s31, 1
      %p285 = por %p283, %p284
      %p287 = scmp.ne.s32.totalorder %s272, %s286
      %p288 = scmp.eq.s32.totalorder %s31, 0
      %p289 = por %p287, %p288
      %s291 = sadd.s32 %s290, 1
      %p294 = scmp.eq.s32.totalorder %s25, 1
      %p295 = scmp.ne.s32.totalorder %s290, %s292
      %p296 = scmp.eq.s32.totalorder %s25, 0
      %p297 = por %p295, %p296
      %p298 = scmp.ne.s32.totalorder %s290, %s292
      %p299 = scmp.eq.s32.totalorder %s30, 1
      %p300 = por %p298, %p299
      %p301 = scmp.ne.s32.totalorder %s292, %s293
      %p302 = scmp.eq.s32.totalorder %s30, 0
      %p303 = por %p301, %p302
      %p304 = scmp.ne.s32.totalorder %s292, %s293
      %p305 = scmp.eq.s32.totalorder %s31, 1
      %p306 = por %p304, %p305
      %p308 = scmp.ne.s32.totalorder %s293, %s307
      %p309 = scmp.eq.s32.totalorder %s31, 0
      %p310 = por %p308, %p309
      %s312 = sadd.s32 %s311, 1
      %p315 = scmp.eq.s32.totalorder %s25, 1
      %p316 = scmp.ne.s32.totalorder %s311, %s313
      %p317 = scmp.eq.s32.totalorder %s25, 0
      %p318 = por %p316, %p317
      %p319 = scmp.ne.s32.totalorder %s311, %s313
      %p320 = scmp.eq.s32.totalorder %s30, 1
      %p321 = por %p319, %p320
      %p322 = scmp.ne.s32.totalorder %s313, %s314
      %p323 = scmp.eq.s32.totalorder %s30, 0
      %p324 = por %p322, %p323
      %p325 = scmp.ne.s32.totalorder %s313, %s314
      %p326 = scmp.eq.s32.totalorder %s31, 1
      %p327 = por %p325, %p326
      %p329 = scmp.ne.s32.totalorder %s314, %s328
      %p330 = scmp.eq.s32.totalorder %s31, 0
      %p331 = por %p329, %p330
      %s333 = sadd.s32 %s332, 1
      %p336 = scmp.eq.s32.totalorder %s25, 1
      %p337 = scmp.ne.s32.totalorder %s332, %s334
      %p338 = scmp.eq.s32.totalorder %s25, 0
      %p339 = por %p337, %p338
      %p340 = scmp.ne.s32.totalorder %s332, %s334
      %p341 = scmp.eq.s32.totalorder %s30, 1
      %p342 = por %p340, %p341
      %p343 = scmp.ne.s32.totalorder %s334, %s335
      %p344 = scmp.eq.s32.totalorder %s30, 0
      %p345 = por %p343, %p344
      %p346 = scmp.ne.s32.totalorder %s334, %s335
      %p347 = scmp.eq.s32.totalorder %s31, 1
      %p348 = por %p346, %p347
      %p350 = scmp.ne.s32.totalorder %s335, %s349
      %p351 = scmp.eq.s32.totalorder %s31, 0
      %p352 = por %p350, %p351
      %s354 = sadd.s32 %s353, 1
      %p357 = scmp.eq.s32.totalorder %s25, 1
      %p358 = scmp.ne.s32.totalorder %s353, %s355
      %p359 = scmp.eq.s32.totalorder %s25, 0
      %p360 = por %p358, %p359
      %p361 = scmp.ne.s32.totalorder %s353, %s355
      %p362 = scmp.eq.s32.totalorder %s30, 1
      %p363 = por %p361, %p362
      %p364 = scmp.ne.s32.totalorder %s355, %s356
      %p365 = scmp.eq.s32.totalorder %s30, 0
      %p366 = por %p364, %p365
      %p367 = scmp.ne.s32.totalorder %s355, %s356
      %p368 = scmp.eq.s32.totalorder %s31, 1
      %p369 = por %p367, %p368
      %p371 = scmp.ne.s32.totalorder %s356, %s370
      %p372 = scmp.eq.s32.totalorder %s31, 0
      %p373 = por %p371, %p372
      %s374 = ssub.s32 %s25, %s32
      %p375 = scmp.eq.s32.totalorder %s374, 0
      %s377 = sadd.s32 %s376, 1
      %s378 = scalar_select %p375, %s376, %s377
      %p381 = pneg %p375
      %p382 = scmp.eq.s32.totalorder %s25, 1
      %p383 = por %p381, %p382
      %p384 = scmp.ne.s32.totalorder %s376, %s379
      %p385 = scmp.eq.s32.totalorder %s25, 0
      %p386 = por %p384, %p385
      %p387 = scmp.ne.s32.totalorder %s376, %s379
      %p388 = scmp.eq.s32.totalorder %s30, 1
      %p389 = por %p387, %p388
      %p390 = scmp.ne.s32.totalorder %s379, %s380
      %p391 = scmp.eq.s32.totalorder %s30, 0
      %p392 = por %p390, %p391
      %p393 = scmp.ne.s32.totalorder %s379, %s380
      %p394 = scmp.eq.s32.totalorder %s31, 1
      %p395 = por %p393, %p394
      %p397 = scmp.ne.s32.totalorder %s380, %s396
      %p398 = scmp.eq.s32.totalorder %s31, 0
      %p399 = por %p397, %p398
      %p400 = scmp.le.s32.totalorder 1, %s25
      %p401 = scmp.lt.s32.totalorder %s25, 3
      %p402 = pnand %p400, %p401
      %p403 = pneg %p402
      // Predicated region
      $region9: #{policy_network_forward.1} parent=5 // pred_check
        _
      $region10: #{policy_network_forward.1} parent=5 // pred_check_branch
        %405 = sbr.rel (%p402) target = $region12
      $region11: #{policy_network_forward.1} parent=5 // pred_region
        %s406 = ssub.s32 %s25, 1
        // Predicated region
        $region13: #{policy_network_forward.1} parent=11 // pred_check
          %p407 = pneg %p72
        $region14: #{policy_network_forward.1} parent=11 // pred_check_branch
          %409 = sbr.rel (%p407) target = $region16
        $region15: #{policy_network_forward.1} parent=11 // pred_region
          _
        $region16: #{policy_network_forward.1} parent=11 // pred_fallthru
          _
        // Predicated region
        $region17: #{policy_network_forward.1} parent=11 // pred_check
          %p410 = pneg %p93
        $region18: #{policy_network_forward.1} parent=11 // pred_check_branch
          %412 = sbr.rel (%p410) target = $region20
        $region19: #{policy_network_forward.1} parent=11 // pred_region
          _
        $region20: #{policy_network_forward.1} parent=11 // pred_fallthru
          _
        // Predicated region
        $region21: #{policy_network_forward.1} parent=11 // pred_check
          %p413 = pneg %p114
        $region22: #{policy_network_forward.1} parent=11 // pred_check_branch
          %415 = sbr.rel (%p413) target = $region24
        $region23: #{policy_network_forward.1} parent=11 // pred_region
          _
        $region24: #{policy_network_forward.1} parent=11 // pred_fallthru
          _
        // Predicated region
        $region25: #{policy_network_forward.1} parent=11 // pred_check
          %p416 = pneg %p135
        $region26: #{policy_network_forward.1} parent=11 // pred_check_branch
          %418 = sbr.rel (%p416) target = $region28
        $region27: #{policy_network_forward.1} parent=11 // pred_region
          _
        $region28: #{policy_network_forward.1} parent=11 // pred_fallthru
          _
        // Predicated region
        $region29: #{policy_network_forward.1} parent=11 // pred_check
          %p419 = pneg %p156
        $region30: #{policy_network_forward.1} parent=11 // pred_check_branch
          %421 = sbr.rel (%p419) target = $region32
        $region31: #{policy_network_forward.1} parent=11 // pred_region
          _
        $region32: #{policy_network_forward.1} parent=11 // pred_fallthru
          _
        // Predicated region
        $region33: #{policy_network_forward.1} parent=11 // pred_check
          %p422 = pneg %p177
        $region34: #{policy_network_forward.1} parent=11 // pred_check_branch
          %424 = sbr.rel (%p422) target = $region36
        $region35: #{policy_network_forward.1} parent=11 // pred_region
          _
        $region36: #{policy_network_forward.1} parent=11 // pred_fallthru
          _
        // Predicated region
        $region37: #{policy_network_forward.1} parent=11 // pred_check
          %p425 = pneg %p198
        $region38: #{policy_network_forward.1} parent=11 // pred_check_branch
          %427 = sbr.rel (%p425) target = $region40
        $region39: #{policy_network_forward.1} parent=11 // pred_region
          _
        $region40: #{policy_network_forward.1} parent=11 // pred_fallthru
          _
        // Predicated region
        $region41: #{policy_network_forward.1} parent=11 // pred_check
          %p428 = pneg %p219
        $region42: #{policy_network_forward.1} parent=11 // pred_check_branch
          %430 = sbr.rel (%p428) target = $region44
        $region43: #{policy_network_forward.1} parent=11 // pred_region
          _
        $region44: #{policy_network_forward.1} parent=11 // pred_fallthru
          _
        // Predicated region
        $region45: #{policy_network_forward.1} parent=11 // pred_check
          %p431 = pneg %p240
        $region46: #{policy_network_forward.1} parent=11 // pred_check_branch
          %433 = sbr.rel (%p431) target = $region48
        $region47: #{policy_network_forward.1} parent=11 // pred_region
          _
        $region48: #{policy_network_forward.1} parent=11 // pred_fallthru
          _
        // Predicated region
        $region49: #{policy_network_forward.1} parent=11 // pred_check
          %p434 = pneg %p261
        $region50: #{policy_network_forward.1} parent=11 // pred_check_branch
          %436 = sbr.rel (%p434) target = $region52
        $region51: #{policy_network_forward.1} parent=11 // pred_region
          _
        $region52: #{policy_network_forward.1} parent=11 // pred_fallthru
          _
        // Predicated region
        $region53: #{policy_network_forward.1} parent=11 // pred_check
          %p437 = pneg %p282
        $region54: #{policy_network_forward.1} parent=11 // pred_check_branch
          %439 = sbr.rel (%p437) target = $region56
        $region55: #{policy_network_forward.1} parent=11 // pred_region
          _
        $region56: #{policy_network_forward.1} parent=11 // pred_fallthru
          _
        // Predicated region
        $region57: #{policy_network_forward.1} parent=11 // pred_check
          %p440 = pneg %p303
        $region58: #{policy_network_forward.1} parent=11 // pred_check_branch
          %442 = sbr.rel (%p440) target = $region60
        $region59: #{policy_network_forward.1} parent=11 // pred_region
          _
        $region60: #{policy_network_forward.1} parent=11 // pred_fallthru
          _
        // Predicated region
        $region61: #{policy_network_forward.1} parent=11 // pred_check
          %p443 = pneg %p324
        $region62: #{policy_network_forward.1} parent=11 // pred_check_branch
          %445 = sbr.rel (%p443) target = $region64
        $region63: #{policy_network_forward.1} parent=11 // pred_region
          _
        $region64: #{policy_network_forward.1} parent=11 // pred_fallthru
          _
        // Predicated region
        $region65: #{policy_network_forward.1} parent=11 // pred_check
          %p446 = pneg %p345
        $region66: #{policy_network_forward.1} parent=11 // pred_check_branch
          %448 = sbr.rel (%p446) target = $region68
        $region67: #{policy_network_forward.1} parent=11 // pred_region
          _
        $region68: #{policy_network_forward.1} parent=11 // pred_fallthru
          _
        // Predicated region
        $region69: #{policy_network_forward.1} parent=11 // pred_check
          %p449 = pneg %p366
        $region70: #{policy_network_forward.1} parent=11 // pred_check_branch
          %451 = sbr.rel (%p449) target = $region72
        $region71: #{policy_network_forward.1} parent=11 // pred_region
          _
        $region72: #{policy_network_forward.1} parent=11 // pred_fallthru
          _
      $region12: #{policy_network_forward.1} parent=5 // pred_fallthru
        _
      %p452 = scmp.lt.s32.totalorder %s25, 2
      // Predicated region
      $region73: #{policy_network_forward.1} parent=5 // pred_check
        %p453 = pneg %p452
      $region74: #{policy_network_forward.1} parent=5 // pred_check_branch
        %455 = sbr.rel (%p453) target = $region76
      $region75: #{policy_network_forward.1} parent=5 // pred_region
        // Predicated region
        $region77: #{policy_network_forward.1} parent=75 // pred_check
          %p456 = pneg %p45
        $region78: #{policy_network_forward.1} parent=75 // pred_check_branch
          %458 = sbr.rel (%p456) target = $region80
        $region79: #{policy_network_forward.1} parent=75 // pred_region
          %p459 = scmp.lt.s32.totalorder %s25, 1
          %s460 = scalar_select %p459, %s25, 1
          %s461 = smul.addr %s460, 18
          %s462 = smul.addr %s461, 4
          %s463 = scalar_lea.vmem %s0, %s462
        $region80: #{policy_network_forward.1} parent=75 // pred_fallthru
          _
      $region76: #{policy_network_forward.1} parent=5 // pred_fallthru
        _
      %p464 = scmp.le.s32.totalorder 1, %s25
      %p465 = scmp.lt.s32.totalorder %s25, 3
      %p466 = pnand %p464, %p465
      %p467 = pneg %p466
      // Predicated region
      $region81: #{policy_network_forward.1} parent=5 // pred_check
        _
      $region82: #{policy_network_forward.1} parent=5 // pred_check_branch
        %469 = sbr.rel (%p466) target = $region84
      $region83: #{policy_network_forward.1} parent=5 // pred_region
        %s470 = ssub.s32 %s25, 1
        %p471 = scmp.lt.s32.totalorder %s30, 1
        %s472 = scalar_select %p471, %s30, 1
        %s473 = smul.addr %s472, 18
        %s474 = smul.addr %s473, 4
        %s475 = scalar_lea.vmem %s0, %s474
        %p476 = pneg %p51
        %p477 = pneg %p48
        %p478 = pneg %p72
        %p479 = pneg %p69
        %p480 = pneg %p93
        %p481 = pneg %p90
        %p482 = pneg %p114
        %p483 = pneg %p111
        %p484 = pneg %p135
        %p485 = pneg %p132
        %p486 = pneg %p156
        %p487 = pneg %p153
        %p488 = pneg %p177
        %p489 = pneg %p174
        %p490 = pneg %p198
        %p491 = pneg %p195
        %p492 = pneg %p219
        %p493 = pneg %p216
        %p494 = pneg %p240
        %p495 = pneg %p237
        %p496 = pneg %p261
        %p497 = pneg %p258
        %p498 = pneg %p282
        %p499 = pneg %p279
        %p500 = pneg %p303
        %p501 = pneg %p300
        %p502 = pneg %p324
        %p503 = pneg %p321
        %p504 = pneg %p345
        %p505 = pneg %p342
        %p506 = pneg %p366
        %p507 = pneg %p363
        %p508 = pneg %p392
        %p509 = pneg %p389
        %s510 = sand.u32 %s379, 1
        %s511 = scalar_lea.sflag [#allocation3], %s510
        %s512 = sand.u32 %s379, 1
        %s513 = scalar_lea.vmem [#allocation2], %s512
        %p514 = scmp.lt.s32.totalorder %s30, 1
        %s515 = scalar_select %p514, %s30, 1
        %s516 = smul.addr %s515, 18
        %s517 = smul.addr %s516, 4
        %s518 = scalar_lea.vmem %s0, %s517
        %v520 = vld [vmem:[%s518] sm:$0xff]
        %v521 = vld [vmem:[%s518 + $0x8] sm:$0xff]
        %v522 = vld [vmem:[%s518 + $0x10] sm:$0xff]
        %v523 = vld [vmem:[%s518 + $0x18] sm:$0xff]
        %v524 = vld [vmem:[%s518 + $0x20] sm:$0xff]
        %v525 = vld [vmem:[%s518 + $0x28] sm:$0xff]
        %v526 = vld [vmem:[%s518 + $0x30] sm:$0x11]
        %v527 = vld [vmem:[%s518 + $0x38] sm:$0x11]
        %v528 = vld [vmem:[%s518 + $0x40] sm:$0x11]
        %v529 = vld [vmem:[%s2] sm:$0xf]
        %v530 = vld [vmem:[%s2 + $0x4] sm:$0xf]
        %v531 = vld [vmem:[%s2 + $0x8] sm:$0xf]
        %v532 = vld [vmem:[%s2 + $0xc] sm:$0xf]
        %v533 = vld [vmem:[%s2 + $0x10] sm:$0xf]
        %v534 = vld [vmem:[%s2 + $0x14] sm:$0xf]
        %v535 = vld [vmem:[%s2 + $0x18] sm:$0xf]
        %v536 = vld [vmem:[%s2 + $0x1c] sm:$0xf]
        %v537 = vld [vmem:[%s2 + $0x20] sm:$0xf]
        %v538 = vld [vmem:[%s2 + $0x24] sm:$0xf]
        %v539 = vld [vmem:[%s2 + $0x28] sm:$0xf]
        %v540 = vld [vmem:[%s2 + $0x2c] sm:$0xf]
        %v541 = vld [vmem:[%s2 + $0x30] sm:$0xf]
        %v542 = vld [vmem:[%s2 + $0x34] sm:$0xf]
        %v543 = vld [vmem:[%s2 + $0x38] sm:$0xf]
        %v544 = vld [vmem:[%s2 + $0x3c] sm:$0xf]
        %v545 = vld [vmem:[%s2 + $0x40] sm:$0xf]
        %v546 = vld [vmem:[%s2 + $0x44] sm:$0xf]
        %v547 = vld [vmem:[%s2 + $0x48] sm:$0xf]
        %v548 = vld [vmem:[%s2 + $0x4c] sm:$0xf]
        %v549 = vld [vmem:[%s2 + $0x50] sm:$0xf]
        %v550 = vld [vmem:[%s2 + $0x54] sm:$0xf]
        %v551 = vld [vmem:[%s2 + $0x58] sm:$0xf]
        %v552 = vld [vmem:[%s2 + $0x5c] sm:$0xf]
        %v553 = vld [vmem:[%s2 + $0x60] sm:$0xf]
        %v554 = vld [vmem:[%s2 + $0x64] sm:$0xf]
        %v555 = vld [vmem:[%s2 + $0x68] sm:$0xf]
        %v556 = vld [vmem:[%s2 + $0x6c] sm:$0xf]
        %v557 = vld [vmem:[%s2 + $0x70] sm:$0xf]
        %v558 = vld [vmem:[%s2 + $0x74] sm:$0xf]
        %v559 = vld [vmem:[%s2 + $0x78] sm:$0xf]
        %v560 = vld [vmem:[%s2 + $0x7c] sm:$0xf]
        %v561 = vld [vmem:[%s2 + $0x80] sm:$0xf]
        %v562 = vld [vmem:[%s2 + $0x84] sm:$0xf]
        %v563 = vld [vmem:[%s2 + $0x88] sm:$0xf]
        %v564 = vld [vmem:[%s2 + $0x8c] sm:$0xf]
        %v565 = vld [vmem:[%s2 + $0x90] sm:$0xf]
        %v566 = vld [vmem:[%s2 + $0x94] sm:$0xf]
        %v567 = vld [vmem:[%s2 + $0x98] sm:$0xf]
        %v568 = vld [vmem:[%s2 + $0x9c] sm:$0xf]
        %v569 = vld [vmem:[%s2 + $0xa0] sm:$0xf]
        %v570 = vld [vmem:[%s2 + $0xa4] sm:$0xf]
        %v571 = vld [vmem:[%s2 + $0xa8] sm:$0xf]
        %v572 = vld [vmem:[%s2 + $0xac] sm:$0xf]
        %v573 = vld [vmem:[%s2 + $0xb0] sm:$0xf]
        %v574 = vld [vmem:[%s2 + $0xb4] sm:$0xf]
        %v575 = vld [vmem:[%s2 + $0xb8] sm:$0xf]
        %v576 = vld [vmem:[%s2 + $0xbc] sm:$0xf]
        %v577 = vld [vmem:[%s2 + $0xc0] sm:$0xf]
        %v578 = vld [vmem:[%s2 + $0xc4] sm:$0xf]
        %v579 = vld [vmem:[%s2 + $0xc8] sm:$0xf]
        %v580 = vld [vmem:[%s2 + $0xcc] sm:$0xf]
        %v581 = vld [vmem:[%s2 + $0xd0] sm:$0xf]
        %v582 = vld [vmem:[%s2 + $0xd4] sm:$0xf]
        %v583 = vld [vmem:[%s2 + $0xd8] sm:$0xf]
        %v584 = vld [vmem:[%s2 + $0xdc] sm:$0xf]
        %v585 = vld [vmem:[%s2 + $0xe0] sm:$0xf]
        %v586 = vld [vmem:[%s2 + $0xe4] sm:$0xf]
        %v587 = vld [vmem:[%s2 + $0xe8] sm:$0xf]
        %v588 = vld [vmem:[%s2 + $0xec] sm:$0xf]
        %v589 = vld [vmem:[%s2 + $0xf0] sm:$0xf]
        %v590 = vld [vmem:[%s2 + $0xf4] sm:$0xf]
        %v591 = vld [vmem:[%s2 + $0xf8] sm:$0xf]
        %v592 = vld [vmem:[%s2 + $0xfc] sm:$0xf]
        %v593 = vld [vmem:[%s2 + $0x100] sm:$0xf]
        %v594 = vld [vmem:[%s2 + $0x104] sm:$0xf]
        %v595 = vld [vmem:[%s2 + $0x108] sm:$0xf]
        %v596 = vld [vmem:[%s2 + $0x10c] sm:$0xf]
        %v597 = vld [vmem:[%s2 + $0x110] sm:$0xf]
        %v598 = vld [vmem:[%s2 + $0x114] sm:$0xf]
        %v599 = vld [vmem:[%s2 + $0x118] sm:$0xf]
        %v600 = vld [vmem:[%s2 + $0x11c] sm:$0xf]
        %v601 = vld [vmem:[%s2 + $0x120] sm:$0xf]
        %v602 = vld [vmem:[%s2 + $0x124] sm:$0xf]
        %v603 = vld [vmem:[%s2 + $0x128] sm:$0xf]
        %v604 = vld [vmem:[%s2 + $0x12c] sm:$0xf]
        %v605 = vld [vmem:[%s2 + $0x130] sm:$0xf]
        %v606 = vld [vmem:[%s2 + $0x134] sm:$0xf]
        %v607 = vld [vmem:[%s2 + $0x138] sm:$0xf]
        %v608 = vld [vmem:[%s2 + $0x13c] sm:$0xf]
        %v609 = vld [vmem:[%s2 + $0x140] sm:$0xf]
        %v610 = vld [vmem:[%s2 + $0x144] sm:$0xf]
        %v611 = vld [vmem:[%s2 + $0x148] sm:$0xf]
        %v612 = vld [vmem:[%s2 + $0x14c] sm:$0xf]
        %v613 = vld [vmem:[%s2 + $0x150] sm:$0xf]
        %v614 = vld [vmem:[%s2 + $0x154] sm:$0xf]
        %v615 = vld [vmem:[%s2 + $0x158] sm:$0xf]
        %v616 = vld [vmem:[%s2 + $0x15c] sm:$0xf]
        %v617 = vld [vmem:[%s2 + $0x160] sm:$0xf]
        %v618 = vld [vmem:[%s2 + $0x164] sm:$0xf]
        %v619 = vld [vmem:[%s2 + $0x168] sm:$0xf]
        %v620 = vld [vmem:[%s2 + $0x16c] sm:$0xf]
        %v621 = vld [vmem:[%s2 + $0x170] sm:$0xf]
        %v622 = vld [vmem:[%s2 + $0x174] sm:$0xf]
        %v623 = vld [vmem:[%s2 + $0x178] sm:$0xf]
        %v624 = vld [vmem:[%s2 + $0x17c] sm:$0xf]
        %v625 = vld [vmem:[%s1] sm:$0xff]
        %v626 = vld [vmem:[%s1 + $0x8] sm:$0xff]
        %v627 = vld [vmem:[%s1 + $0x10] sm:$0x1]
        %v637 = vunpack.c.l.b16 %v520
        %v638 = vunpack.c.h.b16 %v520
        %v639 = vunpack.c.l.b16 %v521
        %v640 = vunpack.c.h.b16 %v521
        %v641 = vunpack.c.l.b16 %v522
        %v642 = vunpack.c.h.b16 %v522
        %v643 = vunpack.c.l.b16 %v523
        %v644 = vunpack.c.h.b16 %v523
        %v645 = vunpack.c.l.b16 %v524
        %v646 = vunpack.c.h.b16 %v524
        %v647 = vunpack.c.l.b16 %v525
        %v648 = vunpack.c.h.b16 %v525
        %v649 = vunpack.c.l.b16 %v526
        %v650 = vunpack.c.h.b16 %v526
        %v651 = vunpack.c.l.b16 %v527
        %v652 = vunpack.c.h.b16 %v527
        %v653 = vunpack.c.l.b16 %v528
        %v654 = vunpack.c.h.b16 %v528
        %v655 = vpack.c.b16 %v643, %v637
        %v656 = vpack.c.b16 %v644, %v638
        %v657 = vpack.c.b16 %v645, %v639
        %v658 = vpack.c.b16 %v646, %v640
        %v659 = vpack.c.b16 %v647, %v641
        %v660 = vpack.c.b16 %v648, %v642
        %v661 = vpack.c.b16 %v649, %v649
        %v662 = vpack.c.b16 %v650, %v650
        %v663 = vpack.c.b16 %v651, %v651
        %v664 = vpack.c.b16 %v652, %v652
        %v665 = vpack.c.b16 %v653, %v653
        %v666 = vpack.c.b16 %v654, %v654
        %v775 = vunpack.c.l.b16 %v529
        %v776 = vunpack.c.l.b16 %v530
        %v777 = vunpack.c.l.b16 %v531
        %v778 = vunpack.c.l.b16 %v532
        %v779 = vunpack.c.l.b16 %v533
        %v780 = vunpack.c.l.b16 %v534
        %v781 = vunpack.c.l.b16 %v535
        %v782 = vunpack.c.l.b16 %v536
        %v783 = vunpack.c.l.b16 %v537
        %v784 = vunpack.c.l.b16 %v538
        %v785 = vunpack.c.l.b16 %v539
        %v786 = vunpack.c.l.b16 %v540
        %v787 = vunpack.c.l.b16 %v541
        %v788 = vunpack.c.l.b16 %v542
        %v789 = vunpack.c.l.b16 %v543
        %v790 = vunpack.c.l.b16 %v544
        %v791 = vunpack.c.l.b16 %v545
        %v792 = vunpack.c.l.b16 %v546
        %v793 = vunpack.c.l.b16 %v547
        %v794 = vunpack.c.l.b16 %v548
        %v795 = vunpack.c.l.b16 %v549
        %v796 = vunpack.c.l.b16 %v550
        %v797 = vunpack.c.l.b16 %v551
        %v798 = vunpack.c.l.b16 %v552
        %v799 = vunpack.c.l.b16 %v553
        %v800 = vunpack.c.l.b16 %v554
        %v801 = vunpack.c.l.b16 %v555
        %v802 = vunpack.c.l.b16 %v556
        %v803 = vunpack.c.l.b16 %v557
        %v804 = vunpack.c.l.b16 %v558
        %v805 = vunpack.c.l.b16 %v559
        %v806 = vunpack.c.l.b16 %v560
        %v807 = vunpack.c.l.b16 %v561
        %v808 = vunpack.c.l.b16 %v562
        %v809 = vunpack.c.l.b16 %v563
        %v810 = vunpack.c.l.b16 %v564
        %v811 = vunpack.c.l.b16 %v565
        %v812 = vunpack.c.l.b16 %v566
        %v813 = vunpack.c.l.b16 %v567
        %v814 = vunpack.c.l.b16 %v568
        %v815 = vunpack.c.l.b16 %v569
        %v816 = vunpack.c.l.b16 %v570
        %v817 = vunpack.c.l.b16 %v571
        %v818 = vunpack.c.l.b16 %v572
        %v819 = vunpack.c.l.b16 %v573
        %v820 = vunpack.c.l.b16 %v574
        %v821 = vunpack.c.l.b16 %v575
        %v822 = vunpack.c.l.b16 %v576
        %v823 = vunpack.c.l.b16 %v577
        %v824 = vunpack.c.l.b16 %v578
        %v825 = vunpack.c.l.b16 %v579
        %v826 = vunpack.c.l.b16 %v580
        %v827 = vunpack.c.l.b16 %v581
        %v828 = vunpack.c.l.b16 %v582
        %v829 = vunpack.c.l.b16 %v583
        %v830 = vunpack.c.l.b16 %v584
        %v831 = vunpack.c.l.b16 %v585
        %v832 = vunpack.c.l.b16 %v586
        %v833 = vunpack.c.l.b16 %v587
        %v834 = vunpack.c.l.b16 %v588
        %v835 = vunpack.c.l.b16 %v589
        %v836 = vunpack.c.l.b16 %v590
        %v837 = vunpack.c.l.b16 %v591
        %v838 = vunpack.c.l.b16 %v592
        %v839 = vunpack.c.l.b16 %v593
        %v840 = vunpack.c.l.b16 %v594
        %v841 = vunpack.c.l.b16 %v595
        %v842 = vunpack.c.l.b16 %v596
        %v843 = vunpack.c.l.b16 %v597
        %v844 = vunpack.c.l.b16 %v598
        %v845 = vunpack.c.l.b16 %v599
        %v846 = vunpack.c.l.b16 %v600
        %v847 = vunpack.c.l.b16 %v601
        %v848 = vunpack.c.l.b16 %v602
        %v849 = vunpack.c.l.b16 %v603
        %v850 = vunpack.c.l.b16 %v604
        %v851 = vunpack.c.l.b16 %v605
        %v852 = vunpack.c.l.b16 %v606
        %v853 = vunpack.c.l.b16 %v607
        %v854 = vunpack.c.l.b16 %v608
        %v855 = vunpack.c.l.b16 %v609
        %v856 = vunpack.c.l.b16 %v610
        %v857 = vunpack.c.l.b16 %v611
        %v858 = vunpack.c.l.b16 %v612
        %v859 = vunpack.c.l.b16 %v613
        %v860 = vunpack.c.l.b16 %v614
        %v861 = vunpack.c.l.b16 %v615
        %v862 = vunpack.c.l.b16 %v616
        %v863 = vunpack.c.l.b16 %v617
        %v864 = vunpack.c.l.b16 %v618
        %v865 = vunpack.c.l.b16 %v619
        %v866 = vunpack.c.l.b16 %v620
        %v867 = vunpack.c.l.b16 %v621
        %v868 = vunpack.c.l.b16 %v622
        %v869 = vunpack.c.l.b16 %v623
        %v870 = vunpack.c.l.b16 %v624
        %v871 = vpack.c.b16 %v776, %v775
        %v872 = vpack.c.b16 %v778, %v777
        %v873 = vpack.c.b16 %v780, %v779
        %v874 = vpack.c.b16 %v782, %v781
        %v875 = vpack.c.b16 %v784, %v783
        %v876 = vpack.c.b16 %v786, %v785
        %v877 = vpack.c.b16 %v788, %v787
        %v878 = vpack.c.b16 %v790, %v789
        %v879 = vpack.c.b16 %v792, %v791
        %v880 = vpack.c.b16 %v794, %v793
        %v881 = vpack.c.b16 %v796, %v795
        %v882 = vpack.c.b16 %v798, %v797
        %v883 = vpack.c.b16 %v800, %v799
        %v884 = vpack.c.b16 %v802, %v801
        %v885 = vpack.c.b16 %v804, %v803
        %v886 = vpack.c.b16 %v806, %v805
        %v887 = vpack.c.b16 %v808, %v807
        %v888 = vpack.c.b16 %v810, %v809
        %v889 = vpack.c.b16 %v812, %v811
        %v890 = vpack.c.b16 %v814, %v813
        %v891 = vpack.c.b16 %v816, %v815
        %v892 = vpack.c.b16 %v818, %v817
        %v893 = vpack.c.b16 %v820, %v819
        %v894 = vpack.c.b16 %v822, %v821
        %v895 = vpack.c.b16 %v824, %v823
        %v896 = vpack.c.b16 %v826, %v825
        %v897 = vpack.c.b16 %v828, %v827
        %v898 = vpack.c.b16 %v830, %v829
        %v899 = vpack.c.b16 %v832, %v831
        %v900 = vpack.c.b16 %v834, %v833
        %v901 = vpack.c.b16 %v836, %v835
        %v902 = vpack.c.b16 %v838, %v837
        %v903 = vpack.c.b16 %v840, %v839
        %v904 = vpack.c.b16 %v842, %v841
        %v905 = vpack.c.b16 %v844, %v843
        %v906 = vpack.c.b16 %v846, %v845
        %v907 = vpack.c.b16 %v848, %v847
        %v908 = vpack.c.b16 %v850, %v849
        %v909 = vpack.c.b16 %v852, %v851
        %v910 = vpack.c.b16 %v854, %v853
        %v911 = vpack.c.b16 %v856, %v855
        %v912 = vpack.c.b16 %v858, %v857
        %v913 = vpack.c.b16 %v860, %v859
        %v914 = vpack.c.b16 %v862, %v861
        %v915 = vpack.c.b16 %v864, %v863
        %v916 = vpack.c.b16 %v866, %v865
        %v917 = vpack.c.b16 %v868, %v867
        %v918 = vpack.c.b16 %v870, %v869
        %967 = vmatprep.subr.bf16.mxu0 0
        %968 = vmatpush1.bf16.msra.mxu0 %v871
        %969 = vmatprep.subr.bf16.mxu0 0
        %970 = vmatpush1.bf16.msra.mxu0 %v872
        %971 = vmatprep.subr.bf16.mxu0 0
        %972 = vmatpush1.bf16.msra.mxu0 %v873
        %973 = vmatprep.subr.bf16.mxu0 0
        %974 = vmatpush1.bf16.msra.mxu0 %v874
        %975 = vmatprep.subr.bf16.mxu0 0
        %976 = vmatpush1.bf16.msra.mxu0 %v875
        %977 = vmatprep.subr.bf16.mxu0 0
        %978 = vmatpush1.bf16.msra.mxu0 %v876
        %979 = vmatprep.subr.bf16.mxu0 0
        %980 = vmatpush1.bf16.msra.mxu0 %v877
        %981 = vmatprep.subr.bf16.mxu0 0
        %982 = vmatpush1.bf16.msra.mxu0 %v878
        %983 = vmatprep.subr.bf16.mxu0 0
        %984 = vmatpush1.bf16.msra.mxu0 %v879
        %985 = vmatprep.subr.bf16.mxu0 0
        %986 = vmatpush1.bf16.msra.mxu0 %v880
        %987 = vmatprep.subr.bf16.mxu0 0
        %988 = vmatpush1.bf16.msra.mxu0 %v881
        %989 = vmatprep.subr.bf16.mxu0 0
        %990 = vmatpush1.bf16.msra.mxu0 %v882
        %991 = vmatprep.subr.bf16.mxu0 0
        %992 = vmatpush1.bf16.msra.mxu0 %v883
        %993 = vmatprep.subr.bf16.mxu0 0
        %994 = vmatpush1.bf16.msra.mxu0 %v884
        %995 = vmatprep.subr.bf16.mxu0 0
        %996 = vmatpush1.bf16.msra.mxu0 %v885
        %997 = vmatprep.subr.bf16.mxu0 0
        %998 = vmatpush1.bf16.msra.mxu0 %v886
        %999 = vmatprep.mubr.bf16.mxu0 %v656
        %1000 = vmatmul.mubr.bf16.gmra.mrb[0].mxu0 %v655
        %v1001 = vpop.f32.mrb[0].mxu0
        %v1002 = vadd.f32 %v625, %v1001
        %v1003 = vpop.f32.mrb[0].mxu0
        %v1004 = vpop.f32.mrb[0].mxu0
        %v1005 = vadd.f32 %v626, %v1004
        %v1006 = vpop.f32.mrb[0].mxu0
        %1007 = vmatprep.mubr.bf16.mxu0 %v662
        %1008 = vmatmul.mubr.bf16.gmra.mrb[0].mxu0 %v661
        %v1009 = vpop.f32.mrb[0].mxu0
        %v1010 = vadd.f32 %v627, %v1009
        %v1011 = vpop.f32.mrb[0].mxu0
        %v1012 = vpop.f32.mrb[0].mxu0
        %v1013 = vpop.f32.mrb[0].mxu0
        %1014 = vdwg.mxu0
        %1015 = vmatprep.subr.bf16.mxu0 0
        %1016 = vmatpush1.bf16.msra.mxu0 %v887
        %1017 = vmatprep.subr.bf16.mxu0 0
        %1018 = vmatpush1.bf16.msra.mxu0 %v888
        %1019 = vmatprep.subr.bf16.mxu0 0
        %1020 = vmatpush1.bf16.msra.mxu0 %v889
        %1021 = vmatprep.subr.bf16.mxu0 0
        %1022 = vmatpush1.bf16.msra.mxu0 %v890
        %1023 = vmatprep.subr.bf16.mxu0 0
        %1024 = vmatpush1.bf16.msra.mxu0 %v891
        %1025 = vmatprep.subr.bf16.mxu0 0
        %1026 = vmatpush1.bf16.msra.mxu0 %v892
        %1027 = vmatprep.subr.bf16.mxu0 0
        %1028 = vmatpush1.bf16.msra.mxu0 %v893
        %1029 = vmatprep.subr.bf16.mxu0 0
        %1030 = vmatpush1.bf16.msra.mxu0 %v894
        %1031 = vmatprep.subr.bf16.mxu0 0
        %1032 = vmatpush1.bf16.msra.mxu0 %v895
        %1033 = vmatprep.subr.bf16.mxu0 0
        %1034 = vmatpush1.bf16.msra.mxu0 %v896
        %1035 = vmatprep.subr.bf16.mxu0 0
        %1036 = vmatpush1.bf16.msra.mxu0 %v897
        %1037 = vmatprep.subr.bf16.mxu0 0
        %1038 = vmatpush1.bf16.msra.mxu0 %v898
        %1039 = vmatprep.subr.bf16.mxu0 0
        %1040 = vmatpush1.bf16.msra.mxu0 %v899
        %1041 = vmatprep.subr.bf16.mxu0 0
        %1042 = vmatpush1.bf16.msra.mxu0 %v900
        %1043 = vmatprep.subr.bf16.mxu0 0
        %1044 = vmatpush1.bf16.msra.mxu0 %v901
        %1045 = vmatprep.subr.bf16.mxu0 0
        %1046 = vmatpush1.bf16.msra.mxu0 %v902
        %1047 = vmatprep.mubr.bf16.mxu0 %v658
        %1048 = vmatmul.mubr.bf16.gmra.mrb[0].mxu0 %v657
        %v1049 = vpop.f32.mrb[0].mxu0
        %v1050 = vadd.f32 %v1002, %v1049
        %v1051 = vpop.f32.mrb[0].mxu0
        %v1052 = vpop.f32.mrb[0].mxu0
        %v1053 = vadd.f32 %v1005, %v1052
        %v1054 = vpop.f32.mrb[0].mxu0
        %1055 = vmatprep.mubr.bf16.mxu0 %v664
        %1056 = vmatmul.mubr.bf16.gmra.mrb[0].mxu0 %v663
        %v1057 = vpop.f32.mrb[0].mxu0
        %v1058 = vadd.f32 %v1010, %v1057
        %v1059 = vpop.f32.mrb[0].mxu0
        %v1060 = vpop.f32.mrb[0].mxu0
        %v1061 = vpop.f32.mrb[0].mxu0
        %1062 = vdwg.mxu0
        %1063 = vmatprep.subr.bf16.mxu0 0
        %1064 = vmatpush1.bf16.msra.mxu0 %v903
        %1065 = vmatprep.subr.bf16.mxu0 0
        %1066 = vmatpush1.bf16.msra.mxu0 %v904
        %1067 = vmatprep.subr.bf16.mxu0 0
        %1068 = vmatpush1.bf16.msra.mxu0 %v905
        %1069 = vmatprep.subr.bf16.mxu0 0
        %1070 = vmatpush1.bf16.msra.mxu0 %v906
        %1071 = vmatprep.subr.bf16.mxu0 0
        %1072 = vmatpush1.bf16.msra.mxu0 %v907
        %1073 = vmatprep.subr.bf16.mxu0 0
        %1074 = vmatpush1.bf16.msra.mxu0 %v908
        %1075 = vmatprep.subr.bf16.mxu0 0
        %1076 = vmatpush1.bf16.msra.mxu0 %v909
        %1077 = vmatprep.subr.bf16.mxu0 0
        %1078 = vmatpush1.bf16.msra.mxu0 %v910
        %1079 = vmatprep.subr.bf16.mxu0 0
        %1080 = vmatpush1.bf16.msra.mxu0 %v911
        %1081 = vmatprep.subr.bf16.mxu0 0
        %1082 = vmatpush1.bf16.msra.mxu0 %v912
        %1083 = vmatprep.subr.bf16.mxu0 0
        %1084 = vmatpush1.bf16.msra.mxu0 %v913
        %1085 = vmatprep.subr.bf16.mxu0 0
        %1086 = vmatpush1.bf16.msra.mxu0 %v914
        %1087 = vmatprep.subr.bf16.mxu0 0
        %1088 = vmatpush1.bf16.msra.mxu0 %v915
        %1089 = vmatprep.subr.bf16.mxu0 0
        %1090 = vmatpush1.bf16.msra.mxu0 %v916
        %1091 = vmatprep.subr.bf16.mxu0 0
        %1092 = vmatpush1.bf16.msra.mxu0 %v917
        %1093 = vmatprep.subr.bf16.mxu0 0
        %1094 = vmatpush1.bf16.msra.mxu0 %v918
        %1095 = vmatprep.mubr.bf16.mxu0 %v660
        %1096 = vmatmul.mubr.bf16.gmra.mrb[0].mxu0 %v659
        %v1097 = vpop.f32.mrb[0].mxu0
        %v1098 = vadd.f32 %v1050, %v1097
        %v1099 = vpop.f32.mrb[0].mxu0
        %v1100 = vpop.f32.mrb[0].mxu0
        %v1101 = vadd.f32 %v1053, %v1100
        %v1102 = vpop.f32.mrb[0].mxu0
        %1103 = vmatprep.mubr.bf16.mxu0 %v666
        %1104 = vmatmul.mubr.bf16.gmra.mrb[0].mxu0 %v665
        %v1105 = vpop.f32.mrb[0].mxu0
        %v1106 = vadd.f32 %v1058, %v1105
        %v1107 = vpop.f32.mrb[0].mxu0
        %v1108 = vpop.f32.mrb[0].mxu0
        %v1109 = vpop.f32.mrb[0].mxu0
        %1110 = vdwg.mxu0
        %v1111 = vpack.c.bf16 %v1101, %v1098
        %v1112 = vpack.c.bf16 %v1106, %v1106
        %v1113 = vld [vmem:[%s3] sm:$0xff]
        %v1114 = vld [vmem:[%s3 + $0x8] sm:$0xf]
        %v1115 = vld [vmem:[%s3 + $0xc] sm:$0xff]
        %v1116 = vld [vmem:[%s3 + $0x14] sm:$0xf]
        %v1117 = vld [vmem:[%s3 + $0x18] sm:$0xff]
        %v1118 = vld [vmem:[%s3 + $0x20] sm:$0xf]
        %v1119 = vld [vmem:[%s3 + $0x24] sm:$0xff]
        %v1120 = vld [vmem:[%s3 + $0x2c] sm:$0xf]
        %v1121 = vld [vmem:[%s3 + $0x30] sm:$0xff]
        %v1122 = vld [vmem:[%s3 + $0x38] sm:$0xf]
        %v1123 = vld [vmem:[%s3 + $0x3c] sm:$0xff]
        %v1124 = vld [vmem:[%s3 + $0x44] sm:$0xf]
        %v1125 = vld [vmem:[%s3 + $0x48] sm:$0xff]
        %v1126 = vld [vmem:[%s3 + $0x50] sm:$0xf]
        %v1127 = vld [vmem:[%s3 + $0x54] sm:$0xff]
        %v1128 = vld [vmem:[%s3 + $0x5c] sm:$0xf]
        %v1129 = vld [vmem:[%s3 + $0x60] sm:$0xff]
        %v1130 = vld [vmem:[%s3 + $0x68] sm:$0xf]
        %v1131 = vld [vmem:[%s3 + $0x6c] sm:$0xff]
        %v1132 = vld [vmem:[%s3 + $0x74] sm:$0xf]
        %v1133 = vld [vmem:[%s3 + $0x78] sm:$0xff]
        %v1134 = vld [vmem:[%s3 + $0x80] sm:$0xf]
        %v1135 = vld [vmem:[%s3 + $0x84] sm:$0xff]
        %v1136 = vld [vmem:[%s3 + $0x8c] sm:$0xf]
        %v1137 = vld [vmem:[%s3 + $0x90] sm:$0xff]
        %v1138 = vld [vmem:[%s3 + $0x98] sm:$0xf]
        %v1139 = vld [vmem:[%s3 + $0x9c] sm:$0xff]
        %v1140 = vld [vmem:[%s3 + $0xa4] sm:$0xf]
        %v1141 = vld [vmem:[%s3 + $0xa8] sm:$0xff]
        %v1142 = vld [vmem:[%s3 + $0xb0] sm:$0xf]
        %v1143 = vld [vmem:[%s3 + $0xb4] sm:$0xff]
        %v1144 = vld [vmem:[%s3 + $0xbc] sm:$0xf]
        %v1177 = vunpack.c.l.b16 %v1113
        %v1178 = vunpack.c.h.b16 %v1113
        %v1179 = vunpack.c.l.b16 %v1114
        %v1180 = vunpack.c.l.b16 %v1115
        %v1181 = vunpack.c.h.b16 %v1115
        %v1182 = vunpack.c.l.b16 %v1116
        %v1183 = vunpack.c.l.b16 %v1117
        %v1184 = vunpack.c.h.b16 %v1117
        %v1185 = vunpack.c.l.b16 %v1118
        %v1186 = vunpack.c.l.b16 %v1119
        %v1187 = vunpack.c.h.b16 %v1119
        %v1188 = vunpack.c.l.b16 %v1120
        %v1189 = vunpack.c.l.b16 %v1121
        %v1190 = vunpack.c.h.b16 %v1121
        %v1191 = vunpack.c.l.b16 %v1122
        %v1192 = vunpack.c.l.b16 %v1123
        %v1193 = vunpack.c.h.b16 %v1123
        %v1194 = vunpack.c.l.b16 %v1124
        %v1195 = vunpack.c.l.b16 %v1125
        %v1196 = vunpack.c.h.b16 %v1125
        %v1197 = vunpack.c.l.b16 %v1126
        %v1198 = vunpack.c.l.b16 %v1127
        %v1199 = vunpack.c.h.b16 %v1127
        %v1200 = vunpack.c.l.b16 %v1128
        %v1201 = vunpack.c.l.b16 %v1129
        %v1202 = vunpack.c.h.b16 %v1129
        %v1203 = vunpack.c.l.b16 %v1130
        %v1204 = vunpack.c.l.b16 %v1131
        %v1205 = vunpack.c.h.b16 %v1131
        %v1206 = vunpack.c.l.b16 %v1132
        %v1207 = vunpack.c.l.b16 %v1133
        %v1208 = vunpack.c.h.b16 %v1133
        %v1209 = vunpack.c.l.b16 %v1134
        %v1210 = vunpack.c.l.b16 %v1135
        %v1211 = vunpack.c.h.b16 %v1135
        %v1212 = vunpack.c.l.b16 %v1136
        %v1213 = vunpack.c.l.b16 %v1137
        %v1214 = vunpack.c.h.b16 %v1137
        %v1215 = vunpack.c.l.b16 %v1138
        %v1216 = vunpack.c.l.b16 %v1139
        %v1217 = vunpack.c.h.b16 %v1139
        %v1218 = vunpack.c.l.b16 %v1140
        %v1219 = vunpack.c.l.b16 %v1141
        %v1220 = vunpack.c.h.b16 %v1141
        %v1221 = vunpack.c.l.b16 %v1142
        %v1222 = vunpack.c.l.b16 %v1143
        %v1223 = vunpack.c.h.b16 %v1143
        %v1224 = vunpack.c.l.b16 %v1144
        %v1225 = vpack.c.b16 %v1180, %v1177
        %v1226 = vpack.c.b16 %v1181, %v1178
        %v1227 = vpack.c.b16 %v1182, %v1179
        %v1228 = vpack.c.b16 %v1186, %v1183
        %v1229 = vpack.c.b16 %v1187, %v1184
        %v1230 = vpack.c.b16 %v1188, %v1185
        %v1231 = vpack.c.b16 %v1192, %v1189
        %v1232 = vpack.c.b16 %v1193, %v1190
        %v1233 = vpack.c.b16 %v1194, %v1191
        %v1234 = vpack.c.b16 %v1198, %v1195
        %v1235 = vpack.c.b16 %v1199, %v1196
        %v1236 = vpack.c.b16 %v1200, %v1197
        %v1237 = vpack.c.b16 %v1204, %v1201
        %v1238 = vpack.c.b16 %v1205, %v1202
        %v1239 = vpack.c.b16 %v1206, %v1203
        %v1240 = vpack.c.b16 %v1210, %v1207
        %v1241 = vpack.c.b16 %v1211, %v1208
        %v1242 = vpack.c.b16 %v1212, %v1209
        %v1243 = vpack.c.b16 %v1216, %v1213
        %v1244 = vpack.c.b16 %v1217, %v1214
        %v1245 = vpack.c.b16 %v1218, %v1215
        %v1246 = vpack.c.b16 %v1222, %v1219
        %v1247 = vpack.c.b16 %v1223, %v1220
        %v1248 = vpack.c.b16 %v1224, %v1221
        %1273 = vmatprep.subr.bf16.mxu0 %v1226
        %1274 = vmatpush1.bf16.msra.mxu0 %v1225
        %1275 = vmatprep.subr.bf16.mxu0 %v1229
        %1276 = vmatpush1.bf16.msra.mxu0 %v1228
        %1277 = vmatprep.subr.bf16.mxu0 %v1232
        %1278 = vmatpush1.bf16.msra.mxu0 %v1231
        %1279 = vmatprep.subr.bf16.mxu0 %v1235
        %1280 = vmatpush1.bf16.msra.mxu0 %v1234
        %1281 = vmatprep.subr.bf16.mxu0 %v1238
        %1282 = vmatpush1.bf16.msra.mxu0 %v1237
        %1283 = vmatprep.subr.bf16.mxu0 %v1241
        %1284 = vmatpush1.bf16.msra.mxu0 %v1240
        %1285 = vmatprep.subr.bf16.mxu0 %v1244
        %1286 = vmatpush1.bf16.msra.mxu0 %v1243
        %1287 = vmatprep.subr.bf16.mxu0 %v1247
        %1288 = vmatpush1.bf16.msra.mxu0 %v1246
        %1289 = vmatprep.subr.bf16.mxu0 0
        %1290 = vmatpush1.bf16.msra.mxu0 0
        %1291 = vmatprep.subr.bf16.mxu0 0
        %1292 = vmatpush1.bf16.msra.mxu0 0
        %1293 = vmatprep.subr.bf16.mxu0 0
        %1294 = vmatpush1.bf16.msra.mxu0 0
        %1295 = vmatprep.subr.bf16.mxu0 0
        %1296 = vmatpush1.bf16.msra.mxu0 0
        %1297 = vmatprep.subr.bf16.mxu0 0
        %1298 = vmatpush1.bf16.msra.mxu0 0
        %1299 = vmatprep.subr.bf16.mxu0 0
        %1300 = vmatpush1.bf16.msra.mxu0 0
        %1301 = vmatprep.subr.bf16.mxu0 0
        %1302 = vmatpush1.bf16.msra.mxu0 0
        %1303 = vmatprep.subr.bf16.mxu0 0
        %1304 = vmatpush1.bf16.msra.mxu0 0
        %1305 = vmatprep.mubr.bf16.mxu0 0
        %1306 = vmatmul.mubr.bf16.gmra.mrb[0].mxu0 %v1111
        %v1307 = vpop.f32.mrb[0].mxu0
        %v1308 = vadd.f32 0.0, %v1307
        %v1309 = vpop.f32.mrb[0].mxu0
        %v1310 = vadd.f32 0.0, %v1309
        %v1311 = vpop.f32.mrb[0].mxu0
        %v1312 = vadd.f32 0.0, %v1311
        %v1313 = vpop.f32.mrb[0].mxu0
        %v1314 = vadd.f32 0.0, %v1313
        %1315 = vmatprep.mubr.bf16.mxu0 0
        %1316 = vmatmul.mubr.bf16.gmra.mrb[0].mxu0 %v1112
        %v1317 = vpop.f32.mrb[0].mxu0
        %v1318 = vadd.f32 0.0, %v1317
        %v1319 = vpop.f32.mrb[0].mxu0
        %v1320 = vadd.f32 0.0, %v1319
        %v1321 = vpop.f32.mrb[0].mxu0
        %v1322 = vpop.f32.mrb[0].mxu0
        %1323 = vdwg.mxu0
        %1324 = vmatprep.subr.bf16.mxu0 0
        %1325 = vmatpush1.bf16.msra.mxu0 %v1227
        %1326 = vmatprep.subr.bf16.mxu0 0
        %1327 = vmatpush1.bf16.msra.mxu0 %v1230
        %1328 = vmatprep.subr.bf16.mxu0 0
        %1329 = vmatpush1.bf16.msra.mxu0 %v1233
        %1330 = vmatprep.subr.bf16.mxu0 0
        %1331 = vmatpush1.bf16.msra.mxu0 %v1236
        %1332 = vmatprep.subr.bf16.mxu0 0
        %1333 = vmatpush1.bf16.msra.mxu0 %v1239
        %1334 = vmatprep.subr.bf16.mxu0 0
        %1335 = vmatpush1.bf16.msra.mxu0 %v1242
        %1336 = vmatprep.subr.bf16.mxu0 0
        %1337 = vmatpush1.bf16.msra.mxu0 %v1245
        %1338 = vmatprep.subr.bf16.mxu0 0
        %1339 = vmatpush1.bf16.msra.mxu0 %v1248
        %1340 = vmatprep.subr.bf16.mxu0 0
        %1341 = vmatpush1.bf16.msra.mxu0 0
        %1342 = vmatprep.subr.bf16.mxu0 0
        %1343 = vmatpush1.bf16.msra.mxu0 0
        %1344 = vmatprep.subr.bf16.mxu0 0
        %1345 = vmatpush1.bf16.msra.mxu0 0
        %1346 = vmatprep.subr.bf16.mxu0 0
        %1347 = vmatpush1.bf16.msra.mxu0 0
        %1348 = vmatprep.subr.bf16.mxu0 0
        %1349 = vmatpush1.bf16.msra.mxu0 0
        %1350 = vmatprep.subr.bf16.mxu0 0
        %1351 = vmatpush1.bf16.msra.mxu0 0
        %1352 = vmatprep.subr.bf16.mxu0 0
        %1353 = vmatpush1.bf16.msra.mxu0 0
        %1354 = vmatprep.subr.bf16.mxu0 0
        %1355 = vmatpush1.bf16.msra.mxu0 0
        %1356 = vmatprep.mubr.bf16.mxu0 0
        %1357 = vmatmul.mubr.bf16.gmra.mrb[0].mxu0 %v1111
        %v1358 = vpop.f32.mrb[0].mxu0
        %v1359 = vadd.f32 0.0, %v1358
        %v1360 = vpop.f32.mrb[0].mxu0
        %v1361 = vpop.f32.mrb[0].mxu0
        %v1362 = vadd.f32 0.0, %v1361
        %v1363 = vpop.f32.mrb[0].mxu0
        %1364 = vmatprep.mubr.bf16.mxu0 0
        %1365 = vmatmul.mubr.bf16.gmra.mrb[0].mxu0 %v1112
        %v1366 = vpop.f32.mrb[0].mxu0
        %v1367 = vadd.f32 0.0, %v1366
        %v1368 = vpop.f32.mrb[0].mxu0
        %v1369 = vpop.f32.mrb[0].mxu0
        %v1370 = vpop.f32.mrb[0].mxu0
        %1371 = vdwg.mxu0
        %v1372 = vpack.c.bf16 %v1312, %v1308
        %v1373 = vpack.c.bf16 %v1318, %v1318
        %v1374 = vpack.c.bf16 %v1314, %v1310
        %v1375 = vpack.c.bf16 %v1320, %v1320
        %v1376 = vpack.c.bf16 %v1362, %v1359
        %v1377 = vpack.c.bf16 %v1367, %v1367
        %vm1378 = vcmask 261120
        %v1380 = vsel %vm1378, %v1372, 0
        %v1383 = vsel %vm1378, %v1373, 0
        %v1386 = vsel %vm1378, %v1374, 0
        %v1389 = vsel %vm1378, %v1375, 0
        %1391 = vmatprep.subr.bf16.mxu0 0
        %1392 = vmatpush1.bf16.xpose.msra.mxu0 %v1386
        %1393 = vmatprep.subr.bf16.mxu0 0
        %1394 = vmatpush1.bf16.xpose.msra.mxu0 %v1389
        %1395 = vmatprep.subr.bf16.mxu0 0
        %1396 = vmatpush1.bf16.xpose.msra.mxu0 0
        %1397 = vmatprep.subr.bf16.mxu0 0
        %1398 = vmatpush1.bf16.xpose.msra.mxu0 0
        %1399 = vmatprep.subr.bf16.mxu0 0
        %1400 = vmatpush1.bf16.xpose.msra.mxu0 0
        %1401 = vmatprep.subr.bf16.mxu0 0
        %1402 = vmatpush1.bf16.xpose.msra.mxu0 0
        %1403 = vmatprep.subr.bf16.mxu0 0
        %1404 = vmatpush1.bf16.xpose.msra.mxu0 0
        %1405 = vmatprep.subr.bf16.mxu0 0
        %1406 = vmatpush1.bf16.xpose.msra.mxu0 0
        %1407 = vmatprep.subr.bf16.mxu0 0
        %1408 = vmatpush1.bf16.xpose.msra.mxu0 0
        %1409 = vmatprep.subr.bf16.mxu0 0
        %1410 = vmatpush1.bf16.xpose.msra.mxu0 0
        %1411 = vmatprep.subr.bf16.mxu0 0
        %1412 = vmatpush1.bf16.xpose.msra.mxu0 0
        %1413 = vmatprep.subr.bf16.mxu0 0
        %1414 = vmatpush1.bf16.xpose.msra.mxu0 0
        %1415 = vmatprep.subr.bf16.mxu0 0
        %1416 = vmatpush1.bf16.xpose.msra.mxu0 0
        %1417 = vmatprep.subr.bf16.mxu0 0
        %1418 = vmatpush1.bf16.xpose.msra.mxu0 0
        %1419 = vmatprep.subr.bf16.mxu0 0
        %1420 = vmatpush1.bf16.xpose.msra.mxu0 0
        %1421 = vmatprep.subr.bf16.mxu0 0
        %1422 = vmatpush1.bf16.xpose.msra.mxu0 0
        %1423 = vmatprep.mubr.bf16.mxu0 0
        %1424 = vmatmul.mubr.bf16.gmra.mrb[0].mxu0 %v1380
        %v1425 = vpop.f32.mrb[0].mxu0
        %v1426 = vadd.f32 0.0, %v1425
        %v1427 = vpop.f32.mrb[0].mxu0
        %v1428 = vpop.f32.mrb[0].mxu0
        %v1429 = vadd.f32 0.0, %v1428
        %v1430 = vpop.f32.mrb[0].mxu0
        %1431 = vmatprep.mubr.bf16.mxu0 0
        %1432 = vmatmul.mubr.bf16.gmra.mrb[0].mxu0 %v1383
        %v1433 = vpop.f32.mrb[0].mxu0
        %v1434 = vadd.f32 0.0, %v1433
        %v1435 = vpop.f32.mrb[0].mxu0
        %v1436 = vpop.f32.mrb[0].mxu0
        %v1437 = vpop.f32.mrb[0].mxu0
        %1438 = vdwg.mxu0
        %vm1439 = vcmask 138240
        %v1440 = vsel %vm1439, %v1426, -inf
        %1441 = vmax.xlane.f32.xlu0 %v1440
        %v1442 = vpop.xlane.xlu0 %1441
        %v1443 = vsel %vm1439, %v1429, -inf
        %1444 = vmax.xlane.f32.xlu0 %v1443
        %v1445 = vpop.xlane.xlu0 %1444
        %vm1446 = vcmask 131072
        %v1447 = vsel %vm1446, %v1434, -inf
        %1448 = vmax.xlane.f32.xlu0 %v1447
        %v1449 = vpop.xlane.xlu0 %1448
        %v1450 = vsub.f32 %v1426, %v1442
        %v1451 = vsub.f32 %v1429, %v1445
        %v1452 = vsub.f32 %v1434, %v1449
        %v1453 = vmul.f32 %v1450, 1.442695
        %v1454 = vpow.pop %v1453
        %v1455 = vmul.f32 %v1451, 1.442695
        %v1456 = vpow.pop %v1455
        %v1457 = vmul.f32 %v1452, 1.442695
        %v1458 = vpow.pop %v1457
        %v1459 = vsel %vm1439, %v1454, 0.0
        %1460 = vadd.xlane.f32.xlu0 %v1459
        %v1461 = vpop.xlane.xlu0 %1460
        %v1462 = vsel %vm1439, %v1456, 0.0
        %1463 = vadd.xlane.f32.xlu0 %v1462
        %v1464 = vpop.xlane.xlu0 %1463
        %v1465 = vsel %vm1446, %v1458, 0.0
        %1466 = vadd.xlane.f32.xlu0 %v1465
        %v1467 = vpop.xlane.xlu0 %1466
        %v1468 = vrcp.pop %v1461
        %v1469 = vrcp.pop %v1464
        %v1470 = vrcp.pop %v1467
        %v1471 = vmul.f32 %v1454, %v1468
        %v1472 = vmul.f32 %v1456, %v1469
        %v1473 = vmul.f32 %v1458, %v1470
        %v1474 = vpack.c.bf16 %v1472, %v1471
        %v1475 = vpack.c.bf16 %v1473, %v1473
        %v1477 = vsel %vm1439, %v1474, 0
        %v1480 = vsel %vm1439, %v1475, 0
        %vm1482 = vcmask 1040384
        %v1483 = vsel 0, 4294967295, 65535
        %v1484 = vsel %vm1482, %v1483, 0
        %v1486 = vand.u32 %v1377, %v1484
        %1488 = vmatprep.subr.bf16.mxu0 0
        %1489 = vmatpush1.bf16.msra.mxu0 %v1376
        %1490 = vmatprep.subr.bf16.mxu0 0
        %1491 = vmatpush1.bf16.msra.mxu0 %v1486
        %1492 = vmatprep.subr.bf16.mxu0 0
        %1493 = vmatpush1.bf16.msra.mxu0 0
        %1494 = vmatprep.subr.bf16.mxu0 0
        %1495 = vmatpush1.bf16.msra.mxu0 0
        %1496 = vmatprep.subr.bf16.mxu0 0
        %1497 = vmatpush1.bf16.msra.mxu0 0
        %1498 = vmatprep.subr.bf16.mxu0 0
        %1499 = vmatpush1.bf16.msra.mxu0 0
        %1500 = vmatprep.subr.bf16.mxu0 0
        %1501 = vmatpush1.bf16.msra.mxu0 0
        %1502 = vmatprep.subr.bf16.mxu0 0
        %1503 = vmatpush1.bf16.msra.mxu0 0
        %1504 = vmatprep.subr.bf16.mxu0 0
        %1505 = vmatpush1.bf16.msra.mxu0 0
        %1506 = vmatprep.subr.bf16.mxu0 0
        %1507 = vmatpush1.bf16.msra.mxu0 0
        %1508 = vmatprep.subr.bf16.mxu0 0
        %1509 = vmatpush1.bf16.msra.mxu0 0
        %1510 = vmatprep.subr.bf16.mxu0 0
        %1511 = vmatpush1.bf16.msra.mxu0 0
        %1512 = vmatprep.subr.bf16.mxu0 0
        %1513 = vmatpush1.bf16.msra.mxu0 0
        %1514 = vmatprep.subr.bf16.mxu0 0
        %1515 = vmatpush1.bf16.msra.mxu0 0
        %1516 = vmatprep.subr.bf16.mxu0 0
        %1517 = vmatpush1.bf16.msra.mxu0 0
        %1518 = vmatprep.subr.bf16.mxu0 0
        %1519 = vmatpush1.bf16.msra.mxu0 0
        %1520 = vmatprep.mubr.bf16.mxu0 0
        %1521 = vmatmul.mubr.bf16.gmra.mrb[0].mxu0 %v1477
        %v1522 = vpop.f32.mrb[0].mxu0
        %v1523 = vadd.f32 0.0, %v1522
        %v1524 = vpop.f32.mrb[0].mxu0
        %v1525 = vpop.f32.mrb[0].mxu0
        %v1526 = vadd.f32 0.0, %v1525
        %v1527 = vpop.f32.mrb[0].mxu0
        %1528 = vmatprep.mubr.bf16.mxu0 0
        %1529 = vmatmul.mubr.bf16.gmra.mrb[0].mxu0 %v1480
        %v1530 = vpop.f32.mrb[0].mxu0
        %v1531 = vadd.f32 0.0, %v1530
        %v1532 = vpop.f32.mrb[0].mxu0
        %v1533 = vpop.f32.mrb[0].mxu0
        %v1534 = vpop.f32.mrb[0].mxu0
        %1535 = vdwg.mxu0
        %1538 = vrot.lane.b32.xlu0 %v1372, 96
        %v1539 = vpop.permute.xlu0 %1538
        %1540 = vrot.lane.b32.xlu0 %v1373, 96
        %v1541 = vpop.permute.xlu0 %1540
        %1544 = vrot.lane.b32.xlu0 %v1374, 96
        %v1545 = vpop.permute.xlu0 %1544
        %1546 = vrot.lane.b32.xlu0 %v1375, 96
        %v1547 = vpop.permute.xlu0 %1546
        %v1549 = vsel %vm1378, %v1539, 0
        %v1552 = vsel %vm1378, %v1541, 0
        %v1555 = vsel %vm1378, %v1545, 0
        %v1558 = vsel %vm1378, %v1547, 0
        %1560 = vmatprep.subr.bf16.mxu0 0
        %1561 = vmatpush1.bf16.xpose.msra.mxu0 %v1555
        %1562 = vmatprep.subr.bf16.mxu0 0
        %1563 = vmatpush1.bf16.xpose.msra.mxu0 %v1558
        %1564 = vmatprep.subr.bf16.mxu0 0
        %1565 = vmatpush1.bf16.xpose.msra.mxu0 0
        %1566 = vmatprep.subr.bf16.mxu0 0
        %1567 = vmatpush1.bf16.xpose.msra.mxu0 0
        %1568 = vmatprep.subr.bf16.mxu0 0
        %1569 = vmatpush1.bf16.xpose.msra.mxu0 0
        %1570 = vmatprep.subr.bf16.mxu0 0
        %1571 = vmatpush1.bf16.xpose.msra.mxu0 0
        %1572 = vmatprep.subr.bf16.mxu0 0
        %1573 = vmatpush1.bf16.xpose.msra.mxu0 0
        %1574 = vmatprep.subr.bf16.mxu0 0
        %1575 = vmatpush1.bf16.xpose.msra.mxu0 0
        %1576 = vmatprep.subr.bf16.mxu0 0
        %1577 = vmatpush1.bf16.xpose.msra.mxu0 0
        %1578 = vmatprep.subr.bf16.mxu0 0
        %1579 = vmatpush1.bf16.xpose.msra.mxu0 0
        %1580 = vmatprep.subr.bf16.mxu0 0
        %1581 = vmatpush1.bf16.xpose.msra.mxu0 0
        %1582 = vmatprep.subr.bf16.mxu0 0
        %1583 = vmatpush1.bf16.xpose.msra.mxu0 0
        %1584 = vmatprep.subr.bf16.mxu0 0
        %1585 = vmatpush1.bf16.xpose.msra.mxu0 0
        %1586 = vmatprep.subr.bf16.mxu0 0
        %1587 = vmatpush1.bf16.xpose.msra.mxu0 0
        %1588 = vmatprep.subr.bf16.mxu0 0
        %1589 = vmatpush1.bf16.xpose.msra.mxu0 0
        %1590 = vmatprep.subr.bf16.mxu0 0
        %1591 = vmatpush1.bf16.xpose.msra.mxu0 0
        %1592 = vmatprep.mubr.bf16.mxu0 0
        %1593 = vmatmul.mubr.bf16.gmra.mrb[0].mxu0 %v1549
        %v1594 = vpop.f32.mrb[0].mxu0
        %v1595 = vadd.f32 0.0, %v1594
        %v1596 = vpop.f32.mrb[0].mxu0
        %v1597 = vpop.f32.mrb[0].mxu0
        %v1598 = vadd.f32 0.0, %v1597
        %v1599 = vpop.f32.mrb[0].mxu0
        %1600 = vmatprep.mubr.bf16.mxu0 0
        %1601 = vmatmul.mubr.bf16.gmra.mrb[0].mxu0 %v1552
        %v1602 = vpop.f32.mrb[0].mxu0
        %v1603 = vadd.f32 0.0, %v1602
        %v1604 = vpop.f32.mrb[0].mxu0
        %v1605 = vpop.f32.mrb[0].mxu0
        %v1606 = vpop.f32.mrb[0].mxu0
        %1607 = vdwg.mxu0
        %v1608 = vsel %vm1439, %v1595, -inf
        %1609 = vmax.xlane.f32.xlu0 %v1608
        %v1610 = vpop.xlane.xlu0 %1609
        %v1611 = vsel %vm1439, %v1598, -inf
        %1612 = vmax.xlane.f32.xlu0 %v1611
        %v1613 = vpop.xlane.xlu0 %1612
        %v1614 = vsel %vm1446, %v1603, -inf
        %1615 = vmax.xlane.f32.xlu0 %v1614
        %v1616 = vpop.xlane.xlu0 %1615
        %v1617 = vsub.f32 %v1595, %v1610
        %v1618 = vsub.f32 %v1598, %v1613
        %v1619 = vsub.f32 %v1603, %v1616
        %v1620 = vmul.f32 %v1617, 1.442695
        %v1621 = vpow.pop %v1620
        %v1622 = vmul.f32 %v1618, 1.442695
        %v1623 = vpow.pop %v1622
        %v1624 = vmul.f32 %v1619, 1.442695
        %v1625 = vpow.pop %v1624
        %v1626 = vsel %vm1439, %v1621, 0.0
        %1627 = vadd.xlane.f32.xlu0 %v1626
        %v1628 = vpop.xlane.xlu0 %1627
        %v1629 = vsel %vm1439, %v1623, 0.0
        %1630 = vadd.xlane.f32.xlu0 %v1629
        %v1631 = vpop.xlane.xlu0 %1630
        %v1632 = vsel %vm1446, %v1625, 0.0
        %1633 = vadd.xlane.f32.xlu0 %v1632
        %v1634 = vpop.xlane.xlu0 %1633
        %v1635 = vrcp.pop %v1628
        %v1636 = vrcp.pop %v1631
        %v1637 = vrcp.pop %v1634
        %v1638 = vmul.f32 %v1621, %v1635
        %v1639 = vmul.f32 %v1623, %v1636
        %v1640 = vmul.f32 %v1625, %v1637
        %v1641 = vpack.c.bf16 %v1639, %v1638
        %v1642 = vpack.c.bf16 %v1640, %v1640
        %1645 = vrot.lane.b32.xlu0 %v1376, 96
        %v1646 = vpop.permute.xlu0 %1645
        %1647 = vrot.lane.b32.xlu0 %v1377, 96
        %v1648 = vpop.permute.xlu0 %1647
        %v1651 = vsel %vm1439, %v1641, 0
        %v1654 = vsel %vm1439, %v1642, 0
        %v1657 = vand.u32 %v1648, %v1484
        %1659 = vmatprep.subr.bf16.mxu0 0
        %1660 = vmatpush1.bf16.msra.mxu0 %v1646
        %1661 = vmatprep.subr.bf16.mxu0 0
        %1662 = vmatpush1.bf16.msra.mxu0 %v1657
        %1663 = vmatprep.subr.bf16.mxu0 0
        %1664 = vmatpush1.bf16.msra.mxu0 0
        %1665 = vmatprep.subr.bf16.mxu0 0
        %1666 = vmatpush1.bf16.msra.mxu0 0
        %1667 = vmatprep.subr.bf16.mxu0 0
        %1668 = vmatpush1.bf16.msra.mxu0 0
        %1669 = vmatprep.subr.bf16.mxu0 0
        %1670 = vmatpush1.bf16.msra.mxu0 0
        %1671 = vmatprep.subr.bf16.mxu0 0
        %1672 = vmatpush1.bf16.msra.mxu0 0
        %1673 = vmatprep.subr.bf16.mxu0 0
        %1674 = vmatpush1.bf16.msra.mxu0 0
        %1675 = vmatprep.subr.bf16.mxu0 0
        %1676 = vmatpush1.bf16.msra.mxu0 0
        %1677 = vmatprep.subr.bf16.mxu0 0
        %1678 = vmatpush1.bf16.msra.mxu0 0
        %1679 = vmatprep.subr.bf16.mxu0 0
        %1680 = vmatpush1.bf16.msra.mxu0 0
        %1681 = vmatprep.subr.bf16.mxu0 0
        %1682 = vmatpush1.bf16.msra.mxu0 0
        %1683 = vmatprep.subr.bf16.mxu0 0
        %1684 = vmatpush1.bf16.msra.mxu0 0
        %1685 = vmatprep.subr.bf16.mxu0 0
        %1686 = vmatpush1.bf16.msra.mxu0 0
        %1687 = vmatprep.subr.bf16.mxu0 0
        %1688 = vmatpush1.bf16.msra.mxu0 0
        %1689 = vmatprep.subr.bf16.mxu0 0
        %1690 = vmatpush1.bf16.msra.mxu0 0
        %1691 = vmatprep.mubr.bf16.mxu0 0
        %1692 = vmatmul.mubr.bf16.gmra.mrb[0].mxu0 %v1651
        %v1693 = vpop.f32.mrb[0].mxu0
        %v1694 = vadd.f32 0.0, %v1693
        %v1695 = vpop.f32.mrb[0].mxu0
        %v1696 = vpop.f32.mrb[0].mxu0
        %v1697 = vadd.f32 0.0, %v1696
        %v1698 = vpop.f32.mrb[0].mxu0
        %1699 = vmatprep.mubr.bf16.mxu0 0
        %1700 = vmatmul.mubr.bf16.gmra.mrb[0].mxu0 %v1654
        %v1701 = vpop.f32.mrb[0].mxu0
        %v1702 = vadd.f32 0.0, %v1701
        %v1703 = vpop.f32.mrb[0].mxu0
        %v1704 = vpop.f32.mrb[0].mxu0
        %v1705 = vpop.f32.mrb[0].mxu0
        %1706 = vdwg.mxu0
        %1707 = vrot.lane.b32.xlu0 %v1372, 64
        %v1708 = vpop.permute.xlu0 %1707
        %1709 = vrot.lane.b32.xlu0 %v1373, 64
        %v1710 = vpop.permute.xlu0 %1709
        %1711 = vrot.lane.b32.xlu0 %v1374, 64
        %v1712 = vpop.permute.xlu0 %1711
        %1713 = vrot.lane.b32.xlu0 %v1375, 64
        %v1714 = vpop.permute.xlu0 %1713
        %v1716 = vsel %vm1378, %v1708, 0
        %v1719 = vsel %vm1378, %v1710, 0
        %v1722 = vsel %vm1378, %v1712, 0
        %v1725 = vsel %vm1378, %v1714, 0
        %1727 = vmatprep.subr.bf16.mxu0 0
        %1728 = vmatpush1.bf16.xpose.msra.mxu0 %v1722
        %1729 = vmatprep.subr.bf16.mxu0 0
        %1730 = vmatpush1.bf16.xpose.msra.mxu0 %v1725
        %1731 = vmatprep.subr.bf16.mxu0 0
        %1732 = vmatpush1.bf16.xpose.msra.mxu0 0
        %1733 = vmatprep.subr.bf16.mxu0 0
        %1734 = vmatpush1.bf16.xpose.msra.mxu0 0
        %1735 = vmatprep.subr.bf16.mxu0 0
        %1736 = vmatpush1.bf16.xpose.msra.mxu0 0
        %1737 = vmatprep.subr.bf16.mxu0 0
        %1738 = vmatpush1.bf16.xpose.msra.mxu0 0
        %1739 = vmatprep.subr.bf16.mxu0 0
        %1740 = vmatpush1.bf16.xpose.msra.mxu0 0
        %1741 = vmatprep.subr.bf16.mxu0 0
        %1742 = vmatpush1.bf16.xpose.msra.mxu0 0
        %1743 = vmatprep.subr.bf16.mxu0 0
        %1744 = vmatpush1.bf16.xpose.msra.mxu0 0
        %1745 = vmatprep.subr.bf16.mxu0 0
        %1746 = vmatpush1.bf16.xpose.msra.mxu0 0
        %1747 = vmatprep.subr.bf16.mxu0 0
        %1748 = vmatpush1.bf16.xpose.msra.mxu0 0
        %1749 = vmatprep.subr.bf16.mxu0 0
        %1750 = vmatpush1.bf16.xpose.msra.mxu0 0
        %1751 = vmatprep.subr.bf16.mxu0 0
        %1752 = vmatpush1.bf16.xpose.msra.mxu0 0
        %1753 = vmatprep.subr.bf16.mxu0 0
        %1754 = vmatpush1.bf16.xpose.msra.mxu0 0
        %1755 = vmatprep.subr.bf16.mxu0 0
        %1756 = vmatpush1.bf16.xpose.msra.mxu0 0
        %1757 = vmatprep.subr.bf16.mxu0 0
        %1758 = vmatpush1.bf16.xpose.msra.mxu0 0
        %1759 = vmatprep.mubr.bf16.mxu0 0
        %1760 = vmatmul.mubr.bf16.gmra.mrb[0].mxu0 %v1716
        %v1761 = vpop.f32.mrb[0].mxu0
        %v1762 = vadd.f32 0.0, %v1761
        %v1763 = vpop.f32.mrb[0].mxu0
        %v1764 = vpop.f32.mrb[0].mxu0
        %v1765 = vadd.f32 0.0, %v1764
        %v1766 = vpop.f32.mrb[0].mxu0
        %1767 = vmatprep.mubr.bf16.mxu0 0
        %1768 = vmatmul.mubr.bf16.gmra.mrb[0].mxu0 %v1719
        %v1769 = vpop.f32.mrb[0].mxu0
        %v1770 = vadd.f32 0.0, %v1769
        %v1771 = vpop.f32.mrb[0].mxu0
        %v1772 = vpop.f32.mrb[0].mxu0
        %v1773 = vpop.f32.mrb[0].mxu0
        %1774 = vdwg.mxu0
        %v1775 = vsel %vm1439, %v1762, -inf
        %1776 = vmax.xlane.f32.xlu0 %v1775
        %v1777 = vpop.xlane.xlu0 %1776
        %v1778 = vsel %vm1439, %v1765, -inf
        %1779 = vmax.xlane.f32.xlu0 %v1778
        %v1780 = vpop.xlane.xlu0 %1779
        %v1781 = vsel %vm1446, %v1770, -inf
        %1782 = vmax.xlane.f32.xlu0 %v1781
        %v1783 = vpop.xlane.xlu0 %1782
        %v1784 = vsub.f32 %v1762, %v1777
        %v1785 = vsub.f32 %v1765, %v1780
        %v1786 = vsub.f32 %v1770, %v1783
        %v1787 = vmul.f32 %v1784, 1.442695
        %v1788 = vpow.pop %v1787
        %v1789 = vmul.f32 %v1785, 1.442695
        %v1790 = vpow.pop %v1789
        %v1791 = vmul.f32 %v1786, 1.442695
        %v1792 = vpow.pop %v1791
        %v1793 = vsel %vm1439, %v1788, 0.0
        %1794 = vadd.xlane.f32.xlu0 %v1793
        %v1795 = vpop.xlane.xlu0 %1794
        %v1796 = vsel %vm1439, %v1790, 0.0
        %1797 = vadd.xlane.f32.xlu0 %v1796
        %v1798 = vpop.xlane.xlu0 %1797
        %v1799 = vsel %vm1446, %v1792, 0.0
        %1800 = vadd.xlane.f32.xlu0 %v1799
        %v1801 = vpop.xlane.xlu0 %1800
        %v1802 = vrcp.pop %v1795
        %v1803 = vrcp.pop %v1798
        %v1804 = vrcp.pop %v1801
        %v1805 = vmul.f32 %v1788, %v1802
        %v1806 = vmul.f32 %v1790, %v1803
        %v1807 = vmul.f32 %v1792, %v1804
        %v1808 = vpack.c.bf16 %v1806, %v1805
        %v1809 = vpack.c.bf16 %v1807, %v1807
        %1810 = vrot.lane.b32.xlu0 %v1376, 64
        %v1811 = vpop.permute.xlu0 %1810
        %1812 = vrot.lane.b32.xlu0 %v1377, 64
        %v1813 = vpop.permute.xlu0 %1812
        %v1816 = vsel %vm1439, %v1808, 0
        %v1819 = vsel %vm1439, %v1809, 0
        %v1822 = vand.u32 %v1813, %v1484
        %1824 = vmatprep.subr.bf16.mxu0 0
        %1825 = vmatpush1.bf16.msra.mxu0 %v1811
        %1826 = vmatprep.subr.bf16.mxu0 0
        %1827 = vmatpush1.bf16.msra.mxu0 %v1822
        %1828 = vmatprep.subr.bf16.mxu0 0
        %1829 = vmatpush1.bf16.msra.mxu0 0
        %1830 = vmatprep.subr.bf16.mxu0 0
        %1831 = vmatpush1.bf16.msra.mxu0 0
        %1832 = vmatprep.subr.bf16.mxu0 0
        %1833 = vmatpush1.bf16.msra.mxu0 0
        %1834 = vmatprep.subr.bf16.mxu0 0
        %1835 = vmatpush1.bf16.msra.mxu0 0
        %1836 = vmatprep.subr.bf16.mxu0 0
        %1837 = vmatpush1.bf16.msra.mxu0 0
        %1838 = vmatprep.subr.bf16.mxu0 0
        %1839 = vmatpush1.bf16.msra.mxu0 0
        %1840 = vmatprep.subr.bf16.mxu0 0
        %1841 = vmatpush1.bf16.msra.mxu0 0
        %1842 = vmatprep.subr.bf16.mxu0 0
        %1843 = vmatpush1.bf16.msra.mxu0 0
        %1844 = vmatprep.subr.bf16.mxu0 0
        %1845 = vmatpush1.bf16.msra.mxu0 0
        %1846 = vmatprep.subr.bf16.mxu0 0
        %1847 = vmatpush1.bf16.msra.mxu0 0
        %1848 = vmatprep.subr.bf16.mxu0 0
        %1849 = vmatpush1.bf16.msra.mxu0 0
        %1850 = vmatprep.subr.bf16.mxu0 0
        %1851 = vmatpush1.bf16.msra.mxu0 0
        %1852 = vmatprep.subr.bf16.mxu0 0
        %1853 = vmatpush1.bf16.msra.mxu0 0
        %1854 = vmatprep.subr.bf16.mxu0 0
        %1855 = vmatpush1.bf16.msra.mxu0 0
        %1856 = vmatprep.mubr.bf16.mxu0 0
        %1857 = vmatmul.mubr.bf16.gmra.mrb[0].mxu0 %v1816
        %v1858 = vpop.f32.mrb[0].mxu0
        %v1859 = vadd.f32 0.0, %v1858
        %v1860 = vpop.f32.mrb[0].mxu0
        %v1861 = vpop.f32.mrb[0].mxu0
        %v1862 = vadd.f32 0.0, %v1861
        %v1863 = vpop.f32.mrb[0].mxu0
        %1864 = vmatprep.mubr.bf16.mxu0 0
        %1865 = vmatmul.mubr.bf16.gmra.mrb[0].mxu0 %v1819
        %v1866 = vpop.f32.mrb[0].mxu0
        %v1867 = vadd.f32 0.0, %v1866
        %v1868 = vpop.f32.mrb[0].mxu0
        %v1869 = vpop.f32.mrb[0].mxu0
        %v1870 = vpop.f32.mrb[0].mxu0
        %1871 = vdwg.mxu0
        %1872 = vrot.lane.b32.xlu0 %v1372, 32
        %v1873 = vpop.permute.xlu0 %1872
        %1874 = vrot.lane.b32.xlu0 %v1373, 32
        %v1875 = vpop.permute.xlu0 %1874
        %1876 = vrot.lane.b32.xlu0 %v1374, 32
        %v1877 = vpop.permute.xlu0 %1876
        %1878 = vrot.lane.b32.xlu0 %v1375, 32
        %v1879 = vpop.permute.xlu0 %1878
        %v1881 = vsel %vm1378, %v1873, 0
        %v1884 = vsel %vm1378, %v1875, 0
        %v1887 = vsel %vm1378, %v1877, 0
        %v1890 = vsel %vm1378, %v1879, 0
        %1892 = vmatprep.subr.bf16.mxu0 0
        %1893 = vmatpush1.bf16.xpose.msra.mxu0 %v1887
        %1894 = vmatprep.subr.bf16.mxu0 0
        %1895 = vmatpush1.bf16.xpose.msra.mxu0 %v1890
        %1896 = vmatprep.subr.bf16.mxu0 0
        %1897 = vmatpush1.bf16.xpose.msra.mxu0 0
        %1898 = vmatprep.subr.bf16.mxu0 0
        %1899 = vmatpush1.bf16.xpose.msra.mxu0 0
        %1900 = vmatprep.subr.bf16.mxu0 0
        %1901 = vmatpush1.bf16.xpose.msra.mxu0 0
        %1902 = vmatprep.subr.bf16.mxu0 0
        %1903 = vmatpush1.bf16.xpose.msra.mxu0 0
        %1904 = vmatprep.subr.bf16.mxu0 0
        %1905 = vmatpush1.bf16.xpose.msra.mxu0 0
        %1906 = vmatprep.subr.bf16.mxu0 0
        %1907 = vmatpush1.bf16.xpose.msra.mxu0 0
        %1908 = vmatprep.subr.bf16.mxu0 0
        %1909 = vmatpush1.bf16.xpose.msra.mxu0 0
        %1910 = vmatprep.subr.bf16.mxu0 0
        %1911 = vmatpush1.bf16.xpose.msra.mxu0 0
        %1912 = vmatprep.subr.bf16.mxu0 0
        %1913 = vmatpush1.bf16.xpose.msra.mxu0 0
        %1914 = vmatprep.subr.bf16.mxu0 0
        %1915 = vmatpush1.bf16.xpose.msra.mxu0 0
        %1916 = vmatprep.subr.bf16.mxu0 0
        %1917 = vmatpush1.bf16.xpose.msra.mxu0 0
        %1918 = vmatprep.subr.bf16.mxu0 0
        %1919 = vmatpush1.bf16.xpose.msra.mxu0 0
        %1920 = vmatprep.subr.bf16.mxu0 0
        %1921 = vmatpush1.bf16.xpose.msra.mxu0 0
        %1922 = vmatprep.subr.bf16.mxu0 0
        %1923 = vmatpush1.bf16.xpose.msra.mxu0 0
        %1924 = vmatprep.mubr.bf16.mxu0 0
        %1925 = vmatmul.mubr.bf16.gmra.mrb[0].mxu0 %v1881
        %v1926 = vpop.f32.mrb[0].mxu0
        %v1927 = vadd.f32 0.0, %v1926
        %v1928 = vpop.f32.mrb[0].mxu0
        %v1929 = vpop.f32.mrb[0].mxu0
        %v1930 = vadd.f32 0.0, %v1929
        %v1931 = vpop.f32.mrb[0].mxu0
        %1932 = vmatprep.mubr.bf16.mxu0 0
        %1933 = vmatmul.mubr.bf16.gmra.mrb[0].mxu0 %v1884
        %v1934 = vpop.f32.mrb[0].mxu0
        %v1935 = vadd.f32 0.0, %v1934
        %v1936 = vpop.f32.mrb[0].mxu0
        %v1937 = vpop.f32.mrb[0].mxu0
        %v1938 = vpop.f32.mrb[0].mxu0
        %1939 = vdwg.mxu0
        %v1940 = vsel %vm1439, %v1927, -inf
        %1941 = vmax.xlane.f32.xlu0 %v1940
        %v1942 = vpop.xlane.xlu0 %1941
        %v1943 = vsel %vm1439, %v1930, -inf
        %1944 = vmax.xlane.f32.xlu0 %v1943
        %v1945 = vpop.xlane.xlu0 %1944
        %v1946 = vsel %vm1446, %v1935, -inf
        %1947 = vmax.xlane.f32.xlu0 %v1946
        %v1948 = vpop.xlane.xlu0 %1947
        %v1949 = vsub.f32 %v1927, %v1942
        %v1950 = vsub.f32 %v1930, %v1945
        %v1951 = vsub.f32 %v1935, %v1948
        %v1952 = vmul.f32 %v1949, 1.442695
        %v1953 = vpow.pop %v1952
        %v1954 = vmul.f32 %v1950, 1.442695
        %v1955 = vpow.pop %v1954
        %v1956 = vmul.f32 %v1951, 1.442695
        %v1957 = vpow.pop %v1956
        %v1958 = vsel %vm1439, %v1953, 0.0
        %1959 = vadd.xlane.f32.xlu0 %v1958
        %v1960 = vpop.xlane.xlu0 %1959
        %v1961 = vsel %vm1439, %v1955, 0.0
        %1962 = vadd.xlane.f32.xlu0 %v1961
        %v1963 = vpop.xlane.xlu0 %1962
        %v1964 = vsel %vm1446, %v1957, 0.0
        %1965 = vadd.xlane.f32.xlu0 %v1964
        %v1966 = vpop.xlane.xlu0 %1965
        %v1967 = vrcp.pop %v1960
        %v1968 = vrcp.pop %v1963
        %v1969 = vrcp.pop %v1966
        %v1970 = vmul.f32 %v1953, %v1967
        %v1971 = vmul.f32 %v1955, %v1968
        %v1972 = vmul.f32 %v1957, %v1969
        %v1973 = vpack.c.bf16 %v1971, %v1970
        %v1974 = vpack.c.bf16 %v1972, %v1972
        %1975 = vrot.lane.b32.xlu0 %v1376, 32
        %v1976 = vpop.permute.xlu0 %1975
        %1977 = vrot.lane.b32.xlu0 %v1377, 32
        %v1978 = vpop.permute.xlu0 %1977
        %v1981 = vsel %vm1439, %v1973, 0
        %v1984 = vsel %vm1439, %v1974, 0
        %v1987 = vand.u32 %v1978, %v1484
        %1989 = vmatprep.subr.bf16.mxu0 0
        %1990 = vmatpush1.bf16.msra.mxu0 %v1976
        %1991 = vmatprep.subr.bf16.mxu0 0
        %1992 = vmatpush1.bf16.msra.mxu0 %v1987
        %1993 = vmatprep.subr.bf16.mxu0 0
        %1994 = vmatpush1.bf16.msra.mxu0 0
        %1995 = vmatprep.subr.bf16.mxu0 0
        %1996 = vmatpush1.bf16.msra.mxu0 0
        %1997 = vmatprep.subr.bf16.mxu0 0
        %1998 = vmatpush1.bf16.msra.mxu0 0
        %1999 = vmatprep.subr.bf16.mxu0 0
        %2000 = vmatpush1.bf16.msra.mxu0 0
        %2001 = vmatprep.subr.bf16.mxu0 0
        %2002 = vmatpush1.bf16.msra.mxu0 0
        %2003 = vmatprep.subr.bf16.mxu0 0
        %2004 = vmatpush1.bf16.msra.mxu0 0
        %2005 = vmatprep.subr.bf16.mxu0 0
        %2006 = vmatpush1.bf16.msra.mxu0 0
        %2007 = vmatprep.subr.bf16.mxu0 0
        %2008 = vmatpush1.bf16.msra.mxu0 0
        %2009 = vmatprep.subr.bf16.mxu0 0
        %2010 = vmatpush1.bf16.msra.mxu0 0
        %2011 = vmatprep.subr.bf16.mxu0 0
        %2012 = vmatpush1.bf16.msra.mxu0 0
        %2013 = vmatprep.subr.bf16.mxu0 0
        %2014 = vmatpush1.bf16.msra.mxu0 0
        %2015 = vmatprep.subr.bf16.mxu0 0
        %2016 = vmatpush1.bf16.msra.mxu0 0
        %2017 = vmatprep.subr.bf16.mxu0 0
        %2018 = vmatpush1.bf16.msra.mxu0 0
        %2019 = vmatprep.subr.bf16.mxu0 0
        %2020 = vmatpush1.bf16.msra.mxu0 0
        %2021 = vmatprep.mubr.bf16.mxu0 0
        %2022 = vmatmul.mubr.bf16.gmra.mrb[0].mxu0 %v1981
        %v2023 = vpop.f32.mrb[0].mxu0
        %v2024 = vadd.f32 0.0, %v2023
        %v2025 = vpop.f32.mrb[0].mxu0
        %v2026 = vpop.f32.mrb[0].mxu0
        %v2027 = vadd.f32 0.0, %v2026
        %v2028 = vpop.f32.mrb[0].mxu0
        %2029 = vmatprep.mubr.bf16.mxu0 0
        %2030 = vmatmul.mubr.bf16.gmra.mrb[0].mxu0 %v1984
        %v2031 = vpop.f32.mrb[0].mxu0
        %v2032 = vadd.f32 0.0, %v2031
        %v2033 = vpop.f32.mrb[0].mxu0
        %v2034 = vpop.f32.mrb[0].mxu0
        %v2035 = vpop.f32.mrb[0].mxu0
        %2036 = vdwg.mxu0
        %2040 = vrot.lane.b32.xlu0 %v1694, 32
        %v2041 = vpop.permute.xlu0 %2040
        %2042 = vrot.lane.b32.xlu0 %v1697, 32
        %v2043 = vpop.permute.xlu0 %2042
        %2044 = vrot.lane.b32.xlu0 %v1702, 32
        %v2045 = vpop.permute.xlu0 %2044
        %2052 = vrot.lane.b32.xlu0 %v1859, 64
        %v2053 = vpop.permute.xlu0 %2052
        %2054 = vrot.lane.b32.xlu0 %v1862, 64
        %v2055 = vpop.permute.xlu0 %2054
        %2056 = vrot.lane.b32.xlu0 %v1867, 64
        %v2057 = vpop.permute.xlu0 %2056
        %2064 = vrot.lane.b32.xlu0 %v2024, 96
        %v2065 = vpop.permute.xlu0 %2064
        %2066 = vrot.lane.b32.xlu0 %v2027, 96
        %v2067 = vpop.permute.xlu0 %2066
        %2068 = vrot.lane.b32.xlu0 %v2032, 96
        %v2069 = vpop.permute.xlu0 %2068
        %v2073 = vsel %vm1378, %v1523, %v2041
        %v2074 = vsel %vm1378, %v1526, %v2043
        %v2075 = vsel %vm1378, %v1531, %v2045
        %vm2076 = vcmask 523264
        %v2077 = vsel %vm2076, %v2073, %v2053
        %v2078 = vsel %vm2076, %v2074, %v2055
        %v2079 = vsel %vm2076, %v2075, %v2057
        %vm2080 = vcmask 785408
        %v2081 = vsel %vm2080, %v2077, %v2065
        %v2082 = vsel %vm2080, %v2078, %v2067
        %v2083 = vsel %vm2080, %v2079, %v2069
        %v2084 = vpack.c.bf16 %v2082, %v2081
        %v2085 = vpack.c.bf16 %v2083, %v2083
        %v2086 = vld [vmem:[%s4] sm:$0xf]
        %v2087 = vld [vmem:[%s4 + $0x4] sm:$0xf]
        %v2088 = vld [vmem:[%s4 + $0x8] sm:$0xf]
        %v2089 = vld [vmem:[%s4 + $0xc] sm:$0xf]
        %v2090 = vld [vmem:[%s4 + $0x10] sm:$0xf]
        %v2091 = vld [vmem:[%s4 + $0x14] sm:$0xf]
        %v2092 = vld [vmem:[%s4 + $0x18] sm:$0xf]
        %v2093 = vld [vmem:[%s4 + $0x1c] sm:$0xf]
        %v2094 = vld [vmem:[%s4 + $0x20] sm:$0xf]
        %v2095 = vld [vmem:[%s4 + $0x24] sm:$0xf]
        %v2096 = vld [vmem:[%s4 + $0x28] sm:$0xf]
        %v2097 = vld [vmem:[%s4 + $0x2c] sm:$0xf]
        %v2098 = vld [vmem:[%s4 + $0x30] sm:$0xf]
        %v2099 = vld [vmem:[%s4 + $0x34] sm:$0xf]
        %v2100 = vld [vmem:[%s4 + $0x38] sm:$0xf]
        %v2101 = vld [vmem:[%s4 + $0x3c] sm:$0xf]
        %v2102 = vld [vmem:[%s5] sm:$0x1]
        %v2104 = vlaneseq
        %v2105 = vshrl.u32 %v2104, 7
        %v2106 = vsub.s32 0, %v2105
        %v2107 = vrot.slane %v2102, %v2106
        %v2125 = vunpack.c.l.b16 %v2086
        %v2126 = vunpack.c.l.b16 %v2087
        %v2127 = vunpack.c.l.b16 %v2088
        %v2128 = vunpack.c.l.b16 %v2089
        %v2129 = vunpack.c.l.b16 %v2090
        %v2130 = vunpack.c.l.b16 %v2091
        %v2131 = vunpack.c.l.b16 %v2092
        %v2132 = vunpack.c.l.b16 %v2093
        %v2133 = vunpack.c.l.b16 %v2094
        %v2134 = vunpack.c.l.b16 %v2095
        %v2135 = vunpack.c.l.b16 %v2096
        %v2136 = vunpack.c.l.b16 %v2097
        %v2137 = vunpack.c.l.b16 %v2098
        %v2138 = vunpack.c.l.b16 %v2099
        %v2139 = vunpack.c.l.b16 %v2100
        %v2140 = vunpack.c.l.b16 %v2101
        %v2141 = vpack.c.b16 %v2126, %v2125
        %v2142 = vpack.c.b16 %v2128, %v2127
        %v2143 = vpack.c.b16 %v2130, %v2129
        %v2144 = vpack.c.b16 %v2132, %v2131
        %v2145 = vpack.c.b16 %v2134, %v2133
        %v2146 = vpack.c.b16 %v2136, %v2135
        %v2147 = vpack.c.b16 %v2138, %v2137
        %v2148 = vpack.c.b16 %v2140, %v2139
        %2157 = vmatprep.subr.bf16.mxu0 0
        %2158 = vmatpush1.bf16.msra.mxu0 %v2141
        %2159 = vmatprep.subr.bf16.mxu0 0
        %2160 = vmatpush1.bf16.msra.mxu0 %v2142
        %2161 = vmatprep.subr.bf16.mxu0 0
        %2162 = vmatpush1.bf16.msra.mxu0 %v2143
        %2163 = vmatprep.subr.bf16.mxu0 0
        %2164 = vmatpush1.bf16.msra.mxu0 %v2144
        %2165 = vmatprep.subr.bf16.mxu0 0
        %2166 = vmatpush1.bf16.msra.mxu0 %v2145
        %2167 = vmatprep.subr.bf16.mxu0 0
        %2168 = vmatpush1.bf16.msra.mxu0 %v2146
        %2169 = vmatprep.subr.bf16.mxu0 0
        %2170 = vmatpush1.bf16.msra.mxu0 %v2147
        %2171 = vmatprep.subr.bf16.mxu0 0
        %2172 = vmatpush1.bf16.msra.mxu0 %v2148
        %2173 = vmatprep.subr.bf16.mxu0 0
        %2174 = vmatpush1.bf16.msra.mxu0 0
        %2175 = vmatprep.subr.bf16.mxu0 0
        %2176 = vmatpush1.bf16.msra.mxu0 0
        %2177 = vmatprep.subr.bf16.mxu0 0
        %2178 = vmatpush1.bf16.msra.mxu0 0
        %2179 = vmatprep.subr.bf16.mxu0 0
        %2180 = vmatpush1.bf16.msra.mxu0 0
        %2181 = vmatprep.subr.bf16.mxu0 0
        %2182 = vmatpush1.bf16.msra.mxu0 0
        %2183 = vmatprep.subr.bf16.mxu0 0
        %2184 = vmatpush1.bf16.msra.mxu0 0
        %2185 = vmatprep.subr.bf16.mxu0 0
        %2186 = vmatpush1.bf16.msra.mxu0 0
        %2187 = vmatprep.subr.bf16.mxu0 0
        %2188 = vmatpush1.bf16.msra.mxu0 0
        %2189 = vmatprep.mubr.bf16.mxu0 0
        %2190 = vmatmul.mubr.bf16.gmra.mrb[0].mxu0 %v2084
        %v2191 = vpop.f32.mrb[0].mxu0
        %v2192 = vadd.f32 %v2107, %v2191
        %v2193 = vpop.f32.mrb[0].mxu0
        %v2194 = vpop.f32.mrb[0].mxu0
        %v2195 = vadd.f32 %v2107, %v2194
        %v2196 = vpop.f32.mrb[0].mxu0
        %2197 = vmatprep.mubr.bf16.mxu0 0
        %2198 = vmatmul.mubr.bf16.gmra.mrb[0].mxu0 %v2085
        %v2199 = vpop.f32.mrb[0].mxu0
        %v2200 = vadd.f32 %v2107, %v2199
        %v2201 = vpop.f32.mrb[0].mxu0
        %v2202 = vpop.f32.mrb[0].mxu0
        %v2203 = vpop.f32.mrb[0].mxu0
        %2204 = vdwg.mxu0
        %v2205 = vadd.f32 %v2192, %v1098
        %v2206 = vadd.f32 %v2195, %v1101
        %v2207 = vadd.f32 %v2200, %v1106
        %v2208 = vld [vmem:[%s6] sm:$0x1]
        %v2209 = vld [vmem:[%s7] sm:$0x1]
        %2210 = vadd.xlane.f32.xlu0 %v2205
        %v2211 = vpop.xlane.xlu0 %2210
        %2212 = vadd.xlane.f32.xlu0 %v2206
        %v2213 = vpop.xlane.xlu0 %2212
        %v2214 = vsel %vm1482, %v2207, 0.0
        %2215 = vadd.xlane.f32.xlu0 %v2214
        %v2216 = vpop.xlane.xlu0 %2215
        %v2217 = vrcp.pop 128.0
        %v2218 = vmul.f32 %v2211, %v2217
        %v2219 = vmul.f32 %v2213, %v2217
        %v2220 = vmul.f32 %v2216, %v2217
        %v2221 = vsub.f32 %v2205, %v2218
        %v2222 = vsub.f32 %v2206, %v2219
        %v2223 = vsub.f32 %v2207, %v2220
        %v2224 = vmul.f32 %v2221, %v2221
        %v2225 = vmul.f32 %v2222, %v2222
        %v2226 = vmul.f32 %v2223, %v2223
        %2227 = vadd.xlane.f32.xlu0 %v2224
        %v2228 = vpop.xlane.xlu0 %2227
        %2229 = vadd.xlane.f32.xlu0 %v2225
        %v2230 = vpop.xlane.xlu0 %2229
        %v2231 = vsel %vm1482, %v2226, 0.0
        %2232 = vadd.xlane.f32.xlu0 %v2231
        %v2233 = vpop.xlane.xlu0 %2232
        %v2234 = vmul.f32 %v2228, %v2217
        %v2235 = vmul.f32 %v2230, %v2217
        %v2236 = vmul.f32 %v2233, %v2217
        %v2237 = vadd.f32 %v2234, 1e-05
        %v2238 = vadd.f32 %v2235, 1e-05
        %v2239 = vadd.f32 %v2236, 1e-05
        %v2240 = vrsqrt.pop %v2237
        %v2241 = vrsqrt.pop %v2238
        %v2242 = vrsqrt.pop %v2239
        %v2243 = vmul.f32 %v2221, %v2240
        %v2244 = vmul.f32 %v2222, %v2241
        %v2245 = vmul.f32 %v2223, %v2242
        %v2247 = vlaneseq
        %v2248 = vshrl.u32 %v2247, 7
        %v2249 = vsub.s32 0, %v2248
        %v2250 = vrot.slane %v2208, %v2249
        %v2252 = vmul.f32 %v2243, %v2250
        %v2253 = vmul.f32 %v2244, %v2250
        %v2254 = vmul.f32 %v2245, %v2250
        %v2256 = vlaneseq
        %v2257 = vshrl.u32 %v2256, 7
        %v2258 = vsub.s32 0, %v2257
        %v2259 = vrot.slane %v2209, %v2258
        %v2261 = vadd.f32 %v2252, %v2259
        %v2262 = vadd.f32 %v2253, %v2259
        %v2263 = vadd.f32 %v2254, %v2259
        %v2264 = vpack.c.bf16 %v2262, %v2261
        %v2265 = vpack.c.bf16 %v2263, %v2263
        %v2266 = vld [vmem:[%s8] sm:$0xff]
        %v2267 = vld [vmem:[%s8 + $0x8] sm:$0xff]
        %v2268 = vld [vmem:[%s8 + $0x10] sm:$0xff]
        %v2269 = vld [vmem:[%s8 + $0x18] sm:$0xff]
        %v2270 = vld [vmem:[%s8 + $0x20] sm:$0xff]
        %v2271 = vld [vmem:[%s8 + $0x28] sm:$0xff]
        %v2272 = vld [vmem:[%s8 + $0x30] sm:$0xff]
        %v2273 = vld [vmem:[%s8 + $0x38] sm:$0xff]
        %v2274 = vld [vmem:[%s8 + $0x40] sm:$0xff]
        %v2275 = vld [vmem:[%s8 + $0x48] sm:$0xff]
        %v2276 = vld [vmem:[%s8 + $0x50] sm:$0xff]
        %v2277 = vld [vmem:[%s8 + $0x58] sm:$0xff]
        %v2278 = vld [vmem:[%s8 + $0x60] sm:$0xff]
        %v2279 = vld [vmem:[%s8 + $0x68] sm:$0xff]
        %v2280 = vld [vmem:[%s8 + $0x70] sm:$0xff]
        %v2281 = vld [vmem:[%s8 + $0x78] sm:$0xff]
        %v2282 = vld [vmem:[%s8 + $0x80] sm:$0xff]
        %v2283 = vld [vmem:[%s8 + $0x88] sm:$0xff]
        %v2284 = vld [vmem:[%s8 + $0x90] sm:$0xff]
        %v2285 = vld [vmem:[%s8 + $0x98] sm:$0xff]
        %v2286 = vld [vmem:[%s8 + $0xa0] sm:$0xff]
        %v2287 = vld [vmem:[%s8 + $0xa8] sm:$0xff]
        %v2288 = vld [vmem:[%s8 + $0xb0] sm:$0xff]
        %v2289 = vld [vmem:[%s8 + $0xb8] sm:$0xff]
        %v2290 = vld [vmem:[%s8 + $0xc0] sm:$0xff]
        %v2291 = vld [vmem:[%s8 + $0xc8] sm:$0xff]
        %v2292 = vld [vmem:[%s8 + $0xd0] sm:$0xff]
        %v2293 = vld [vmem:[%s8 + $0xd8] sm:$0xff]
        %v2294 = vld [vmem:[%s8 + $0xe0] sm:$0xff]
        %v2295 = vld [vmem:[%s8 + $0xe8] sm:$0xff]
        %v2296 = vld [vmem:[%s8 + $0xf0] sm:$0xff]
        %v2297 = vld [vmem:[%s8 + $0xf8] sm:$0xff]
        %v2298 = vld [vmem:[%s9] sm:$0xf]
        %v2300 = vlaneseq
        %v2301 = vshrl.u32 %v2300, 7
        %v2302 = vsub.s32 0, %v2301
        %v2303 = vrot.slane %v2298, %v2302
        %v2304 = vlaneseq
        %v2305 = vshrl.u32 %v2304, 7
        %v2306 = vsub.s32 1, %v2305
        %v2307 = vrot.slane %v2298, %v2306
        %v2308 = vlaneseq
        %v2309 = vshrl.u32 %v2308, 7
        %v2310 = vsub.s32 2, %v2309
        %v2311 = vrot.slane %v2298, %v2310
        %v2312 = vlaneseq
        %v2313 = vshrl.u32 %v2312, 7
        %v2314 = vsub.s32 3, %v2313
        %v2315 = vrot.slane %v2298, %v2314
        %v2352 = vunpack.c.l.b16 %v2266
        %v2353 = vunpack.c.h.b16 %v2266
        %v2354 = vunpack.c.l.b16 %v2267
        %v2355 = vunpack.c.h.b16 %v2267
        %v2356 = vunpack.c.l.b16 %v2268
        %v2357 = vunpack.c.h.b16 %v2268
        %v2358 = vunpack.c.l.b16 %v2269
        %v2359 = vunpack.c.h.b16 %v2269
        %v2360 = vunpack.c.l.b16 %v2270
        %v2361 = vunpack.c.h.b16 %v2270
        %v2362 = vunpack.c.l.b16 %v2271
        %v2363 = vunpack.c.h.b16 %v2271
        %v2364 = vunpack.c.l.b16 %v2272
        %v2365 = vunpack.c.h.b16 %v2272
        %v2366 = vunpack.c.l.b16 %v2273
        %v2367 = vunpack.c.h.b16 %v2273
        %v2368 = vunpack.c.l.b16 %v2274
        %v2369 = vunpack.c.h.b16 %v2274
        %v2370 = vunpack.c.l.b16 %v2275
        %v2371 = vunpack.c.h.b16 %v2275
        %v2372 = vunpack.c.l.b16 %v2276
        %v2373 = vunpack.c.h.b16 %v2276
        %v2374 = vunpack.c.l.b16 %v2277
        %v2375 = vunpack.c.h.b16 %v2277
        %v2376 = vunpack.c.l.b16 %v2278
        %v2377 = vunpack.c.h.b16 %v2278
        %v2378 = vunpack.c.l.b16 %v2279
        %v2379 = vunpack.c.h.b16 %v2279
        %v2380 = vunpack.c.l.b16 %v2280
        %v2381 = vunpack.c.h.b16 %v2280
        %v2382 = vunpack.c.l.b16 %v2281
        %v2383 = vunpack.c.h.b16 %v2281
        %v2384 = vunpack.c.l.b16 %v2282
        %v2385 = vunpack.c.h.b16 %v2282
        %v2386 = vunpack.c.l.b16 %v2283
        %v2387 = vunpack.c.h.b16 %v2283
        %v2388 = vunpack.c.l.b16 %v2284
        %v2389 = vunpack.c.h.b16 %v2284
        %v2390 = vunpack.c.l.b16 %v2285
        %v2391 = vunpack.c.h.b16 %v2285
        %v2392 = vunpack.c.l.b16 %v2286
        %v2393 = vunpack.c.h.b16 %v2286
        %v2394 = vunpack.c.l.b16 %v2287
        %v2395 = vunpack.c.h.b16 %v2287
        %v2396 = vunpack.c.l.b16 %v2288
        %v2397 = vunpack.c.h.b16 %v2288
        %v2398 = vunpack.c.l.b16 %v2289
        %v2399 = vunpack.c.h.b16 %v2289
        %v2400 = vunpack.c.l.b16 %v2290
        %v2401 = vunpack.c.h.b16 %v2290
        %v2402 = vunpack.c.l.b16 %v2291
        %v2403 = vunpack.c.h.b16 %v2291
        %v2404 = vunpack.c.l.b16 %v2292
        %v2405 = vunpack.c.h.b16 %v2292
        %v2406 = vunpack.c.l.b16 %v2293
        %v2407 = vunpack.c.h.b16 %v2293
        %v2408 = vunpack.c.l.b16 %v2294
        %v2409 = vunpack.c.h.b16 %v2294
        %v2410 = vunpack.c.l.b16 %v2295
        %v2411 = vunpack.c.h.b16 %v2295
        %v2412 = vunpack.c.l.b16 %v2296
        %v2413 = vunpack.c.h.b16 %v2296
        %v2414 = vunpack.c.l.b16 %v2297
        %v2415 = vunpack.c.h.b16 %v2297
        %v2416 = vpack.c.b16 %v2356, %v2352
        %v2417 = vpack.c.b16 %v2357, %v2353
        %v2418 = vpack.c.b16 %v2358, %v2354
        %v2419 = vpack.c.b16 %v2359, %v2355
        %v2420 = vpack.c.b16 %v2364, %v2360
        %v2421 = vpack.c.b16 %v2365, %v2361
        %v2422 = vpack.c.b16 %v2366, %v2362
        %v2423 = vpack.c.b16 %v2367, %v2363
        %v2424 = vpack.c.b16 %v2372, %v2368
        %v2425 = vpack.c.b16 %v2373, %v2369
        %v2426 = vpack.c.b16 %v2374, %v2370
        %v2427 = vpack.c.b16 %v2375, %v2371
        %v2428 = vpack.c.b16 %v2380, %v2376
        %v2429 = vpack.c.b16 %v2381, %v2377
        %v2430 = vpack.c.b16 %v2382, %v2378
        %v2431 = vpack.c.b16 %v2383, %v2379
        %v2432 = vpack.c.b16 %v2388, %v2384
        %v2433 = vpack.c.b16 %v2389, %v2385
        %v2434 = vpack.c.b16 %v2390, %v2386
        %v2435 = vpack.c.b16 %v2391, %v2387
        %v2436 = vpack.c.b16 %v2396, %v2392
        %v2437 = vpack.c.b16 %v2397, %v2393
        %v2438 = vpack.c.b16 %v2398, %v2394
        %v2439 = vpack.c.b16 %v2399, %v2395
        %v2440 = vpack.c.b16 %v2404, %v2400
        %v2441 = vpack.c.b16 %v2405, %v2401
        %v2442 = vpack.c.b16 %v2406, %v2402
        %v2443 = vpack.c.b16 %v2407, %v2403
        %v2444 = vpack.c.b16 %v2412, %v2408
        %v2445 = vpack.c.b16 %v2413, %v2409
        %v2446 = vpack.c.b16 %v2414, %v2410
        %v2447 = vpack.c.b16 %v2415, %v2411
        %2480 = vmatprep.subr.bf16.mxu0 %v2417
        %2481 = vmatpush1.bf16.msra.mxu0 %v2416
        %2482 = vmatprep.subr.bf16.mxu0 %v2421
        %2483 = vmatpush1.bf16.msra.mxu0 %v2420
        %2484 = vmatprep.subr.bf16.mxu0 %v2425
        %2485 = vmatpush1.bf16.msra.mxu0 %v2424
        %2486 = vmatprep.subr.bf16.mxu0 %v2429
        %2487 = vmatpush1.bf16.msra.mxu0 %v2428
        %2488 = vmatprep.subr.bf16.mxu0 %v2433
        %2489 = vmatpush1.bf16.msra.mxu0 %v2432
        %2490 = vmatprep.subr.bf16.mxu0 %v2437
        %2491 = vmatpush1.bf16.msra.mxu0 %v2436
        %2492 = vmatprep.subr.bf16.mxu0 %v2441
        %2493 = vmatpush1.bf16.msra.mxu0 %v2440
        %2494 = vmatprep.subr.bf16.mxu0 %v2445
        %2495 = vmatpush1.bf16.msra.mxu0 %v2444
        %2496 = vmatprep.subr.bf16.mxu0 0
        %2497 = vmatpush1.bf16.msra.mxu0 0
        %2498 = vmatprep.subr.bf16.mxu0 0
        %2499 = vmatpush1.bf16.msra.mxu0 0
        %2500 = vmatprep.subr.bf16.mxu0 0
        %2501 = vmatpush1.bf16.msra.mxu0 0
        %2502 = vmatprep.subr.bf16.mxu0 0
        %2503 = vmatpush1.bf16.msra.mxu0 0
        %2504 = vmatprep.subr.bf16.mxu0 0
        %2505 = vmatpush1.bf16.msra.mxu0 0
        %2506 = vmatprep.subr.bf16.mxu0 0
        %2507 = vmatpush1.bf16.msra.mxu0 0
        %2508 = vmatprep.subr.bf16.mxu0 0
        %2509 = vmatpush1.bf16.msra.mxu0 0
        %2510 = vmatprep.subr.bf16.mxu0 0
        %2511 = vmatpush1.bf16.msra.mxu0 0
        %2512 = vmatprep.mubr.bf16.mxu0 0
        %2513 = vmatmul.mubr.bf16.gmra.mrb[0].mxu0 %v2264
        %v2514 = vpop.f32.mrb[0].mxu0
        %v2515 = vadd.f32 %v2303, %v2514
        %v2516 = vpop.f32.mrb[0].mxu0
        %v2517 = vadd.f32 %v2307, %v2516
        %v2518 = vpop.f32.mrb[0].mxu0
        %v2519 = vadd.f32 %v2303, %v2518
        %v2520 = vpop.f32.mrb[0].mxu0
        %v2521 = vadd.f32 %v2307, %v2520
        %2522 = vmatprep.mubr.bf16.mxu0 0
        %2523 = vmatmul.mubr.bf16.gmra.mrb[0].mxu0 %v2265
        %v2524 = vpop.f32.mrb[0].mxu0
        %v2525 = vadd.f32 %v2303, %v2524
        %v2526 = vpop.f32.mrb[0].mxu0
        %v2527 = vadd.f32 %v2307, %v2526
        %v2528 = vpop.f32.mrb[0].mxu0
        %v2529 = vpop.f32.mrb[0].mxu0
        %2530 = vdwg.mxu0
        %2531 = vmatprep.subr.bf16.mxu0 %v2419
        %2532 = vmatpush1.bf16.msra.mxu0 %v2418
        %2533 = vmatprep.subr.bf16.mxu0 %v2423
        %2534 = vmatpush1.bf16.msra.mxu0 %v2422
        %2535 = vmatprep.subr.bf16.mxu0 %v2427
        %2536 = vmatpush1.bf16.msra.mxu0 %v2426
        %2537 = vmatprep.subr.bf16.mxu0 %v2431
        %2538 = vmatpush1.bf16.msra.mxu0 %v2430
        %2539 = vmatprep.subr.bf16.mxu0 %v2435
        %2540 = vmatpush1.bf16.msra.mxu0 %v2434
        %2541 = vmatprep.subr.bf16.mxu0 %v2439
        %2542 = vmatpush1.bf16.msra.mxu0 %v2438
        %2543 = vmatprep.subr.bf16.mxu0 %v2443
        %2544 = vmatpush1.bf16.msra.mxu0 %v2442
        %2545 = vmatprep.subr.bf16.mxu0 %v2447
        %2546 = vmatpush1.bf16.msra.mxu0 %v2446
        %2547 = vmatprep.subr.bf16.mxu0 0
        %2548 = vmatpush1.bf16.msra.mxu0 0
        %2549 = vmatprep.subr.bf16.mxu0 0
        %2550 = vmatpush1.bf16.msra.mxu0 0
        %2551 = vmatprep.subr.bf16.mxu0 0
        %2552 = vmatpush1.bf16.msra.mxu0 0
        %2553 = vmatprep.subr.bf16.mxu0 0
        %2554 = vmatpush1.bf16.msra.mxu0 0
        %2555 = vmatprep.subr.bf16.mxu0 0
        %2556 = vmatpush1.bf16.msra.mxu0 0
        %2557 = vmatprep.subr.bf16.mxu0 0
        %2558 = vmatpush1.bf16.msra.mxu0 0
        %2559 = vmatprep.subr.bf16.mxu0 0
        %2560 = vmatpush1.bf16.msra.mxu0 0
        %2561 = vmatprep.subr.bf16.mxu0 0
        %2562 = vmatpush1.bf16.msra.mxu0 0
        %2563 = vmatprep.mubr.bf16.mxu0 0
        %2564 = vmatmul.mubr.bf16.gmra.mrb[0].mxu0 %v2264
        %v2565 = vpop.f32.mrb[0].mxu0
        %v2566 = vadd.f32 %v2311, %v2565
        %v2567 = vpop.f32.mrb[0].mxu0
        %v2568 = vadd.f32 %v2315, %v2567
        %v2569 = vpop.f32.mrb[0].mxu0
        %v2570 = vadd.f32 %v2311, %v2569
        %v2571 = vpop.f32.mrb[0].mxu0
        %v2572 = vadd.f32 %v2315, %v2571
        %2573 = vmatprep.mubr.bf16.mxu0 0
        %2574 = vmatmul.mubr.bf16.gmra.mrb[0].mxu0 %v2265
        %v2575 = vpop.f32.mrb[0].mxu0
        %v2576 = vadd.f32 %v2311, %v2575
        %v2577 = vpop.f32.mrb[0].mxu0
        %v2578 = vadd.f32 %v2315, %v2577
        %v2579 = vpop.f32.mrb[0].mxu0
        %v2580 = vpop.f32.mrb[0].mxu0
        %2581 = vdwg.mxu0
        %v2582 = vmax.f32 %v2515, 0.0
        %v2583 = vmax.f32 %v2517, 0.0
        %v2584 = vmax.f32 %v2566, 0.0
        %v2585 = vmax.f32 %v2568, 0.0
        %v2586 = vmax.f32 %v2519, 0.0
        %v2587 = vmax.f32 %v2521, 0.0
        %v2588 = vmax.f32 %v2570, 0.0
        %v2589 = vmax.f32 %v2572, 0.0
        %v2590 = vmax.f32 %v2525, 0.0
        %v2591 = vmax.f32 %v2527, 0.0
        %v2592 = vmax.f32 %v2576, 0.0
        %v2593 = vmax.f32 %v2578, 0.0
        %v2594 = vpack.c.bf16 %v2586, %v2582
        %v2595 = vpack.c.bf16 %v2587, %v2583
        %v2596 = vpack.c.bf16 %v2588, %v2584
        %v2597 = vpack.c.bf16 %v2589, %v2585
        %v2598 = vpack.c.bf16 %v2590, %v2590
        %v2599 = vpack.c.bf16 %v2591, %v2591
        %v2600 = vpack.c.bf16 %v2592, %v2592
        %v2601 = vpack.c.bf16 %v2593, %v2593
        %v2602 = vld [vmem:[%s10] sm:$0xf]
        %v2603 = vld [vmem:[%s10 + $0x4] sm:$0xf]
        %v2604 = vld [vmem:[%s10 + $0x8] sm:$0xf]
        %v2605 = vld [vmem:[%s10 + $0xc] sm:$0xf]
        %v2606 = vld [vmem:[%s10 + $0x10] sm:$0xf]
        %v2607 = vld [vmem:[%s10 + $0x14] sm:$0xf]
        %v2608 = vld [vmem:[%s10 + $0x18] sm:$0xf]
        %v2609 = vld [vmem:[%s10 + $0x1c] sm:$0xf]
        %v2610 = vld [vmem:[%s10 + $0x20] sm:$0xf]
        %v2611 = vld [vmem:[%s10 + $0x24] sm:$0xf]
        %v2612 = vld [vmem:[%s10 + $0x28] sm:$0xf]
        %v2613 = vld [vmem:[%s10 + $0x2c] sm:$0xf]
        %v2614 = vld [vmem:[%s10 + $0x30] sm:$0xf]
        %v2615 = vld [vmem:[%s10 + $0x34] sm:$0xf]
        %v2616 = vld [vmem:[%s10 + $0x38] sm:$0xf]
        %v2617 = vld [vmem:[%s10 + $0x3c] sm:$0xf]
        %v2618 = vld [vmem:[%s10 + $0x40] sm:$0xf]
        %v2619 = vld [vmem:[%s10 + $0x44] sm:$0xf]
        %v2620 = vld [vmem:[%s10 + $0x48] sm:$0xf]
        %v2621 = vld [vmem:[%s10 + $0x4c] sm:$0xf]
        %v2622 = vld [vmem:[%s10 + $0x50] sm:$0xf]
        %v2623 = vld [vmem:[%s10 + $0x54] sm:$0xf]
        %v2624 = vld [vmem:[%s10 + $0x58] sm:$0xf]
        %v2625 = vld [vmem:[%s10 + $0x5c] sm:$0xf]
        %v2626 = vld [vmem:[%s10 + $0x60] sm:$0xf]
        %v2627 = vld [vmem:[%s10 + $0x64] sm:$0xf]
        %v2628 = vld [vmem:[%s10 + $0x68] sm:$0xf]
        %v2629 = vld [vmem:[%s10 + $0x6c] sm:$0xf]
        %v2630 = vld [vmem:[%s10 + $0x70] sm:$0xf]
        %v2631 = vld [vmem:[%s10 + $0x74] sm:$0xf]
        %v2632 = vld [vmem:[%s10 + $0x78] sm:$0xf]
        %v2633 = vld [vmem:[%s10 + $0x7c] sm:$0xf]
        %v2634 = vld [vmem:[%s10 + $0x80] sm:$0xf]
        %v2635 = vld [vmem:[%s10 + $0x84] sm:$0xf]
        %v2636 = vld [vmem:[%s10 + $0x88] sm:$0xf]
        %v2637 = vld [vmem:[%s10 + $0x8c] sm:$0xf]
        %v2638 = vld [vmem:[%s10 + $0x90] sm:$0xf]
        %v2639 = vld [vmem:[%s10 + $0x94] sm:$0xf]
        %v2640 = vld [vmem:[%s10 + $0x98] sm:$0xf]
        %v2641 = vld [vmem:[%s10 + $0x9c] sm:$0xf]
        %v2642 = vld [vmem:[%s10 + $0xa0] sm:$0xf]
        %v2643 = vld [vmem:[%s10 + $0xa4] sm:$0xf]
        %v2644 = vld [vmem:[%s10 + $0xa8] sm:$0xf]
        %v2645 = vld [vmem:[%s10 + $0xac] sm:$0xf]
        %v2646 = vld [vmem:[%s10 + $0xb0] sm:$0xf]
        %v2647 = vld [vmem:[%s10 + $0xb4] sm:$0xf]
        %v2648 = vld [vmem:[%s10 + $0xb8] sm:$0xf]
        %v2649 = vld [vmem:[%s10 + $0xbc] sm:$0xf]
        %v2650 = vld [vmem:[%s10 + $0xc0] sm:$0xf]
        %v2651 = vld [vmem:[%s10 + $0xc4] sm:$0xf]
        %v2652 = vld [vmem:[%s10 + $0xc8] sm:$0xf]
        %v2653 = vld [vmem:[%s10 + $0xcc] sm:$0xf]
        %v2654 = vld [vmem:[%s10 + $0xd0] sm:$0xf]
        %v2655 = vld [vmem:[%s10 + $0xd4] sm:$0xf]
        %v2656 = vld [vmem:[%s10 + $0xd8] sm:$0xf]
        %v2657 = vld [vmem:[%s10 + $0xdc] sm:$0xf]
        %v2658 = vld [vmem:[%s10 + $0xe0] sm:$0xf]
        %v2659 = vld [vmem:[%s10 + $0xe4] sm:$0xf]
        %v2660 = vld [vmem:[%s10 + $0xe8] sm:$0xf]
        %v2661 = vld [vmem:[%s10 + $0xec] sm:$0xf]
        %v2662 = vld [vmem:[%s10 + $0xf0] sm:$0xf]
        %v2663 = vld [vmem:[%s10 + $0xf4] sm:$0xf]
        %v2664 = vld [vmem:[%s10 + $0xf8] sm:$0xf]
        %v2665 = vld [vmem:[%s10 + $0xfc] sm:$0xf]
        %v2666 = vld [vmem:[%s11] sm:$0x1]
        %v2668 = vlaneseq
        %v2669 = vshrl.u32 %v2668, 7
        %v2670 = vsub.s32 0, %v2669
        %v2671 = vrot.slane %v2666, %v2670
        %v2737 = vunpack.c.l.b16 %v2602
        %v2738 = vunpack.c.l.b16 %v2603
        %v2739 = vunpack.c.l.b16 %v2604
        %v2740 = vunpack.c.l.b16 %v2605
        %v2741 = vunpack.c.l.b16 %v2606
        %v2742 = vunpack.c.l.b16 %v2607
        %v2743 = vunpack.c.l.b16 %v2608
        %v2744 = vunpack.c.l.b16 %v2609
        %v2745 = vunpack.c.l.b16 %v2610
        %v2746 = vunpack.c.l.b16 %v2611
        %v2747 = vunpack.c.l.b16 %v2612
        %v2748 = vunpack.c.l.b16 %v2613
        %v2749 = vunpack.c.l.b16 %v2614
        %v2750 = vunpack.c.l.b16 %v2615
        %v2751 = vunpack.c.l.b16 %v2616
        %v2752 = vunpack.c.l.b16 %v2617
        %v2753 = vunpack.c.l.b16 %v2618
        %v2754 = vunpack.c.l.b16 %v2619
        %v2755 = vunpack.c.l.b16 %v2620
        %v2756 = vunpack.c.l.b16 %v2621
        %v2757 = vunpack.c.l.b16 %v2622
        %v2758 = vunpack.c.l.b16 %v2623
        %v2759 = vunpack.c.l.b16 %v2624
        %v2760 = vunpack.c.l.b16 %v2625
        %v2761 = vunpack.c.l.b16 %v2626
        %v2762 = vunpack.c.l.b16 %v2627
        %v2763 = vunpack.c.l.b16 %v2628
        %v2764 = vunpack.c.l.b16 %v2629
        %v2765 = vunpack.c.l.b16 %v2630
        %v2766 = vunpack.c.l.b16 %v2631
        %v2767 = vunpack.c.l.b16 %v2632
        %v2768 = vunpack.c.l.b16 %v2633
        %v2769 = vunpack.c.l.b16 %v2634
        %v2770 = vunpack.c.l.b16 %v2635
        %v2771 = vunpack.c.l.b16 %v2636
        %v2772 = vunpack.c.l.b16 %v2637
        %v2773 = vunpack.c.l.b16 %v2638
        %v2774 = vunpack.c.l.b16 %v2639
        %v2775 = vunpack.c.l.b16 %v2640
        %v2776 = vunpack.c.l.b16 %v2641
        %v2777 = vunpack.c.l.b16 %v2642
        %v2778 = vunpack.c.l.b16 %v2643
        %v2779 = vunpack.c.l.b16 %v2644
        %v2780 = vunpack.c.l.b16 %v2645
        %v2781 = vunpack.c.l.b16 %v2646
        %v2782 = vunpack.c.l.b16 %v2647
        %v2783 = vunpack.c.l.b16 %v2648
        %v2784 = vunpack.c.l.b16 %v2649
        %v2785 = vunpack.c.l.b16 %v2650
        %v2786 = vunpack.c.l.b16 %v2651
        %v2787 = vunpack.c.l.b16 %v2652
        %v2788 = vunpack.c.l.b16 %v2653
        %v2789 = vunpack.c.l.b16 %v2654
        %v2790 = vunpack.c.l.b16 %v2655
        %v2791 = vunpack.c.l.b16 %v2656
        %v2792 = vunpack.c.l.b16 %v2657
        %v2793 = vunpack.c.l.b16 %v2658
        %v2794 = vunpack.c.l.b16 %v2659
        %v2795 = vunpack.c.l.b16 %v2660
        %v2796 = vunpack.c.l.b16 %v2661
        %v2797 = vunpack.c.l.b16 %v2662
        %v2798 = vunpack.c.l.b16 %v2663
        %v2799 = vunpack.c.l.b16 %v2664
        %v2800 = vunpack.c.l.b16 %v2665
        %v2801 = vpack.c.b16 %v2738, %v2737
        %v2802 = vpack.c.b16 %v2740, %v2739
        %v2803 = vpack.c.b16 %v2742, %v2741
        %v2804 = vpack.c.b16 %v2744, %v2743
        %v2805 = vpack.c.b16 %v2746, %v2745
        %v2806 = vpack.c.b16 %v2748, %v2747
        %v2807 = vpack.c.b16 %v2750, %v2749
        %v2808 = vpack.c.b16 %v2752, %v2751
        %v2809 = vpack.c.b16 %v2754, %v2753
        %v2810 = vpack.c.b16 %v2756, %v2755
        %v2811 = vpack.c.b16 %v2758, %v2757
        %v2812 = vpack.c.b16 %v2760, %v2759
        %v2813 = vpack.c.b16 %v2762, %v2761
        %v2814 = vpack.c.b16 %v2764, %v2763
        %v2815 = vpack.c.b16 %v2766, %v2765
        %v2816 = vpack.c.b16 %v2768, %v2767
        %v2817 = vpack.c.b16 %v2770, %v2769
        %v2818 = vpack.c.b16 %v2772, %v2771
        %v2819 = vpack.c.b16 %v2774, %v2773
        %v2820 = vpack.c.b16 %v2776, %v2775
        %v2821 = vpack.c.b16 %v2778, %v2777
        %v2822 = vpack.c.b16 %v2780, %v2779
        %v2823 = vpack.c.b16 %v2782, %v2781
        %v2824 = vpack.c.b16 %v2784, %v2783
        %v2825 = vpack.c.b16 %v2786, %v2785
        %v2826 = vpack.c.b16 %v2788, %v2787
        %v2827 = vpack.c.b16 %v2790, %v2789
        %v2828 = vpack.c.b16 %v2792, %v2791
        %v2829 = vpack.c.b16 %v2794, %v2793
        %v2830 = vpack.c.b16 %v2796, %v2795
        %v2831 = vpack.c.b16 %v2798, %v2797
        %v2832 = vpack.c.b16 %v2800, %v2799
        %2865 = vmatprep.subr.bf16.mxu0 0
        %2866 = vmatpush1.bf16.msra.mxu0 %v2801
        %2867 = vmatprep.subr.bf16.mxu0 0
        %2868 = vmatpush1.bf16.msra.mxu0 %v2802
        %2869 = vmatprep.subr.bf16.mxu0 0
        %2870 = vmatpush1.bf16.msra.mxu0 %v2803
        %2871 = vmatprep.subr.bf16.mxu0 0
        %2872 = vmatpush1.bf16.msra.mxu0 %v2804
        %2873 = vmatprep.subr.bf16.mxu0 0
        %2874 = vmatpush1.bf16.msra.mxu0 %v2805
        %2875 = vmatprep.subr.bf16.mxu0 0
        %2876 = vmatpush1.bf16.msra.mxu0 %v2806
        %2877 = vmatprep.subr.bf16.mxu0 0
        %2878 = vmatpush1.bf16.msra.mxu0 %v2807
        %2879 = vmatprep.subr.bf16.mxu0 0
        %2880 = vmatpush1.bf16.msra.mxu0 %v2808
        %2881 = vmatprep.subr.bf16.mxu0 0
        %2882 = vmatpush1.bf16.msra.mxu0 %v2809
        %2883 = vmatprep.subr.bf16.mxu0 0
        %2884 = vmatpush1.bf16.msra.mxu0 %v2810
        %2885 = vmatprep.subr.bf16.mxu0 0
        %2886 = vmatpush1.bf16.msra.mxu0 %v2811
        %2887 = vmatprep.subr.bf16.mxu0 0
        %2888 = vmatpush1.bf16.msra.mxu0 %v2812
        %2889 = vmatprep.subr.bf16.mxu0 0
        %2890 = vmatpush1.bf16.msra.mxu0 %v2813
        %2891 = vmatprep.subr.bf16.mxu0 0
        %2892 = vmatpush1.bf16.msra.mxu0 %v2814
        %2893 = vmatprep.subr.bf16.mxu0 0
        %2894 = vmatpush1.bf16.msra.mxu0 %v2815
        %2895 = vmatprep.subr.bf16.mxu0 0
        %2896 = vmatpush1.bf16.msra.mxu0 %v2816
        %2897 = vmatprep.mubr.bf16.mxu0 %v2595
        %2898 = vmatmul.mubr.bf16.gmra.mrb[0].mxu0 %v2594
        %v2899 = vpop.f32.mrb[0].mxu0
        %v2900 = vadd.f32 %v2671, %v2899
        %v2901 = vpop.f32.mrb[0].mxu0
        %v2902 = vpop.f32.mrb[0].mxu0
        %v2903 = vadd.f32 %v2671, %v2902
        %v2904 = vpop.f32.mrb[0].mxu0
        %2905 = vmatprep.mubr.bf16.mxu0 %v2599
        %2906 = vmatmul.mubr.bf16.gmra.mrb[0].mxu0 %v2598
        %v2907 = vpop.f32.mrb[0].mxu0
        %v2908 = vadd.f32 %v2671, %v2907
        %v2909 = vpop.f32.mrb[0].mxu0
        %v2910 = vpop.f32.mrb[0].mxu0
        %v2911 = vpop.f32.mrb[0].mxu0
        %2912 = vdwg.mxu0
        %2913 = vmatprep.subr.bf16.mxu0 0
        %2914 = vmatpush1.bf16.msra.mxu0 %v2817
        %2915 = vmatprep.subr.bf16.mxu0 0
        %2916 = vmatpush1.bf16.msra.mxu0 %v2818
        %2917 = vmatprep.subr.bf16.mxu0 0
        %2918 = vmatpush1.bf16.msra.mxu0 %v2819
        %2919 = vmatprep.subr.bf16.mxu0 0
        %2920 = vmatpush1.bf16.msra.mxu0 %v2820
        %2921 = vmatprep.subr.bf16.mxu0 0
        %2922 = vmatpush1.bf16.msra.mxu0 %v2821
        %2923 = vmatprep.subr.bf16.mxu0 0
        %2924 = vmatpush1.bf16.msra.mxu0 %v2822
        %2925 = vmatprep.subr.bf16.mxu0 0
        %2926 = vmatpush1.bf16.msra.mxu0 %v2823
        %2927 = vmatprep.subr.bf16.mxu0 0
        %2928 = vmatpush1.bf16.msra.mxu0 %v2824
        %2929 = vmatprep.subr.bf16.mxu0 0
        %2930 = vmatpush1.bf16.msra.mxu0 %v2825
        %2931 = vmatprep.subr.bf16.mxu0 0
        %2932 = vmatpush1.bf16.msra.mxu0 %v2826
        %2933 = vmatprep.subr.bf16.mxu0 0
        %2934 = vmatpush1.bf16.msra.mxu0 %v2827
        %2935 = vmatprep.subr.bf16.mxu0 0
        %2936 = vmatpush1.bf16.msra.mxu0 %v2828
        %2937 = vmatprep.subr.bf16.mxu0 0
        %2938 = vmatpush1.bf16.msra.mxu0 %v2829
        %2939 = vmatprep.subr.bf16.mxu0 0
        %2940 = vmatpush1.bf16.msra.mxu0 %v2830
        %2941 = vmatprep.subr.bf16.mxu0 0
        %2942 = vmatpush1.bf16.msra.mxu0 %v2831
        %2943 = vmatprep.subr.bf16.mxu0 0
        %2944 = vmatpush1.bf16.msra.mxu0 %v2832
        %2945 = vmatprep.mubr.bf16.mxu0 %v2597
        %2946 = vmatmul.mubr.bf16.gmra.mrb[0].mxu0 %v2596
        %v2947 = vpop.f32.mrb[0].mxu0
        %v2948 = vadd.f32 %v2900, %v2947
        %v2949 = vpop.f32.mrb[0].mxu0
        %v2950 = vpop.f32.mrb[0].mxu0
        %v2951 = vadd.f32 %v2903, %v2950
        %v2952 = vpop.f32.mrb[0].mxu0
        %2953 = vmatprep.mubr.bf16.mxu0 %v2601
        %2954 = vmatmul.mubr.bf16.gmra.mrb[0].mxu0 %v2600
        %v2955 = vpop.f32.mrb[0].mxu0
        %v2956 = vadd.f32 %v2908, %v2955
        %v2957 = vpop.f32.mrb[0].mxu0
        %v2958 = vpop.f32.mrb[0].mxu0
        %v2959 = vpop.f32.mrb[0].mxu0
        %2960 = vdwg.mxu0
        %v2961 = vadd.f32 %v2948, %v2261
        %v2962 = vadd.f32 %v2951, %v2262
        %v2963 = vadd.f32 %v2956, %v2263
        %v2964 = vld [vmem:[%s12] sm:$0x1]
        %v2965 = vld [vmem:[%s13] sm:$0x1]
        %2966 = vadd.xlane.f32.xlu0 %v2961
        %v2967 = vpop.xlane.xlu0 %2966
        %2968 = vadd.xlane.f32.xlu0 %v2962
        %v2969 = vpop.xlane.xlu0 %2968
        %v2970 = vsel %vm1482, %v2963, 0.0
        %2971 = vadd.xlane.f32.xlu0 %v2970
        %v2972 = vpop.xlane.xlu0 %2971
        %v2973 = vmul.f32 %v2967, %v2217
        %v2974 = vmul.f32 %v2969, %v2217
        %v2975 = vmul.f32 %v2972, %v2217
        %v2976 = vsub.f32 %v2961, %v2973
        %v2977 = vsub.f32 %v2962, %v2974
        %v2978 = vsub.f32 %v2963, %v2975
        %v2979 = vmul.f32 %v2976, %v2976
        %v2980 = vmul.f32 %v2977, %v2977
        %v2981 = vmul.f32 %v2978, %v2978
        %2982 = vadd.xlane.f32.xlu0 %v2979
        %v2983 = vpop.xlane.xlu0 %2982
        %2984 = vadd.xlane.f32.xlu0 %v2980
        %v2985 = vpop.xlane.xlu0 %2984
        %v2986 = vsel %vm1482, %v2981, 0.0
        %2987 = vadd.xlane.f32.xlu0 %v2986
        %v2988 = vpop.xlane.xlu0 %2987
        %v2989 = vmul.f32 %v2983, %v2217
        %v2990 = vmul.f32 %v2985, %v2217
        %v2991 = vmul.f32 %v2988, %v2217
        %v2992 = vadd.f32 %v2989, 1e-05
        %v2993 = vadd.f32 %v2990, 1e-05
        %v2994 = vadd.f32 %v2991, 1e-05
        %v2995 = vrsqrt.pop %v2992
        %v2996 = vrsqrt.pop %v2993
        %v2997 = vrsqrt.pop %v2994
        %v2998 = vmul.f32 %v2976, %v2995
        %v2999 = vmul.f32 %v2977, %v2996
        %v3000 = vmul.f32 %v2978, %v2997
        %v3002 = vlaneseq
        %v3003 = vshrl.u32 %v3002, 7
        %v3004 = vsub.s32 0, %v3003
        %v3005 = vrot.slane %v2964, %v3004
        %v3007 = vmul.f32 %v2998, %v3005
        %v3008 = vmul.f32 %v2999, %v3005
        %v3009 = vmul.f32 %v3000, %v3005
        %v3011 = vlaneseq
        %v3012 = vshrl.u32 %v3011, 7
        %v3013 = vsub.s32 0, %v3012
        %v3014 = vrot.slane %v2965, %v3013
        %v3016 = vadd.f32 %v3007, %v3014
        %v3017 = vadd.f32 %v3008, %v3014
        %v3018 = vadd.f32 %v3009, %v3014
        %v3019 = vpack.c.bf16 %v3017, %v3016
        %v3020 = vpack.c.bf16 %v3018, %v3018
        %s3021 = scalar_lea.vmem %s3, 192
        %v3022 = vld [vmem:[%s3021] sm:$0xff]
        %v3023 = vld [vmem:[%s3021 + $0x8] sm:$0xf]
        %v3024 = vld [vmem:[%s3021 + $0xc] sm:$0xff]
        %v3025 = vld [vmem:[%s3021 + $0x14] sm:$0xf]
        %v3026 = vld [vmem:[%s3021 + $0x18] sm:$0xff]
        %v3027 = vld [vmem:[%s3021 + $0x20] sm:$0xf]
        %v3028 = vld [vmem:[%s3021 + $0x24] sm:$0xff]
        %v3029 = vld [vmem:[%s3021 + $0x2c] sm:$0xf]
        %v3030 = vld [vmem:[%s3021 + $0x30] sm:$0xff]
        %v3031 = vld [vmem:[%s3021 + $0x38] sm:$0xf]
        %v3032 = vld [vmem:[%s3021 + $0x3c] sm:$0xff]
        %v3033 = vld [vmem:[%s3021 + $0x44] sm:$0xf]
        %v3034 = vld [vmem:[%s3021 + $0x48] sm:$0xff]
        %v3035 = vld [vmem:[%s3021 + $0x50] sm:$0xf]
        %v3036 = vld [vmem:[%s3021 + $0x54] sm:$0xff]
        %v3037 = vld [vmem:[%s3021 + $0x5c] sm:$0xf]
        %v3038 = vld [vmem:[%s3021 + $0x60] sm:$0xff]
        %v3039 = vld [vmem:[%s3021 + $0x68] sm:$0xf]
        %v3040 = vld [vmem:[%s3021 + $0x6c] sm:$0xff]
        %v3041 = vld [vmem:[%s3021 + $0x74] sm:$0xf]
        %v3042 = vld [vmem:[%s3021 + $0x78] sm:$0xff]
        %v3043 = vld [vmem:[%s3021 + $0x80] sm:$0xf]
        %v3044 = vld [vmem:[%s3021 + $0x84] sm:$0xff]
        %v3045 = vld [vmem:[%s3021 + $0x8c] sm:$0xf]
        %v3046 = vld [vmem:[%s3021 + $0x90] sm:$0xff]
        %v3047 = vld [vmem:[%s3021 + $0x98] sm:$0xf]
        %v3048 = vld [vmem:[%s3021 + $0x9c] sm:$0xff]
        %v3049 = vld [vmem:[%s3021 + $0xa4] sm:$0xf]
        %v3050 = vld [vmem:[%s3021 + $0xa8] sm:$0xff]
        %v3051 = vld [vmem:[%s3021 + $0xb0] sm:$0xf]
        %v3052 = vld [vmem:[%s3021 + $0xb4] sm:$0xff]
        %v3053 = vld [vmem:[%s3021 + $0xbc] sm:$0xf]
        %v3086 = vunpack.c.l.b16 %v3022
        %v3087 = vunpack.c.h.b16 %v3022
        %v3088 = vunpack.c.l.b16 %v3023
        %v3089 = vunpack.c.l.b16 %v3024
        %v3090 = vunpack.c.h.b16 %v3024
        %v3091 = vunpack.c.l.b16 %v3025
        %v3092 = vunpack.c.l.b16 %v3026
        %v3093 = vunpack.c.h.b16 %v3026
        %v3094 = vunpack.c.l.b16 %v3027
        %v3095 = vunpack.c.l.b16 %v3028
        %v3096 = vunpack.c.h.b16 %v3028
        %v3097 = vunpack.c.l.b16 %v3029
        %v3098 = vunpack.c.l.b16 %v3030
        %v3099 = vunpack.c.h.b16 %v3030
        %v3100 = vunpack.c.l.b16 %v3031
        %v3101 = vunpack.c.l.b16 %v3032
        %v3102 = vunpack.c.h.b16 %v3032
        %v3103 = vunpack.c.l.b16 %v3033
        %v3104 = vunpack.c.l.b16 %v3034
        %v3105 = vunpack.c.h.b16 %v3034
        %v3106 = vunpack.c.l.b16 %v3035
        %v3107 = vunpack.c.l.b16 %v3036
        %v3108 = vunpack.c.h.b16 %v3036
        %v3109 = vunpack.c.l.b16 %v3037
        %v3110 = vunpack.c.l.b16 %v3038
        %v3111 = vunpack.c.h.b16 %v3038
        %v3112 = vunpack.c.l.b16 %v3039
        %v3113 = vunpack.c.l.b16 %v3040
        %v3114 = vunpack.c.h.b16 %v3040
        %v3115 = vunpack.c.l.b16 %v3041
        %v3116 = vunpack.c.l.b16 %v3042
        %v3117 = vunpack.c.h.b16 %v3042
        %v3118 = vunpack.c.l.b16 %v3043
        %v3119 = vunpack.c.l.b16 %v3044
        %v3120 = vunpack.c.h.b16 %v3044
        %v3121 = vunpack.c.l.b16 %v3045
        %v3122 = vunpack.c.l.b16 %v3046
        %v3123 = vunpack.c.h.b16 %v3046
        %v3124 = vunpack.c.l.b16 %v3047
        %v3125 = vunpack.c.l.b16 %v3048
        %v3126 = vunpack.c.h.b16 %v3048
        %v3127 = vunpack.c.l.b16 %v3049
        %v3128 = vunpack.c.l.b16 %v3050
        %v3129 = vunpack.c.h.b16 %v3050
        %v3130 = vunpack.c.l.b16 %v3051
        %v3131 = vunpack.c.l.b16 %v3052
        %v3132 = vunpack.c.h.b16 %v3052
        %v3133 = vunpack.c.l.b16 %v3053
        %v3134 = vpack.c.b16 %v3089, %v3086
        %v3135 = vpack.c.b16 %v3090, %v3087
        %v3136 = vpack.c.b16 %v3091, %v3088
        %v3137 = vpack.c.b16 %v3095, %v3092
        %v3138 = vpack.c.b16 %v3096, %v3093
        %v3139 = vpack.c.b16 %v3097, %v3094
        %v3140 = vpack.c.b16 %v3101, %v3098
        %v3141 = vpack.c.b16 %v3102, %v3099
        %v3142 = vpack.c.b16 %v3103, %v3100
        %v3143 = vpack.c.b16 %v3107, %v3104
        %v3144 = vpack.c.b16 %v3108, %v3105
        %v3145 = vpack.c.b16 %v3109, %v3106
        %v3146 = vpack.c.b16 %v3113, %v3110
        %v3147 = vpack.c.b16 %v3114, %v3111
        %v3148 = vpack.c.b16 %v3115, %v3112
        %v3149 = vpack.c.b16 %v3119, %v3116
        %v3150 = vpack.c.b16 %v3120, %v3117
        %v3151 = vpack.c.b16 %v3121, %v3118
        %v3152 = vpack.c.b16 %v3125, %v3122
        %v3153 = vpack.c.b16 %v3126, %v3123
        %v3154 = vpack.c.b16 %v3127, %v3124
        %v3155 = vpack.c.b16 %v3131, %v3128
        %v3156 = vpack.c.b16 %v3132, %v3129
        %v3157 = vpack.c.b16 %v3133, %v3130
        %3182 = vmatprep.subr.bf16.mxu0 %v3135
        %3183 = vmatpush1.bf16.msra.mxu0 %v3134
        %3184 = vmatprep.subr.bf16.mxu0 %v3138
        %3185 = vmatpush1.bf16.msra.mxu0 %v3137
        %3186 = vmatprep.subr.bf16.mxu0 %v3141
        %3187 = vmatpush1.bf16.msra.mxu0 %v3140
        %3188 = vmatprep.subr.bf16.mxu0 %v3144
        %3189 = vmatpush1.bf16.msra.mxu0 %v3143
        %3190 = vmatprep.subr.bf16.mxu0 %v3147
        %3191 = vmatpush1.bf16.msra.mxu0 %v3146
        %3192 = vmatprep.subr.bf16.mxu0 %v3150
        %3193 = vmatpush1.bf16.msra.mxu0 %v3149
        %3194 = vmatprep.subr.bf16.mxu0 %v3153
        %3195 = vmatpush1.bf16.msra.mxu0 %v3152
        %3196 = vmatprep.subr.bf16.mxu0 %v3156
        %3197 = vmatpush1.bf16.msra.mxu0 %v3155
        %3198 = vmatprep.subr.bf16.mxu0 0
        %3199 = vmatpush1.bf16.msra.mxu0 0
        %3200 = vmatprep.subr.bf16.mxu0 0
        %3201 = vmatpush1.bf16.msra.mxu0 0
        %3202 = vmatprep.subr.bf16.mxu0 0
        %3203 = vmatpush1.bf16.msra.mxu0 0
        %3204 = vmatprep.subr.bf16.mxu0 0
        %3205 = vmatpush1.bf16.msra.mxu0 0
        %3206 = vmatprep.subr.bf16.mxu0 0
        %3207 = vmatpush1.bf16.msra.mxu0 0
        %3208 = vmatprep.subr.bf16.mxu0 0
        %3209 = vmatpush1.bf16.msra.mxu0 0
        %3210 = vmatprep.subr.bf16.mxu0 0
        %3211 = vmatpush1.bf16.msra.mxu0 0
        %3212 = vmatprep.subr.bf16.mxu0 0
        %3213 = vmatpush1.bf16.msra.mxu0 0
        %3214 = vmatprep.mubr.bf16.mxu0 0
        %3215 = vmatmul.mubr.bf16.gmra.mrb[0].mxu0 %v3019
        %v3216 = vpop.f32.mrb[0].mxu0
        %v3217 = vadd.f32 0.0, %v3216
        %v3218 = vpop.f32.mrb[0].mxu0
        %v3219 = vadd.f32 0.0, %v3218
        %v3220 = vpop.f32.mrb[0].mxu0
        %v3221 = vadd.f32 0.0, %v3220
        %v3222 = vpop.f32.mrb[0].mxu0
        %v3223 = vadd.f32 0.0, %v3222
        %3224 = vmatprep.mubr.bf16.mxu0 0
        %3225 = vmatmul.mubr.bf16.gmra.mrb[0].mxu0 %v3020
        %v3226 = vpop.f32.mrb[0].mxu0
        %v3227 = vadd.f32 0.0, %v3226
        %v3228 = vpop.f32.mrb[0].mxu0
        %v3229 = vadd.f32 0.0, %v3228
        %v3230 = vpop.f32.mrb[0].mxu0
        %v3231 = vpop.f32.mrb[0].mxu0
        %3232 = vdwg.mxu0
        %3233 = vmatprep.subr.bf16.mxu0 0
        %3234 = vmatpush1.bf16.msra.mxu0 %v3136
        %3235 = vmatprep.subr.bf16.mxu0 0
        %3236 = vmatpush1.bf16.msra.mxu0 %v3139
        %3237 = vmatprep.subr.bf16.mxu0 0
        %3238 = vmatpush1.bf16.msra.mxu0 %v3142
        %3239 = vmatprep.subr.bf16.mxu0 0
        %3240 = vmatpush1.bf16.msra.mxu0 %v3145
        %3241 = vmatprep.subr.bf16.mxu0 0
        %3242 = vmatpush1.bf16.msra.mxu0 %v3148
        %3243 = vmatprep.subr.bf16.mxu0 0
        %3244 = vmatpush1.bf16.msra.mxu0 %v3151
        %3245 = vmatprep.subr.bf16.mxu0 0
        %3246 = vmatpush1.bf16.msra.mxu0 %v3154
        %3247 = vmatprep.subr.bf16.mxu0 0
        %3248 = vmatpush1.bf16.msra.mxu0 %v3157
        %3249 = vmatprep.subr.bf16.mxu0 0
        %3250 = vmatpush1.bf16.msra.mxu0 0
        %3251 = vmatprep.subr.bf16.mxu0 0
        %3252 = vmatpush1.bf16.msra.mxu0 0
        %3253 = vmatprep.subr.bf16.mxu0 0
        %3254 = vmatpush1.bf16.msra.mxu0 0
        %3255 = vmatprep.subr.bf16.mxu0 0
        %3256 = vmatpush1.bf16.msra.mxu0 0
        %3257 = vmatprep.subr.bf16.mxu0 0
        %3258 = vmatpush1.bf16.msra.mxu0 0
        %3259 = vmatprep.subr.bf16.mxu0 0
        %3260 = vmatpush1.bf16.msra.mxu0 0
        %3261 = vmatprep.subr.bf16.mxu0 0
        %3262 = vmatpush1.bf16.msra.mxu0 0
        %3263 = vmatprep.subr.bf16.mxu0 0
        %3264 = vmatpush1.bf16.msra.mxu0 0
        %3265 = vmatprep.mubr.bf16.mxu0 0
        %3266 = vmatmul.mubr.bf16.gmra.mrb[0].mxu0 %v3019
        %v3267 = vpop.f32.mrb[0].mxu0
        %v3268 = vadd.f32 0.0, %v3267
        %v3269 = vpop.f32.mrb[0].mxu0
        %v3270 = vpop.f32.mrb[0].mxu0
        %v3271 = vadd.f32 0.0, %v3270
        %v3272 = vpop.f32.mrb[0].mxu0
        %3273 = vmatprep.mubr.bf16.mxu0 0
        %3274 = vmatmul.mubr.bf16.gmra.mrb[0].mxu0 %v3020
        %v3275 = vpop.f32.mrb[0].mxu0
        %v3276 = vadd.f32 0.0, %v3275
        %v3277 = vpop.f32.mrb[0].mxu0
        %v3278 = vpop.f32.mrb[0].mxu0
        %v3279 = vpop.f32.mrb[0].mxu0
        %3280 = vdwg.mxu0
        %v3281 = vpack.c.bf16 %v3221, %v3217
        %v3282 = vpack.c.bf16 %v3227, %v3227
        %v3283 = vpack.c.bf16 %v3223, %v3219
        %v3284 = vpack.c.bf16 %v3229, %v3229
        %v3285 = vpack.c.bf16 %v3271, %v3268
        %v3286 = vpack.c.bf16 %v3276, %v3276
        %v3288 = vsel %vm1378, %v3281, 0
        %v3291 = vsel %vm1378, %v3282, 0
        %v3294 = vsel %vm1378, %v3283, 0
        %v3297 = vsel %vm1378, %v3284, 0
        %3299 = vmatprep.subr.bf16.mxu0 0
        %3300 = vmatpush1.bf16.xpose.msra.mxu0 %v3294
        %3301 = vmatprep.subr.bf16.mxu0 0
        %3302 = vmatpush1.bf16.xpose.msra.mxu0 %v3297
        %3303 = vmatprep.subr.bf16.mxu0 0
        %3304 = vmatpush1.bf16.xpose.msra.mxu0 0
        %3305 = vmatprep.subr.bf16.mxu0 0
        %3306 = vmatpush1.bf16.xpose.msra.mxu0 0
        %3307 = vmatprep.subr.bf16.mxu0 0
        %3308 = vmatpush1.bf16.xpose.msra.mxu0 0
        %3309 = vmatprep.subr.bf16.mxu0 0
        %3310 = vmatpush1.bf16.xpose.msra.mxu0 0
        %3311 = vmatprep.subr.bf16.mxu0 0
        %3312 = vmatpush1.bf16.xpose.msra.mxu0 0
        %3313 = vmatprep.subr.bf16.mxu0 0
        %3314 = vmatpush1.bf16.xpose.msra.mxu0 0
        %3315 = vmatprep.subr.bf16.mxu0 0
        %3316 = vmatpush1.bf16.xpose.msra.mxu0 0
        %3317 = vmatprep.subr.bf16.mxu0 0
        %3318 = vmatpush1.bf16.xpose.msra.mxu0 0
        %3319 = vmatprep.subr.bf16.mxu0 0
        %3320 = vmatpush1.bf16.xpose.msra.mxu0 0
        %3321 = vmatprep.subr.bf16.mxu0 0
        %3322 = vmatpush1.bf16.xpose.msra.mxu0 0
        %3323 = vmatprep.subr.bf16.mxu0 0
        %3324 = vmatpush1.bf16.xpose.msra.mxu0 0
        %3325 = vmatprep.subr.bf16.mxu0 0
        %3326 = vmatpush1.bf16.xpose.msra.mxu0 0
        %3327 = vmatprep.subr.bf16.mxu0 0
        %3328 = vmatpush1.bf16.xpose.msra.mxu0 0
        %3329 = vmatprep.subr.bf16.mxu0 0
        %3330 = vmatpush1.bf16.xpose.msra.mxu0 0
        %3331 = vmatprep.mubr.bf16.mxu0 0
        %3332 = vmatmul.mubr.bf16.gmra.mrb[0].mxu0 %v3288
        %v3333 = vpop.f32.mrb[0].mxu0
        %v3334 = vadd.f32 0.0, %v3333
        %v3335 = vpop.f32.mrb[0].mxu0
        %v3336 = vpop.f32.mrb[0].mxu0
        %v3337 = vadd.f32 0.0, %v3336
        %v3338 = vpop.f32.mrb[0].mxu0
        %3339 = vmatprep.mubr.bf16.mxu0 0
        %3340 = vmatmul.mubr.bf16.gmra.mrb[0].mxu0 %v3291
        %v3341 = vpop.f32.mrb[0].mxu0
        %v3342 = vadd.f32 0.0, %v3341
        %v3343 = vpop.f32.mrb[0].mxu0
        %v3344 = vpop.f32.mrb[0].mxu0
        %v3345 = vpop.f32.mrb[0].mxu0
        %3346 = vdwg.mxu0
        %v3347 = vsel %vm1439, %v3334, -inf
        %3348 = vmax.xlane.f32.xlu0 %v3347
        %v3349 = vpop.xlane.xlu0 %3348
        %v3350 = vsel %vm1439, %v3337, -inf
        %3351 = vmax.xlane.f32.xlu0 %v3350
        %v3352 = vpop.xlane.xlu0 %3351
        %v3353 = vsel %vm1446, %v3342, -inf
        %3354 = vmax.xlane.f32.xlu0 %v3353
        %v3355 = vpop.xlane.xlu0 %3354
        %v3356 = vsub.f32 %v3334, %v3349
        %v3357 = vsub.f32 %v3337, %v3352
        %v3358 = vsub.f32 %v3342, %v3355
        %v3359 = vmul.f32 %v3356, 1.442695
        %v3360 = vpow.pop %v3359
        %v3361 = vmul.f32 %v3357, 1.442695
        %v3362 = vpow.pop %v3361
        %v3363 = vmul.f32 %v3358, 1.442695
        %v3364 = vpow.pop %v3363
        %v3365 = vsel %vm1439, %v3360, 0.0
        %3366 = vadd.xlane.f32.xlu0 %v3365
        %v3367 = vpop.xlane.xlu0 %3366
        %v3368 = vsel %vm1439, %v3362, 0.0
        %3369 = vadd.xlane.f32.xlu0 %v3368
        %v3370 = vpop.xlane.xlu0 %3369
        %v3371 = vsel %vm1446, %v3364, 0.0
        %3372 = vadd.xlane.f32.xlu0 %v3371
        %v3373 = vpop.xlane.xlu0 %3372
        %v3374 = vrcp.pop %v3367
        %v3375 = vrcp.pop %v3370
        %v3376 = vrcp.pop %v3373
        %v3377 = vmul.f32 %v3360, %v3374
        %v3378 = vmul.f32 %v3362, %v3375
        %v3379 = vmul.f32 %v3364, %v3376
        %v3380 = vpack.c.bf16 %v3378, %v3377
        %v3381 = vpack.c.bf16 %v3379, %v3379
        %v3383 = vsel %vm1439, %v3380, 0
        %v3386 = vsel %vm1439, %v3381, 0
        %v3389 = vand.u32 %v3286, %v1484
        %3391 = vmatprep.subr.bf16.mxu0 0
        %3392 = vmatpush1.bf16.msra.mxu0 %v3285
        %3393 = vmatprep.subr.bf16.mxu0 0
        %3394 = vmatpush1.bf16.msra.mxu0 %v3389
        %3395 = vmatprep.subr.bf16.mxu0 0
        %3396 = vmatpush1.bf16.msra.mxu0 0
        %3397 = vmatprep.subr.bf16.mxu0 0
        %3398 = vmatpush1.bf16.msra.mxu0 0
        %3399 = vmatprep.subr.bf16.mxu0 0
        %3400 = vmatpush1.bf16.msra.mxu0 0
        %3401 = vmatprep.subr.bf16.mxu0 0
        %3402 = vmatpush1.bf16.msra.mxu0 0
        %3403 = vmatprep.subr.bf16.mxu0 0
        %3404 = vmatpush1.bf16.msra.mxu0 0
        %3405 = vmatprep.subr.bf16.mxu0 0
        %3406 = vmatpush1.bf16.msra.mxu0 0
        %3407 = vmatprep.subr.bf16.mxu0 0
        %3408 = vmatpush1.bf16.msra.mxu0 0
        %3409 = vmatprep.subr.bf16.mxu0 0
        %3410 = vmatpush1.bf16.msra.mxu0 0
        %3411 = vmatprep.subr.bf16.mxu0 0
        %3412 = vmatpush1.bf16.msra.mxu0 0
        %3413 = vmatprep.subr.bf16.mxu0 0
        %3414 = vmatpush1.bf16.msra.mxu0 0
        %3415 = vmatprep.subr.bf16.mxu0 0
        %3416 = vmatpush1.bf16.msra.mxu0 0
        %3417 = vmatprep.subr.bf16.mxu0 0
        %3418 = vmatpush1.bf16.msra.mxu0 0
        %3419 = vmatprep.subr.bf16.mxu0 0
        %3420 = vmatpush1.bf16.msra.mxu0 0
        %3421 = vmatprep.subr.bf16.mxu0 0
        %3422 = vmatpush1.bf16.msra.mxu0 0
        %3423 = vmatprep.mubr.bf16.mxu0 0
        %3424 = vmatmul.mubr.bf16.gmra.mrb[0].mxu0 %v3383
        %v3425 = vpop.f32.mrb[0].mxu0
        %v3426 = vadd.f32 0.0, %v3425
        %v3427 = vpop.f32.mrb[0].mxu0
        %v3428 = vpop.f32.mrb[0].mxu0
        %v3429 = vadd.f32 0.0, %v3428
        %v3430 = vpop.f32.mrb[0].mxu0
        %3431 = vmatprep.mubr.bf16.mxu0 0
        %3432 = vmatmul.mubr.bf16.gmra.mrb[0].mxu0 %v3386
        %v3433 = vpop.f32.mrb[0].mxu0
        %v3434 = vadd.f32 0.0, %v3433
        %v3435 = vpop.f32.mrb[0].mxu0
        %v3436 = vpop.f32.mrb[0].mxu0
        %v3437 = vpop.f32.mrb[0].mxu0
        %3438 = vdwg.mxu0
        %3441 = vrot.lane.b32.xlu0 %v3281, 96
        %v3442 = vpop.permute.xlu0 %3441
        %3443 = vrot.lane.b32.xlu0 %v3282, 96
        %v3444 = vpop.permute.xlu0 %3443
        %3447 = vrot.lane.b32.xlu0 %v3283, 96
        %v3448 = vpop.permute.xlu0 %3447
        %3449 = vrot.lane.b32.xlu0 %v3284, 96
        %v3450 = vpop.permute.xlu0 %3449
        %v3452 = vsel %vm1378, %v3442, 0
        %v3455 = vsel %vm1378, %v3444, 0
        %v3458 = vsel %vm1378, %v3448, 0
        %v3461 = vsel %vm1378, %v3450, 0
        %3463 = vmatprep.subr.bf16.mxu0 0
        %3464 = vmatpush1.bf16.xpose.msra.mxu0 %v3458
        %3465 = vmatprep.subr.bf16.mxu0 0
        %3466 = vmatpush1.bf16.xpose.msra.mxu0 %v3461
        %3467 = vmatprep.subr.bf16.mxu0 0
        %3468 = vmatpush1.bf16.xpose.msra.mxu0 0
        %3469 = vmatprep.subr.bf16.mxu0 0
        %3470 = vmatpush1.bf16.xpose.msra.mxu0 0
        %3471 = vmatprep.subr.bf16.mxu0 0
        %3472 = vmatpush1.bf16.xpose.msra.mxu0 0
        %3473 = vmatprep.subr.bf16.mxu0 0
        %3474 = vmatpush1.bf16.xpose.msra.mxu0 0
        %3475 = vmatprep.subr.bf16.mxu0 0
        %3476 = vmatpush1.bf16.xpose.msra.mxu0 0
        %3477 = vmatprep.subr.bf16.mxu0 0
        %3478 = vmatpush1.bf16.xpose.msra.mxu0 0
        %3479 = vmatprep.subr.bf16.mxu0 0
        %3480 = vmatpush1.bf16.xpose.msra.mxu0 0
        %3481 = vmatprep.subr.bf16.mxu0 0
        %3482 = vmatpush1.bf16.xpose.msra.mxu0 0
        %3483 = vmatprep.subr.bf16.mxu0 0
        %3484 = vmatpush1.bf16.xpose.msra.mxu0 0
        %3485 = vmatprep.subr.bf16.mxu0 0
        %3486 = vmatpush1.bf16.xpose.msra.mxu0 0
        %3487 = vmatprep.subr.bf16.mxu0 0
        %3488 = vmatpush1.bf16.xpose.msra.mxu0 0
        %3489 = vmatprep.subr.bf16.mxu0 0
        %3490 = vmatpush1.bf16.xpose.msra.mxu0 0
        %3491 = vmatprep.subr.bf16.mxu0 0
        %3492 = vmatpush1.bf16.xpose.msra.mxu0 0
        %3493 = vmatprep.subr.bf16.mxu0 0
        %3494 = vmatpush1.bf16.xpose.msra.mxu0 0
        %3495 = vmatprep.mubr.bf16.mxu0 0
        %3496 = vmatmul.mubr.bf16.gmra.mrb[0].mxu0 %v3452
        %v3497 = vpop.f32.mrb[0].mxu0
        %v3498 = vadd.f32 0.0, %v3497
        %v3499 = vpop.f32.mrb[0].mxu0
        %v3500 = vpop.f32.mrb[0].mxu0
        %v3501 = vadd.f32 0.0, %v3500
        %v3502 = vpop.f32.mrb[0].mxu0
        %3503 = vmatprep.mubr.bf16.mxu0 0
        %3504 = vmatmul.mubr.bf16.gmra.mrb[0].mxu0 %v3455
        %v3505 = vpop.f32.mrb[0].mxu0
        %v3506 = vadd.f32 0.0, %v3505
        %v3507 = vpop.f32.mrb[0].mxu0
        %v3508 = vpop.f32.mrb[0].mxu0
        %v3509 = vpop.f32.mrb[0].mxu0
        %3510 = vdwg.mxu0
        %v3511 = vsel %vm1439, %v3498, -inf
        %3512 = vmax.xlane.f32.xlu0 %v3511
        %v3513 = vpop.xlane.xlu0 %3512
        %v3514 = vsel %vm1439, %v3501, -inf
        %3515 = vmax.xlane.f32.xlu0 %v3514
        %v3516 = vpop.xlane.xlu0 %3515
        %v3517 = vsel %vm1446, %v3506, -inf
        %3518 = vmax.xlane.f32.xlu0 %v3517
        %v3519 = vpop.xlane.xlu0 %3518
        %v3520 = vsub.f32 %v3498, %v3513
        %v3521 = vsub.f32 %v3501, %v3516
        %v3522 = vsub.f32 %v3506, %v3519
        %v3523 = vmul.f32 %v3520, 1.442695
        %v3524 = vpow.pop %v3523
        %v3525 = vmul.f32 %v3521, 1.442695
        %v3526 = vpow.pop %v3525
        %v3527 = vmul.f32 %v3522, 1.442695
        %v3528 = vpow.pop %v3527
        %v3529 = vsel %vm1439, %v3524, 0.0
        %3530 = vadd.xlane.f32.xlu0 %v3529
        %v3531 = vpop.xlane.xlu0 %3530
        %v3532 = vsel %vm1439, %v3526, 0.0
        %3533 = vadd.xlane.f32.xlu0 %v3532
        %v3534 = vpop.xlane.xlu0 %3533
        %v3535 = vsel %vm1446, %v3528, 0.0
        %3536 = vadd.xlane.f32.xlu0 %v3535
        %v3537 = vpop.xlane.xlu0 %3536
        %v3538 = vrcp.pop %v3531
        %v3539 = vrcp.pop %v3534
        %v3540 = vrcp.pop %v3537
        %v3541 = vmul.f32 %v3524, %v3538
        %v3542 = vmul.f32 %v3526, %v3539
        %v3543 = vmul.f32 %v3528, %v3540
        %v3544 = vpack.c.bf16 %v3542, %v3541
        %v3545 = vpack.c.bf16 %v3543, %v3543
        %3548 = vrot.lane.b32.xlu0 %v3285, 96
        %v3549 = vpop.permute.xlu0 %3548
        %3550 = vrot.lane.b32.xlu0 %v3286, 96
        %v3551 = vpop.permute.xlu0 %3550
        %v3554 = vsel %vm1439, %v3544, 0
        %v3557 = vsel %vm1439, %v3545, 0
        %v3560 = vand.u32 %v3551, %v1484
        %3562 = vmatprep.subr.bf16.mxu0 0
        %3563 = vmatpush1.bf16.msra.mxu0 %v3549
        %3564 = vmatprep.subr.bf16.mxu0 0
        %3565 = vmatpush1.bf16.msra.mxu0 %v3560
        %3566 = vmatprep.subr.bf16.mxu0 0
        %3567 = vmatpush1.bf16.msra.mxu0 0
        %3568 = vmatprep.subr.bf16.mxu0 0
        %3569 = vmatpush1.bf16.msra.mxu0 0
        %3570 = vmatprep.subr.bf16.mxu0 0
        %3571 = vmatpush1.bf16.msra.mxu0 0
        %3572 = vmatprep.subr.bf16.mxu0 0
        %3573 = vmatpush1.bf16.msra.mxu0 0
        %3574 = vmatprep.subr.bf16.mxu0 0
        %3575 = vmatpush1.bf16.msra.mxu0 0
        %3576 = vmatprep.subr.bf16.mxu0 0
        %3577 = vmatpush1.bf16.msra.mxu0 0
        %3578 = vmatprep.subr.bf16.mxu0 0
        %3579 = vmatpush1.bf16.msra.mxu0 0
        %3580 = vmatprep.subr.bf16.mxu0 0
        %3581 = vmatpush1.bf16.msra.mxu0 0
        %3582 = vmatprep.subr.bf16.mxu0 0
        %3583 = vmatpush1.bf16.msra.mxu0 0
        %3584 = vmatprep.subr.bf16.mxu0 0
        %3585 = vmatpush1.bf16.msra.mxu0 0
        %3586 = vmatprep.subr.bf16.mxu0 0
        %3587 = vmatpush1.bf16.msra.mxu0 0
        %3588 = vmatprep.subr.bf16.mxu0 0
        %3589 = vmatpush1.bf16.msra.mxu0 0
        %3590 = vmatprep.subr.bf16.mxu0 0
        %3591 = vmatpush1.bf16.msra.mxu0 0
        %3592 = vmatprep.subr.bf16.mxu0 0
        %3593 = vmatpush1.bf16.msra.mxu0 0
        %3594 = vmatprep.mubr.bf16.mxu0 0
        %3595 = vmatmul.mubr.bf16.gmra.mrb[0].mxu0 %v3554
        %v3596 = vpop.f32.mrb[0].mxu0
        %v3597 = vadd.f32 0.0, %v3596
        %v3598 = vpop.f32.mrb[0].mxu0
        %v3599 = vpop.f32.mrb[0].mxu0
        %v3600 = vadd.f32 0.0, %v3599
        %v3601 = vpop.f32.mrb[0].mxu0
        %3602 = vmatprep.mubr.bf16.mxu0 0
        %3603 = vmatmul.mubr.bf16.gmra.mrb[0].mxu0 %v3557
        %v3604 = vpop.f32.mrb[0].mxu0
        %v3605 = vadd.f32 0.0, %v3604
        %v3606 = vpop.f32.mrb[0].mxu0
        %v3607 = vpop.f32.mrb[0].mxu0
        %v3608 = vpop.f32.mrb[0].mxu0
        %3609 = vdwg.mxu0
        %3610 = vrot.lane.b32.xlu0 %v3281, 64
        %v3611 = vpop.permute.xlu0 %3610
        %3612 = vrot.lane.b32.xlu0 %v3282, 64
        %v3613 = vpop.permute.xlu0 %3612
        %3614 = vrot.lane.b32.xlu0 %v3283, 64
        %v3615 = vpop.permute.xlu0 %3614
        %3616 = vrot.lane.b32.xlu0 %v3284, 64
        %v3617 = vpop.permute.xlu0 %3616
        %v3619 = vsel %vm1378, %v3611, 0
        %v3622 = vsel %vm1378, %v3613, 0
        %v3625 = vsel %vm1378, %v3615, 0
        %v3628 = vsel %vm1378, %v3617, 0
        %3630 = vmatprep.subr.bf16.mxu0 0
        %3631 = vmatpush1.bf16.xpose.msra.mxu0 %v3625
        %3632 = vmatprep.subr.bf16.mxu0 0
        %3633 = vmatpush1.bf16.xpose.msra.mxu0 %v3628
        %3634 = vmatprep.subr.bf16.mxu0 0
        %3635 = vmatpush1.bf16.xpose.msra.mxu0 0
        %3636 = vmatprep.subr.bf16.mxu0 0
        %3637 = vmatpush1.bf16.xpose.msra.mxu0 0
        %3638 = vmatprep.subr.bf16.mxu0 0
        %3639 = vmatpush1.bf16.xpose.msra.mxu0 0
        %3640 = vmatprep.subr.bf16.mxu0 0
        %3641 = vmatpush1.bf16.xpose.msra.mxu0 0
        %3642 = vmatprep.subr.bf16.mxu0 0
        %3643 = vmatpush1.bf16.xpose.msra.mxu0 0
        %3644 = vmatprep.subr.bf16.mxu0 0
        %3645 = vmatpush1.bf16.xpose.msra.mxu0 0
        %3646 = vmatprep.subr.bf16.mxu0 0
        %3647 = vmatpush1.bf16.xpose.msra.mxu0 0
        %3648 = vmatprep.subr.bf16.mxu0 0
        %3649 = vmatpush1.bf16.xpose.msra.mxu0 0
        %3650 = vmatprep.subr.bf16.mxu0 0
        %3651 = vmatpush1.bf16.xpose.msra.mxu0 0
        %3652 = vmatprep.subr.bf16.mxu0 0
        %3653 = vmatpush1.bf16.xpose.msra.mxu0 0
        %3654 = vmatprep.subr.bf16.mxu0 0
        %3655 = vmatpush1.bf16.xpose.msra.mxu0 0
        %3656 = vmatprep.subr.bf16.mxu0 0
        %3657 = vmatpush1.bf16.xpose.msra.mxu0 0
        %3658 = vmatprep.subr.bf16.mxu0 0
        %3659 = vmatpush1.bf16.xpose.msra.mxu0 0
        %3660 = vmatprep.subr.bf16.mxu0 0
        %3661 = vmatpush1.bf16.xpose.msra.mxu0 0
        %3662 = vmatprep.mubr.bf16.mxu0 0
        %3663 = vmatmul.mubr.bf16.gmra.mrb[0].mxu0 %v3619
        %v3664 = vpop.f32.mrb[0].mxu0
        %v3665 = vadd.f32 0.0, %v3664
        %v3666 = vpop.f32.mrb[0].mxu0
        %v3667 = vpop.f32.mrb[0].mxu0
        %v3668 = vadd.f32 0.0, %v3667
        %v3669 = vpop.f32.mrb[0].mxu0
        %3670 = vmatprep.mubr.bf16.mxu0 0
        %3671 = vmatmul.mubr.bf16.gmra.mrb[0].mxu0 %v3622
        %v3672 = vpop.f32.mrb[0].mxu0
        %v3673 = vadd.f32 0.0, %v3672
        %v3674 = vpop.f32.mrb[0].mxu0
        %v3675 = vpop.f32.mrb[0].mxu0
        %v3676 = vpop.f32.mrb[0].mxu0
        %3677 = vdwg.mxu0
        %v3678 = vsel %vm1439, %v3665, -inf
        %3679 = vmax.xlane.f32.xlu0 %v3678
        %v3680 = vpop.xlane.xlu0 %3679
        %v3681 = vsel %vm1439, %v3668, -inf
        %3682 = vmax.xlane.f32.xlu0 %v3681
        %v3683 = vpop.xlane.xlu0 %3682
        %v3684 = vsel %vm1446, %v3673, -inf
        %3685 = vmax.xlane.f32.xlu0 %v3684
        %v3686 = vpop.xlane.xlu0 %3685
        %v3687 = vsub.f32 %v3665, %v3680
        %v3688 = vsub.f32 %v3668, %v3683
        %v3689 = vsub.f32 %v3673, %v3686
        %v3690 = vmul.f32 %v3687, 1.442695
        %v3691 = vpow.pop %v3690
        %v3692 = vmul.f32 %v3688, 1.442695
        %v3693 = vpow.pop %v3692
        %v3694 = vmul.f32 %v3689, 1.442695
        %v3695 = vpow.pop %v3694
        %v3696 = vsel %vm1439, %v3691, 0.0
        %3697 = vadd.xlane.f32.xlu0 %v3696
        %v3698 = vpop.xlane.xlu0 %3697
        %v3699 = vsel %vm1439, %v3693, 0.0
        %3700 = vadd.xlane.f32.xlu0 %v3699
        %v3701 = vpop.xlane.xlu0 %3700
        %v3702 = vsel %vm1446, %v3695, 0.0
        %3703 = vadd.xlane.f32.xlu0 %v3702
        %v3704 = vpop.xlane.xlu0 %3703
        %v3705 = vrcp.pop %v3698
        %v3706 = vrcp.pop %v3701
        %v3707 = vrcp.pop %v3704
        %v3708 = vmul.f32 %v3691, %v3705
        %v3709 = vmul.f32 %v3693, %v3706
        %v3710 = vmul.f32 %v3695, %v3707
        %v3711 = vpack.c.bf16 %v3709, %v3708
        %v3712 = vpack.c.bf16 %v3710, %v3710
        %3713 = vrot.lane.b32.xlu0 %v3285, 64
        %v3714 = vpop.permute.xlu0 %3713
        %3715 = vrot.lane.b32.xlu0 %v3286, 64
        %v3716 = vpop.permute.xlu0 %3715
        %v3719 = vsel %vm1439, %v3711, 0
        %v3722 = vsel %vm1439, %v3712, 0
        %v3725 = vand.u32 %v3716, %v1484
        %3727 = vmatprep.subr.bf16.mxu0 0
        %3728 = vmatpush1.bf16.msra.mxu0 %v3714
        %3729 = vmatprep.subr.bf16.mxu0 0
        %3730 = vmatpush1.bf16.msra.mxu0 %v3725
        %3731 = vmatprep.subr.bf16.mxu0 0
        %3732 = vmatpush1.bf16.msra.mxu0 0
        %3733 = vmatprep.subr.bf16.mxu0 0
        %3734 = vmatpush1.bf16.msra.mxu0 0
        %3735 = vmatprep.subr.bf16.mxu0 0
        %3736 = vmatpush1.bf16.msra.mxu0 0
        %3737 = vmatprep.subr.bf16.mxu0 0
        %3738 = vmatpush1.bf16.msra.mxu0 0
        %3739 = vmatprep.subr.bf16.mxu0 0
        %3740 = vmatpush1.bf16.msra.mxu0 0
        %3741 = vmatprep.subr.bf16.mxu0 0
        %3742 = vmatpush1.bf16.msra.mxu0 0
        %3743 = vmatprep.subr.bf16.mxu0 0
        %3744 = vmatpush1.bf16.msra.mxu0 0
        %3745 = vmatprep.subr.bf16.mxu0 0
        %3746 = vmatpush1.bf16.msra.mxu0 0
        %3747 = vmatprep.subr.bf16.mxu0 0
        %3748 = vmatpush1.bf16.msra.mxu0 0
        %3749 = vmatprep.subr.bf16.mxu0 0
        %3750 = vmatpush1.bf16.msra.mxu0 0
        %3751 = vmatprep.subr.bf16.mxu0 0
        %3752 = vmatpush1.bf16.msra.mxu0 0
        %3753 = vmatprep.subr.bf16.mxu0 0
        %3754 = vmatpush1.bf16.msra.mxu0 0
        %3755 = vmatprep.subr.bf16.mxu0 0
        %3756 = vmatpush1.bf16.msra.mxu0 0
        %3757 = vmatprep.subr.bf16.mxu0 0
        %3758 = vmatpush1.bf16.msra.mxu0 0
        %3759 = vmatprep.mubr.bf16.mxu0 0
        %3760 = vmatmul.mubr.bf16.gmra.mrb[0].mxu0 %v3719
        %v3761 = vpop.f32.mrb[0].mxu0
        %v3762 = vadd.f32 0.0, %v3761
        %v3763 = vpop.f32.mrb[0].mxu0
        %v3764 = vpop.f32.mrb[0].mxu0
        %v3765 = vadd.f32 0.0, %v3764
        %v3766 = vpop.f32.mrb[0].mxu0
        %3767 = vmatprep.mubr.bf16.mxu0 0
        %3768 = vmatmul.mubr.bf16.gmra.mrb[0].mxu0 %v3722
        %v3769 = vpop.f32.mrb[0].mxu0
        %v3770 = vadd.f32 0.0, %v3769
        %v3771 = vpop.f32.mrb[0].mxu0
        %v3772 = vpop.f32.mrb[0].mxu0
        %v3773 = vpop.f32.mrb[0].mxu0
        %3774 = vdwg.mxu0
        %3775 = vrot.lane.b32.xlu0 %v3281, 32
        %v3776 = vpop.permute.xlu0 %3775
        %3777 = vrot.lane.b32.xlu0 %v3282, 32
        %v3778 = vpop.permute.xlu0 %3777
        %3779 = vrot.lane.b32.xlu0 %v3283, 32
        %v3780 = vpop.permute.xlu0 %3779
        %3781 = vrot.lane.b32.xlu0 %v3284, 32
        %v3782 = vpop.permute.xlu0 %3781
        %v3784 = vsel %vm1378, %v3776, 0
        %v3787 = vsel %vm1378, %v3778, 0
        %v3790 = vsel %vm1378, %v3780, 0
        %v3793 = vsel %vm1378, %v3782, 0
        %3795 = vmatprep.subr.bf16.mxu0 0
        %3796 = vmatpush1.bf16.xpose.msra.mxu0 %v3790
        %3797 = vmatprep.subr.bf16.mxu0 0
        %3798 = vmatpush1.bf16.xpose.msra.mxu0 %v3793
        %3799 = vmatprep.subr.bf16.mxu0 0
        %3800 = vmatpush1.bf16.xpose.msra.mxu0 0
        %3801 = vmatprep.subr.bf16.mxu0 0
        %3802 = vmatpush1.bf16.xpose.msra.mxu0 0
        %3803 = vmatprep.subr.bf16.mxu0 0
        %3804 = vmatpush1.bf16.xpose.msra.mxu0 0
        %3805 = vmatprep.subr.bf16.mxu0 0
        %3806 = vmatpush1.bf16.xpose.msra.mxu0 0
        %3807 = vmatprep.subr.bf16.mxu0 0
        %3808 = vmatpush1.bf16.xpose.msra.mxu0 0
        %3809 = vmatprep.subr.bf16.mxu0 0
        %3810 = vmatpush1.bf16.xpose.msra.mxu0 0
        %3811 = vmatprep.subr.bf16.mxu0 0
        %3812 = vmatpush1.bf16.xpose.msra.mxu0 0
        %3813 = vmatprep.subr.bf16.mxu0 0
        %3814 = vmatpush1.bf16.xpose.msra.mxu0 0
        %3815 = vmatprep.subr.bf16.mxu0 0
        %3816 = vmatpush1.bf16.xpose.msra.mxu0 0
        %3817 = vmatprep.subr.bf16.mxu0 0
        %3818 = vmatpush1.bf16.xpose.msra.mxu0 0
        %3819 = vmatprep.subr.bf16.mxu0 0
        %3820 = vmatpush1.bf16.xpose.msra.mxu0 0
        %3821 = vmatprep.subr.bf16.mxu0 0
        %3822 = vmatpush1.bf16.xpose.msra.mxu0 0
        %3823 = vmatprep.subr.bf16.mxu0 0
        %3824 = vmatpush1.bf16.xpose.msra.mxu0 0
        %3825 = vmatprep.subr.bf16.mxu0 0
        %3826 = vmatpush1.bf16.xpose.msra.mxu0 0
        %3827 = vmatprep.mubr.bf16.mxu0 0
        %3828 = vmatmul.mubr.bf16.gmra.mrb[0].mxu0 %v3784
        %v3829 = vpop.f32.mrb[0].mxu0
        %v3830 = vadd.f32 0.0, %v3829
        %v3831 = vpop.f32.mrb[0].mxu0
        %v3832 = vpop.f32.mrb[0].mxu0
        %v3833 = vadd.f32 0.0, %v3832
        %v3834 = vpop.f32.mrb[0].mxu0
        %3835 = vmatprep.mubr.bf16.mxu0 0
        %3836 = vmatmul.mubr.bf16.gmra.mrb[0].mxu0 %v3787
        %v3837 = vpop.f32.mrb[0].mxu0
        %v3838 = vadd.f32 0.0, %v3837
        %v3839 = vpop.f32.mrb[0].mxu0
        %v3840 = vpop.f32.mrb[0].mxu0
        %v3841 = vpop.f32.mrb[0].mxu0
        %3842 = vdwg.mxu0
        %v3843 = vsel %vm1439, %v3830, -inf
        %3844 = vmax.xlane.f32.xlu0 %v3843
        %v3845 = vpop.xlane.xlu0 %3844
        %v3846 = vsel %vm1439, %v3833, -inf
        %3847 = vmax.xlane.f32.xlu0 %v3846
        %v3848 = vpop.xlane.xlu0 %3847
        %v3849 = vsel %vm1446, %v3838, -inf
        %3850 = vmax.xlane.f32.xlu0 %v3849
        %v3851 = vpop.xlane.xlu0 %3850
        %v3852 = vsub.f32 %v3830, %v3845
        %v3853 = vsub.f32 %v3833, %v3848
        %v3854 = vsub.f32 %v3838, %v3851
        %v3855 = vmul.f32 %v3852, 1.442695
        %v3856 = vpow.pop %v3855
        %v3857 = vmul.f32 %v3853, 1.442695
        %v3858 = vpow.pop %v3857
        %v3859 = vmul.f32 %v3854, 1.442695
        %v3860 = vpow.pop %v3859
        %v3861 = vsel %vm1439, %v3856, 0.0
        %3862 = vadd.xlane.f32.xlu0 %v3861
        %v3863 = vpop.xlane.xlu0 %3862
        %v3864 = vsel %vm1439, %v3858, 0.0
        %3865 = vadd.xlane.f32.xlu0 %v3864
        %v3866 = vpop.xlane.xlu0 %3865
        %v3867 = vsel %vm1446, %v3860, 0.0
        %3868 = vadd.xlane.f32.xlu0 %v3867
        %v3869 = vpop.xlane.xlu0 %3868
        %v3870 = vrcp.pop %v3863
        %v3871 = vrcp.pop %v3866
        %v3872 = vrcp.pop %v3869
        %v3873 = vmul.f32 %v3856, %v3870
        %v3874 = vmul.f32 %v3858, %v3871
        %v3875 = vmul.f32 %v3860, %v3872
        %v3876 = vpack.c.bf16 %v3874, %v3873
        %v3877 = vpack.c.bf16 %v3875, %v3875
        %3878 = vrot.lane.b32.xlu0 %v3285, 32
        %v3879 = vpop.permute.xlu0 %3878
        %3880 = vrot.lane.b32.xlu0 %v3286, 32
        %v3881 = vpop.permute.xlu0 %3880
        %v3884 = vsel %vm1439, %v3876, 0
        %v3887 = vsel %vm1439, %v3877, 0
        %v3890 = vand.u32 %v3881, %v1484
        %3892 = vmatprep.subr.bf16.mxu0 0
        %3893 = vmatpush1.bf16.msra.mxu0 %v3879
        %3894 = vmatprep.subr.bf16.mxu0 0
        %3895 = vmatpush1.bf16.msra.mxu0 %v3890
        %3896 = vmatprep.subr.bf16.mxu0 0
        %3897 = vmatpush1.bf16.msra.mxu0 0
        %3898 = vmatprep.subr.bf16.mxu0 0
        %3899 = vmatpush1.bf16.msra.mxu0 0
        %3900 = vmatprep.subr.bf16.mxu0 0
        %3901 = vmatpush1.bf16.msra.mxu0 0
        %3902 = vmatprep.subr.bf16.mxu0 0
        %3903 = vmatpush1.bf16.msra.mxu0 0
        %3904 = vmatprep.subr.bf16.mxu0 0
        %3905 = vmatpush1.bf16.msra.mxu0 0
        %3906 = vmatprep.subr.bf16.mxu0 0
        %3907 = vmatpush1.bf16.msra.mxu0 0
        %3908 = vmatprep.subr.bf16.mxu0 0
        %3909 = vmatpush1.bf16.msra.mxu0 0
        %3910 = vmatprep.subr.bf16.mxu0 0
        %3911 = vmatpush1.bf16.msra.mxu0 0
        %3912 = vmatprep.subr.bf16.mxu0 0
        %3913 = vmatpush1.bf16.msra.mxu0 0
        %3914 = vmatprep.subr.bf16.mxu0 0
        %3915 = vmatpush1.bf16.msra.mxu0 0
        %3916 = vmatprep.subr.bf16.mxu0 0
        %3917 = vmatpush1.bf16.msra.mxu0 0
        %3918 = vmatprep.subr.bf16.mxu0 0
        %3919 = vmatpush1.bf16.msra.mxu0 0
        %3920 = vmatprep.subr.bf16.mxu0 0
        %3921 = vmatpush1.bf16.msra.mxu0 0
        %3922 = vmatprep.subr.bf16.mxu0 0
        %3923 = vmatpush1.bf16.msra.mxu0 0
        %3924 = vmatprep.mubr.bf16.mxu0 0
        %3925 = vmatmul.mubr.bf16.gmra.mrb[0].mxu0 %v3884
        %v3926 = vpop.f32.mrb[0].mxu0
        %v3927 = vadd.f32 0.0, %v3926
        %v3928 = vpop.f32.mrb[0].mxu0
        %v3929 = vpop.f32.mrb[0].mxu0
        %v3930 = vadd.f32 0.0, %v3929
        %v3931 = vpop.f32.mrb[0].mxu0
        %3932 = vmatprep.mubr.bf16.mxu0 0
        %3933 = vmatmul.mubr.bf16.gmra.mrb[0].mxu0 %v3887
        %v3934 = vpop.f32.mrb[0].mxu0
        %v3935 = vadd.f32 0.0, %v3934
        %v3936 = vpop.f32.mrb[0].mxu0
        %v3937 = vpop.f32.mrb[0].mxu0
        %v3938 = vpop.f32.mrb[0].mxu0
        %3939 = vdwg.mxu0
        %3943 = vrot.lane.b32.xlu0 %v3597, 32
        %v3944 = vpop.permute.xlu0 %3943
        %3945 = vrot.lane.b32.xlu0 %v3600, 32
        %v3946 = vpop.permute.xlu0 %3945
        %3947 = vrot.lane.b32.xlu0 %v3605, 32
        %v3948 = vpop.permute.xlu0 %3947
        %3955 = vrot.lane.b32.xlu0 %v3762, 64
        %v3956 = vpop.permute.xlu0 %3955
        %3957 = vrot.lane.b32.xlu0 %v3765, 64
        %v3958 = vpop.permute.xlu0 %3957
        %3959 = vrot.lane.b32.xlu0 %v3770, 64
        %v3960 = vpop.permute.xlu0 %3959
        %3967 = vrot.lane.b32.xlu0 %v3927, 96
        %v3968 = vpop.permute.xlu0 %3967
        %3969 = vrot.lane.b32.xlu0 %v3930, 96
        %v3970 = vpop.permute.xlu0 %3969
        %3971 = vrot.lane.b32.xlu0 %v3935, 96
        %v3972 = vpop.permute.xlu0 %3971
        %v3976 = vsel %vm1378, %v3426, %v3944
        %v3977 = vsel %vm1378, %v3429, %v3946
        %v3978 = vsel %vm1378, %v3434, %v3948
        %v3979 = vsel %vm2076, %v3976, %v3956
        %v3980 = vsel %vm2076, %v3977, %v3958
        %v3981 = vsel %vm2076, %v3978, %v3960
        %v3982 = vsel %vm2080, %v3979, %v3968
        %v3983 = vsel %vm2080, %v3980, %v3970
        %v3984 = vsel %vm2080, %v3981, %v3972
        %v3985 = vpack.c.bf16 %v3983, %v3982
        %v3986 = vpack.c.bf16 %v3984, %v3984
        %s3987 = scalar_lea.vmem %s4, 64
        %v3988 = vld [vmem:[%s3987] sm:$0xf]
        %v3989 = vld [vmem:[%s3987 + $0x4] sm:$0xf]
        %v3990 = vld [vmem:[%s3987 + $0x8] sm:$0xf]
        %v3991 = vld [vmem:[%s3987 + $0xc] sm:$0xf]
        %v3992 = vld [vmem:[%s3987 + $0x10] sm:$0xf]
        %v3993 = vld [vmem:[%s3987 + $0x14] sm:$0xf]
        %v3994 = vld [vmem:[%s3987 + $0x18] sm:$0xf]
        %v3995 = vld [vmem:[%s3987 + $0x1c] sm:$0xf]
        %v3996 = vld [vmem:[%s3987 + $0x20] sm:$0xf]
        %v3997 = vld [vmem:[%s3987 + $0x24] sm:$0xf]
        %v3998 = vld [vmem:[%s3987 + $0x28] sm:$0xf]
        %v3999 = vld [vmem:[%s3987 + $0x2c] sm:$0xf]
        %v4000 = vld [vmem:[%s3987 + $0x30] sm:$0xf]
        %v4001 = vld [vmem:[%s3987 + $0x34] sm:$0xf]
        %v4002 = vld [vmem:[%s3987 + $0x38] sm:$0xf]
        %v4003 = vld [vmem:[%s3987 + $0x3c] sm:$0xf]
        %s4004 = scalar_lea.vmem %s5, 1
        %v4005 = vld [vmem:[%s4004] sm:$0x1]
        %v4007 = vlaneseq
        %v4008 = vshrl.u32 %v4007, 7
        %v4009 = vsub.s32 0, %v4008
        %v4010 = vrot.slane %v4005, %v4009
        %v4028 = vunpack.c.l.b16 %v3988
        %v4029 = vunpack.c.l.b16 %v3989
        %v4030 = vunpack.c.l.b16 %v3990
        %v4031 = vunpack.c.l.b16 %v3991
        %v4032 = vunpack.c.l.b16 %v3992
        %v4033 = vunpack.c.l.b16 %v3993
        %v4034 = vunpack.c.l.b16 %v3994
        %v4035 = vunpack.c.l.b16 %v3995
        %v4036 = vunpack.c.l.b16 %v3996
        %v4037 = vunpack.c.l.b16 %v3997
        %v4038 = vunpack.c.l.b16 %v3998
        %v4039 = vunpack.c.l.b16 %v3999
        %v4040 = vunpack.c.l.b16 %v4000
        %v4041 = vunpack.c.l.b16 %v4001
        %v4042 = vunpack.c.l.b16 %v4002
        %v4043 = vunpack.c.l.b16 %v4003
        %v4044 = vpack.c.b16 %v4029, %v4028
        %v4045 = vpack.c.b16 %v4031, %v4030
        %v4046 = vpack.c.b16 %v4033, %v4032
        %v4047 = vpack.c.b16 %v4035, %v4034
        %v4048 = vpack.c.b16 %v4037, %v4036
        %v4049 = vpack.c.b16 %v4039, %v4038
        %v4050 = vpack.c.b16 %v4041, %v4040
        %v4051 = vpack.c.b16 %v4043, %v4042
        %4060 = vmatprep.subr.bf16.mxu0 0
        %4061 = vmatpush1.bf16.msra.mxu0 %v4044
        %4062 = vmatprep.subr.bf16.mxu0 0
        %4063 = vmatpush1.bf16.msra.mxu0 %v4045
        %4064 = vmatprep.subr.bf16.mxu0 0
        %4065 = vmatpush1.bf16.msra.mxu0 %v4046
        %4066 = vmatprep.subr.bf16.mxu0 0
        %4067 = vmatpush1.bf16.msra.mxu0 %v4047
        %4068 = vmatprep.subr.bf16.mxu0 0
        %4069 = vmatpush1.bf16.msra.mxu0 %v4048
        %4070 = vmatprep.subr.bf16.mxu0 0
        %4071 = vmatpush1.bf16.msra.mxu0 %v4049
        %4072 = vmatprep.subr.bf16.mxu0 0
        %4073 = vmatpush1.bf16.msra.mxu0 %v4050
        %4074 = vmatprep.subr.bf16.mxu0 0
        %4075 = vmatpush1.bf16.msra.mxu0 %v4051
        %4076 = vmatprep.subr.bf16.mxu0 0
        %4077 = vmatpush1.bf16.msra.mxu0 0
        %4078 = vmatprep.subr.bf16.mxu0 0
        %4079 = vmatpush1.bf16.msra.mxu0 0
        %4080 = vmatprep.subr.bf16.mxu0 0
        %4081 = vmatpush1.bf16.msra.mxu0 0
        %4082 = vmatprep.subr.bf16.mxu0 0
        %4083 = vmatpush1.bf16.msra.mxu0 0
        %4084 = vmatprep.subr.bf16.mxu0 0
        %4085 = vmatpush1.bf16.msra.mxu0 0
        %4086 = vmatprep.subr.bf16.mxu0 0
        %4087 = vmatpush1.bf16.msra.mxu0 0
        %4088 = vmatprep.subr.bf16.mxu0 0
        %4089 = vmatpush1.bf16.msra.mxu0 0
        %4090 = vmatprep.subr.bf16.mxu0 0
        %4091 = vmatpush1.bf16.msra.mxu0 0
        %4092 = vmatprep.mubr.bf16.mxu0 0
        %4093 = vmatmul.mubr.bf16.gmra.mrb[0].mxu0 %v3985
        %v4094 = vpop.f32.mrb[0].mxu0
        %v4095 = vadd.f32 %v4010, %v4094
        %v4096 = vpop.f32.mrb[0].mxu0
        %v4097 = vpop.f32.mrb[0].mxu0
        %v4098 = vadd.f32 %v4010, %v4097
        %v4099 = vpop.f32.mrb[0].mxu0
        %4100 = vmatprep.mubr.bf16.mxu0 0
        %4101 = vmatmul.mubr.bf16.gmra.mrb[0].mxu0 %v3986
        %v4102 = vpop.f32.mrb[0].mxu0
        %v4103 = vadd.f32 %v4010, %v4102
        %v4104 = vpop.f32.mrb[0].mxu0
        %v4105 = vpop.f32.mrb[0].mxu0
        %v4106 = vpop.f32.mrb[0].mxu0
        %4107 = vdwg.mxu0
        %v4108 = vadd.f32 %v4095, %v3016
        %v4109 = vadd.f32 %v4098, %v3017
        %v4110 = vadd.f32 %v4103, %v3018
        %s4111 = scalar_lea.vmem %s6, 1
        %v4112 = vld [vmem:[%s4111] sm:$0x1]
        %s4113 = scalar_lea.vmem %s7, 1
        %v4114 = vld [vmem:[%s4113] sm:$0x1]
        %4115 = vadd.xlane.f32.xlu0 %v4108
        %v4116 = vpop.xlane.xlu0 %4115
        %4117 = vadd.xlane.f32.xlu0 %v4109
        %v4118 = vpop.xlane.xlu0 %4117
        %v4119 = vsel %vm1482, %v4110, 0.0
        %4120 = vadd.xlane.f32.xlu0 %v4119
        %v4121 = vpop.xlane.xlu0 %4120
        %v4122 = vmul.f32 %v4116, %v2217
        %v4123 = vmul.f32 %v4118, %v2217
        %v4124 = vmul.f32 %v4121, %v2217
        %v4125 = vsub.f32 %v4108, %v4122
        %v4126 = vsub.f32 %v4109, %v4123
        %v4127 = vsub.f32 %v4110, %v4124
        %v4128 = vmul.f32 %v4125, %v4125
        %v4129 = vmul.f32 %v4126, %v4126
        %v4130 = vmul.f32 %v4127, %v4127
        %4131 = vadd.xlane.f32.xlu0 %v4128
        %v4132 = vpop.xlane.xlu0 %4131
        %4133 = vadd.xlane.f32.xlu0 %v4129
        %v4134 = vpop.xlane.xlu0 %4133
        %v4135 = vsel %vm1482, %v4130, 0.0
        %4136 = vadd.xlane.f32.xlu0 %v4135
        %v4137 = vpop.xlane.xlu0 %4136
        %v4138 = vmul.f32 %v4132, %v2217
        %v4139 = vmul.f32 %v4134, %v2217
        %v4140 = vmul.f32 %v4137, %v2217
        %v4141 = vadd.f32 %v4138, 1e-05
        %v4142 = vadd.f32 %v4139, 1e-05
        %v4143 = vadd.f32 %v4140, 1e-05
        %v4144 = vrsqrt.pop %v4141
        %v4145 = vrsqrt.pop %v4142
        %v4146 = vrsqrt.pop %v4143
        %v4147 = vmul.f32 %v4125, %v4144
        %v4148 = vmul.f32 %v4126, %v4145
        %v4149 = vmul.f32 %v4127, %v4146
        %v4151 = vlaneseq
        %v4152 = vshrl.u32 %v4151, 7
        %v4153 = vsub.s32 0, %v4152
        %v4154 = vrot.slane %v4112, %v4153
        %v4156 = vmul.f32 %v4147, %v4154
        %v4157 = vmul.f32 %v4148, %v4154
        %v4158 = vmul.f32 %v4149, %v4154
        %v4160 = vlaneseq
        %v4161 = vshrl.u32 %v4160, 7
        %v4162 = vsub.s32 0, %v4161
        %v4163 = vrot.slane %v4114, %v4162
        %v4165 = vadd.f32 %v4156, %v4163
        %v4166 = vadd.f32 %v4157, %v4163
        %v4167 = vadd.f32 %v4158, %v4163
        %v4168 = vpack.c.bf16 %v4166, %v4165
        %v4169 = vpack.c.bf16 %v4167, %v4167
        %s4170 = scalar_lea.vmem %s8, 256
        %v4171 = vld [vmem:[%s4170] sm:$0xff]
        %v4172 = vld [vmem:[%s4170 + $0x8] sm:$0xff]
        %v4173 = vld [vmem:[%s4170 + $0x10] sm:$0xff]
        %v4174 = vld [vmem:[%s4170 + $0x18] sm:$0xff]
        %v4175 = vld [vmem:[%s4170 + $0x20] sm:$0xff]
        %v4176 = vld [vmem:[%s4170 + $0x28] sm:$0xff]
        %v4177 = vld [vmem:[%s4170 + $0x30] sm:$0xff]
        %v4178 = vld [vmem:[%s4170 + $0x38] sm:$0xff]
        %v4179 = vld [vmem:[%s4170 + $0x40] sm:$0xff]
        %v4180 = vld [vmem:[%s4170 + $0x48] sm:$0xff]
        %v4181 = vld [vmem:[%s4170 + $0x50] sm:$0xff]
        %v4182 = vld [vmem:[%s4170 + $0x58] sm:$0xff]
        %v4183 = vld [vmem:[%s4170 + $0x60] sm:$0xff]
        %v4184 = vld [vmem:[%s4170 + $0x68] sm:$0xff]
        %v4185 = vld [vmem:[%s4170 + $0x70] sm:$0xff]
        %v4186 = vld [vmem:[%s4170 + $0x78] sm:$0xff]
        %v4187 = vld [vmem:[%s4170 + $0x80] sm:$0xff]
        %v4188 = vld [vmem:[%s4170 + $0x88] sm:$0xff]
        %v4189 = vld [vmem:[%s4170 + $0x90] sm:$0xff]
        %v4190 = vld [vmem:[%s4170 + $0x98] sm:$0xff]
        %v4191 = vld [vmem:[%s4170 + $0xa0] sm:$0xff]
        %v4192 = vld [vmem:[%s4170 + $0xa8] sm:$0xff]
        %v4193 = vld [vmem:[%s4170 + $0xb0] sm:$0xff]
        %v4194 = vld [vmem:[%s4170 + $0xb8] sm:$0xff]
        %v4195 = vld [vmem:[%s4170 + $0xc0] sm:$0xff]
        %v4196 = vld [vmem:[%s4170 + $0xc8] sm:$0xff]
        %v4197 = vld [vmem:[%s4170 + $0xd0] sm:$0xff]
        %v4198 = vld [vmem:[%s4170 + $0xd8] sm:$0xff]
        %v4199 = vld [vmem:[%s4170 + $0xe0] sm:$0xff]
        %v4200 = vld [vmem:[%s4170 + $0xe8] sm:$0xff]
        %v4201 = vld [vmem:[%s4170 + $0xf0] sm:$0xff]
        %v4202 = vld [vmem:[%s4170 + $0xf8] sm:$0xff]
        %s4203 = scalar_lea.vmem %s9, 4
        %v4204 = vld [vmem:[%s4203] sm:$0xf]
        %v4206 = vlaneseq
        %v4207 = vshrl.u32 %v4206, 7
        %v4208 = vsub.s32 0, %v4207
        %v4209 = vrot.slane %v4204, %v4208
        %v4210 = vlaneseq
        %v4211 = vshrl.u32 %v4210, 7
        %v4212 = vsub.s32 1, %v4211
        %v4213 = vrot.slane %v4204, %v4212
        %v4214 = vlaneseq
        %v4215 = vshrl.u32 %v4214, 7
        %v4216 = vsub.s32 2, %v4215
        %v4217 = vrot.slane %v4204, %v4216
        %v4218 = vlaneseq
        %v4219 = vshrl.u32 %v4218, 7
        %v4220 = vsub.s32 3, %v4219
        %v4221 = vrot.slane %v4204, %v4220
        %v4258 = vunpack.c.l.b16 %v4171
        %v4259 = vunpack.c.h.b16 %v4171
        %v4260 = vunpack.c.l.b16 %v4172
        %v4261 = vunpack.c.h.b16 %v4172
        %v4262 = vunpack.c.l.b16 %v4173
        %v4263 = vunpack.c.h.b16 %v4173
        %v4264 = vunpack.c.l.b16 %v4174
        %v4265 = vunpack.c.h.b16 %v4174
        %v4266 = vunpack.c.l.b16 %v4175
        %v4267 = vunpack.c.h.b16 %v4175
        %v4268 = vunpack.c.l.b16 %v4176
        %v4269 = vunpack.c.h.b16 %v4176
        %v4270 = vunpack.c.l.b16 %v4177
        %v4271 = vunpack.c.h.b16 %v4177
        %v4272 = vunpack.c.l.b16 %v4178
        %v4273 = vunpack.c.h.b16 %v4178
        %v4274 = vunpack.c.l.b16 %v4179
        %v4275 = vunpack.c.h.b16 %v4179
        %v4276 = vunpack.c.l.b16 %v4180
        %v4277 = vunpack.c.h.b16 %v4180
        %v4278 = vunpack.c.l.b16 %v4181
        %v4279 = vunpack.c.h.b16 %v4181
        %v4280 = vunpack.c.l.b16 %v4182
        %v4281 = vunpack.c.h.b16 %v4182
        %v4282 = vunpack.c.l.b16 %v4183
        %v4283 = vunpack.c.h.b16 %v4183
        %v4284 = vunpack.c.l.b16 %v4184
        %v4285 = vunpack.c.h.b16 %v4184
        %v4286 = vunpack.c.l.b16 %v4185
        %v4287 = vunpack.c.h.b16 %v4185
        %v4288 = vunpack.c.l.b16 %v4186
        %v4289 = vunpack.c.h.b16 %v4186
        %v4290 = vunpack.c.l.b16 %v4187
        %v4291 = vunpack.c.h.b16 %v4187
        %v4292 = vunpack.c.l.b16 %v4188
        %v4293 = vunpack.c.h.b16 %v4188
        %v4294 = vunpack.c.l.b16 %v4189
        %v4295 = vunpack.c.h.b16 %v4189
        %v4296 = vunpack.c.l.b16 %v4190
        %v4297 = vunpack.c.h.b16 %v4190
        %v4298 = vunpack.c.l.b16 %v4191
        %v4299 = vunpack.c.h.b16 %v4191
        %v4300 = vunpack.c.l.b16 %v4192
        %v4301 = vunpack.c.h.b16 %v4192
        %v4302 = vunpack.c.l.b16 %v4193
        %v4303 = vunpack.c.h.b16 %v4193
        %v4304 = vunpack.c.l.b16 %v4194
        %v4305 = vunpack.c.h.b16 %v4194
        %v4306 = vunpack.c.l.b16 %v4195
        %v4307 = vunpack.c.h.b16 %v4195
        %v4308 = vunpack.c.l.b16 %v4196
        %v4309 = vunpack.c.h.b16 %v4196
        %v4310 = vunpack.c.l.b16 %v4197
        %v4311 = vunpack.c.h.b16 %v4197
        %v4312 = vunpack.c.l.b16 %v4198
        %v4313 = vunpack.c.h.b16 %v4198
        %v4314 = vunpack.c.l.b16 %v4199
        %v4315 = vunpack.c.h.b16 %v4199
        %v4316 = vunpack.c.l.b16 %v4200
        %v4317 = vunpack.c.h.b16 %v4200
        %v4318 = vunpack.c.l.b16 %v4201
        %v4319 = vunpack.c.h.b16 %v4201
        %v4320 = vunpack.c.l.b16 %v4202
        %v4321 = vunpack.c.h.b16 %v4202
        %v4322 = vpack.c.b16 %v4262, %v4258
        %v4323 = vpack.c.b16 %v4263, %v4259
        %v4324 = vpack.c.b16 %v4264, %v4260
        %v4325 = vpack.c.b16 %v4265, %v4261
        %v4326 = vpack.c.b16 %v4270, %v4266
        %v4327 = vpack.c.b16 %v4271, %v4267
        %v4328 = vpack.c.b16 %v4272, %v4268
        %v4329 = vpack.c.b16 %v4273, %v4269
        %v4330 = vpack.c.b16 %v4278, %v4274
        %v4331 = vpack.c.b16 %v4279, %v4275
        %v4332 = vpack.c.b16 %v4280, %v4276
        %v4333 = vpack.c.b16 %v4281, %v4277
        %v4334 = vpack.c.b16 %v4286, %v4282
        %v4335 = vpack.c.b16 %v4287, %v4283
        %v4336 = vpack.c.b16 %v4288, %v4284
        %v4337 = vpack.c.b16 %v4289, %v4285
        %v4338 = vpack.c.b16 %v4294, %v4290
        %v4339 = vpack.c.b16 %v4295, %v4291
        %v4340 = vpack.c.b16 %v4296, %v4292
        %v4341 = vpack.c.b16 %v4297, %v4293
        %v4342 = vpack.c.b16 %v4302, %v4298
        %v4343 = vpack.c.b16 %v4303, %v4299
        %v4344 = vpack.c.b16 %v4304, %v4300
        %v4345 = vpack.c.b16 %v4305, %v4301
        %v4346 = vpack.c.b16 %v4310, %v4306
        %v4347 = vpack.c.b16 %v4311, %v4307
        %v4348 = vpack.c.b16 %v4312, %v4308
        %v4349 = vpack.c.b16 %v4313, %v4309
        %v4350 = vpack.c.b16 %v4318, %v4314
        %v4351 = vpack.c.b16 %v4319, %v4315
        %v4352 = vpack.c.b16 %v4320, %v4316
        %v4353 = vpack.c.b16 %v4321, %v4317
        %4386 = vmatprep.subr.bf16.mxu0 %v4323
        %4387 = vmatpush1.bf16.msra.mxu0 %v4322
        %4388 = vmatprep.subr.bf16.mxu0 %v4327
        %4389 = vmatpush1.bf16.msra.mxu0 %v4326
        %4390 = vmatprep.subr.bf16.mxu0 %v4331
        %4391 = vmatpush1.bf16.msra.mxu0 %v4330
        %4392 = vmatprep.subr.bf16.mxu0 %v4335
        %4393 = vmatpush1.bf16.msra.mxu0 %v4334
        %4394 = vmatprep.subr.bf16.mxu0 %v4339
        %4395 = vmatpush1.bf16.msra.mxu0 %v4338
        %4396 = vmatprep.subr.bf16.mxu0 %v4343
        %4397 = vmatpush1.bf16.msra.mxu0 %v4342
        %4398 = vmatprep.subr.bf16.mxu0 %v4347
        %4399 = vmatpush1.bf16.msra.mxu0 %v4346
        %4400 = vmatprep.subr.bf16.mxu0 %v4351
        %4401 = vmatpush1.bf16.msra.mxu0 %v4350
        %4402 = vmatprep.subr.bf16.mxu0 0
        %4403 = vmatpush1.bf16.msra.mxu0 0
        %4404 = vmatprep.subr.bf16.mxu0 0
        %4405 = vmatpush1.bf16.msra.mxu0 0
        %4406 = vmatprep.subr.bf16.mxu0 0
        %4407 = vmatpush1.bf16.msra.mxu0 0
        %4408 = vmatprep.subr.bf16.mxu0 0
        %4409 = vmatpush1.bf16.msra.mxu0 0
        %4410 = vmatprep.subr.bf16.mxu0 0
        %4411 = vmatpush1.bf16.msra.mxu0 0
        %4412 = vmatprep.subr.bf16.mxu0 0
        %4413 = vmatpush1.bf16.msra.mxu0 0
        %4414 = vmatprep.subr.bf16.mxu0 0
        %4415 = vmatpush1.bf16.msra.mxu0 0
        %4416 = vmatprep.subr.bf16.mxu0 0
        %4417 = vmatpush1.bf16.msra.mxu0 0
        %4418 = vmatprep.mubr.bf16.mxu0 0
        %4419 = vmatmul.mubr.bf16.gmra.mrb[0].mxu0 %v4168
        %v4420 = vpop.f32.mrb[0].mxu0
        %v4421 = vadd.f32 %v4209, %v4420
        %v4422 = vpop.f32.mrb[0].mxu0
        %v4423 = vadd.f32 %v4213, %v4422
        %v4424 = vpop.f32.mrb[0].mxu0
        %v4425 = vadd.f32 %v4209, %v4424
        %v4426 = vpop.f32.mrb[0].mxu0
        %v4427 = vadd.f32 %v4213, %v4426
        %4428 = vmatprep.mubr.bf16.mxu0 0
        %4429 = vmatmul.mubr.bf16.gmra.mrb[0].mxu0 %v4169
        %v4430 = vpop.f32.mrb[0].mxu0
        %v4431 = vadd.f32 %v4209, %v4430
        %v4432 = vpop.f32.mrb[0].mxu0
        %v4433 = vadd.f32 %v4213, %v4432
        %v4434 = vpop.f32.mrb[0].mxu0
        %v4435 = vpop.f32.mrb[0].mxu0
        %4436 = vdwg.mxu0
        %4437 = vmatprep.subr.bf16.mxu0 %v4325
        %4438 = vmatpush1.bf16.msra.mxu0 %v4324
        %4439 = vmatprep.subr.bf16.mxu0 %v4329
        %4440 = vmatpush1.bf16.msra.mxu0 %v4328
        %4441 = vmatprep.subr.bf16.mxu0 %v4333
        %4442 = vmatpush1.bf16.msra.mxu0 %v4332
        %4443 = vmatprep.subr.bf16.mxu0 %v4337
        %4444 = vmatpush1.bf16.msra.mxu0 %v4336
        %4445 = vmatprep.subr.bf16.mxu0 %v4341
        %4446 = vmatpush1.bf16.msra.mxu0 %v4340
        %4447 = vmatprep.subr.bf16.mxu0 %v4345
        %4448 = vmatpush1.bf16.msra.mxu0 %v4344
        %4449 = vmatprep.subr.bf16.mxu0 %v4349
        %4450 = vmatpush1.bf16.msra.mxu0 %v4348
        %4451 = vmatprep.subr.bf16.mxu0 %v4353
        %4452 = vmatpush1.bf16.msra.mxu0 %v4352
        %4453 = vmatprep.subr.bf16.mxu0 0
        %4454 = vmatpush1.bf16.msra.mxu0 0
        %4455 = vmatprep.subr.bf16.mxu0 0
        %4456 = vmatpush1.bf16.msra.mxu0 0
        %4457 = vmatprep.subr.bf16.mxu0 0
        %4458 = vmatpush1.bf16.msra.mxu0 0
        %4459 = vmatprep.subr.bf16.mxu0 0
        %4460 = vmatpush1.bf16.msra.mxu0 0
        %4461 = vmatprep.subr.bf16.mxu0 0
        %4462 = vmatpush1.bf16.msra.mxu0 0
        %4463 = vmatprep.subr.bf16.mxu0 0
        %4464 = vmatpush1.bf16.msra.mxu0 0
        %4465 = vmatprep.subr.bf16.mxu0 0
        %4466 = vmatpush1.bf16.msra.mxu0 0
        %4467 = vmatprep.subr.bf16.mxu0 0
        %4468 = vmatpush1.bf16.msra.mxu0 0
        %4469 = vmatprep.mubr.bf16.mxu0 0
        %4470 = vmatmul.mubr.bf16.gmra.mrb[0].mxu0 %v4168
        %v4471 = vpop.f32.mrb[0].mxu0
        %v4472 = vadd.f32 %v4217, %v4471
        %v4473 = vpop.f32.mrb[0].mxu0
        %v4474 = vadd.f32 %v4221, %v4473
        %v4475 = vpop.f32.mrb[0].mxu0
        %v4476 = vadd.f32 %v4217, %v4475
        %v4477 = vpop.f32.mrb[0].mxu0
        %v4478 = vadd.f32 %v4221, %v4477
        %4479 = vmatprep.mubr.bf16.mxu0 0
        %4480 = vmatmul.mubr.bf16.gmra.mrb[0].mxu0 %v4169
        %v4481 = vpop.f32.mrb[0].mxu0
        %v4482 = vadd.f32 %v4217, %v4481
        %v4483 = vpop.f32.mrb[0].mxu0
        %v4484 = vadd.f32 %v4221, %v4483
        %v4485 = vpop.f32.mrb[0].mxu0
        %v4486 = vpop.f32.mrb[0].mxu0
        %4487 = vdwg.mxu0
        %v4488 = vmax.f32 %v4421, 0.0
        %v4489 = vmax.f32 %v4423, 0.0
        %v4490 = vmax.f32 %v4472, 0.0
        %v4491 = vmax.f32 %v4474, 0.0
        %v4492 = vmax.f32 %v4425, 0.0
        %v4493 = vmax.f32 %v4427, 0.0
        %v4494 = vmax.f32 %v4476, 0.0
        %v4495 = vmax.f32 %v4478, 0.0
        %v4496 = vmax.f32 %v4431, 0.0
        %v4497 = vmax.f32 %v4433, 0.0
        %v4498 = vmax.f32 %v4482, 0.0
        %v4499 = vmax.f32 %v4484, 0.0
        %v4500 = vpack.c.bf16 %v4492, %v4488
        %v4501 = vpack.c.bf16 %v4493, %v4489
        %v4502 = vpack.c.bf16 %v4494, %v4490
        %v4503 = vpack.c.bf16 %v4495, %v4491
        %v4504 = vpack.c.bf16 %v4496, %v4496
        %v4505 = vpack.c.bf16 %v4497, %v4497
        %v4506 = vpack.c.bf16 %v4498, %v4498
        %v4507 = vpack.c.bf16 %v4499, %v4499
        %s4508 = scalar_lea.vmem %s10, 256
        %v4509 = vld [vmem:[%s4508] sm:$0xf]
        %v4510 = vld [vmem:[%s4508 + $0x4] sm:$0xf]
        %v4511 = vld [vmem:[%s4508 + $0x8] sm:$0xf]
        %v4512 = vld [vmem:[%s4508 + $0xc] sm:$0xf]
        %v4513 = vld [vmem:[%s4508 + $0x10] sm:$0xf]
        %v4514 = vld [vmem:[%s4508 + $0x14] sm:$0xf]
        %v4515 = vld [vmem:[%s4508 + $0x18] sm:$0xf]
        %v4516 = vld [vmem:[%s4508 + $0x1c] sm:$0xf]
        %v4517 = vld [vmem:[%s4508 + $0x20] sm:$0xf]
        %v4518 = vld [vmem:[%s4508 + $0x24] sm:$0xf]
        %v4519 = vld [vmem:[%s4508 + $0x28] sm:$0xf]
        %v4520 = vld [vmem:[%s4508 + $0x2c] sm:$0xf]
        %v4521 = vld [vmem:[%s4508 + $0x30] sm:$0xf]
        %v4522 = vld [vmem:[%s4508 + $0x34] sm:$0xf]
        %v4523 = vld [vmem:[%s4508 + $0x38] sm:$0xf]
        %v4524 = vld [vmem:[%s4508 + $0x3c] sm:$0xf]
        %v4525 = vld [vmem:[%s4508 + $0x40] sm:$0xf]
        %v4526 = vld [vmem:[%s4508 + $0x44] sm:$0xf]
        %v4527 = vld [vmem:[%s4508 + $0x48] sm:$0xf]
        %v4528 = vld [vmem:[%s4508 + $0x4c] sm:$0xf]
        %v4529 = vld [vmem:[%s4508 + $0x50] sm:$0xf]
        %v4530 = vld [vmem:[%s4508 + $0x54] sm:$0xf]
        %v4531 = vld [vmem:[%s4508 + $0x58] sm:$0xf]
        %v4532 = vld [vmem:[%s4508 + $0x5c] sm:$0xf]
        %v4533 = vld [vmem:[%s4508 + $0x60] sm:$0xf]
        %v4534 = vld [vmem:[%s4508 + $0x64] sm:$0xf]
        %v4535 = vld [vmem:[%s4508 + $0x68] sm:$0xf]
        %v4536 = vld [vmem:[%s4508 + $0x6c] sm:$0xf]
        %v4537 = vld [vmem:[%s4508 + $0x70] sm:$0xf]
        %v4538 = vld [vmem:[%s4508 + $0x74] sm:$0xf]
        %v4539 = vld [vmem:[%s4508 + $0x78] sm:$0xf]
        %v4540 = vld [vmem:[%s4508 + $0x7c] sm:$0xf]
        %v4541 = vld [vmem:[%s4508 + $0x80] sm:$0xf]
        %v4542 = vld [vmem:[%s4508 + $0x84] sm:$0xf]
        %v4543 = vld [vmem:[%s4508 + $0x88] sm:$0xf]
        %v4544 = vld [vmem:[%s4508 + $0x8c] sm:$0xf]
        %v4545 = vld [vmem:[%s4508 + $0x90] sm:$0xf]
        %v4546 = vld [vmem:[%s4508 + $0x94] sm:$0xf]
        %v4547 = vld [vmem:[%s4508 + $0x98] sm:$0xf]
        %v4548 = vld [vmem:[%s4508 + $0x9c] sm:$0xf]
        %v4549 = vld [vmem:[%s4508 + $0xa0] sm:$0xf]
        %v4550 = vld [vmem:[%s4508 + $0xa4] sm:$0xf]
        %v4551 = vld [vmem:[%s4508 + $0xa8] sm:$0xf]
        %v4552 = vld [vmem:[%s4508 + $0xac] sm:$0xf]
        %v4553 = vld [vmem:[%s4508 + $0xb0] sm:$0xf]
        %v4554 = vld [vmem:[%s4508 + $0xb4] sm:$0xf]
        %v4555 = vld [vmem:[%s4508 + $0xb8] sm:$0xf]
        %v4556 = vld [vmem:[%s4508 + $0xbc] sm:$0xf]
        %v4557 = vld [vmem:[%s4508 + $0xc0] sm:$0xf]
        %v4558 = vld [vmem:[%s4508 + $0xc4] sm:$0xf]
        %v4559 = vld [vmem:[%s4508 + $0xc8] sm:$0xf]
        %v4560 = vld [vmem:[%s4508 + $0xcc] sm:$0xf]
        %v4561 = vld [vmem:[%s4508 + $0xd0] sm:$0xf]
        %v4562 = vld [vmem:[%s4508 + $0xd4] sm:$0xf]
        %v4563 = vld [vmem:[%s4508 + $0xd8] sm:$0xf]
        %v4564 = vld [vmem:[%s4508 + $0xdc] sm:$0xf]
        %v4565 = vld [vmem:[%s4508 + $0xe0] sm:$0xf]
        %v4566 = vld [vmem:[%s4508 + $0xe4] sm:$0xf]
        %v4567 = vld [vmem:[%s4508 + $0xe8] sm:$0xf]
        %v4568 = vld [vmem:[%s4508 + $0xec] sm:$0xf]
        %v4569 = vld [vmem:[%s4508 + $0xf0] sm:$0xf]
        %v4570 = vld [vmem:[%s4508 + $0xf4] sm:$0xf]
        %v4571 = vld [vmem:[%s4508 + $0xf8] sm:$0xf]
        %v4572 = vld [vmem:[%s4508 + $0xfc] sm:$0xf]
        %s4573 = scalar_lea.vmem %s11, 1
        %v4574 = vld [vmem:[%s4573] sm:$0x1]
        %v4576 = vlaneseq
        %v4577 = vshrl.u32 %v4576, 7
        %v4578 = vsub.s32 0, %v4577
        %v4579 = vrot.slane %v4574, %v4578
        %v4645 = vunpack.c.l.b16 %v4509
        %v4646 = vunpack.c.l.b16 %v4510
        %v4647 = vunpack.c.l.b16 %v4511
        %v4648 = vunpack.c.l.b16 %v4512
        %v4649 = vunpack.c.l.b16 %v4513
        %v4650 = vunpack.c.l.b16 %v4514
        %v4651 = vunpack.c.l.b16 %v4515
        %v4652 = vunpack.c.l.b16 %v4516
        %v4653 = vunpack.c.l.b16 %v4517
        %v4654 = vunpack.c.l.b16 %v4518
        %v4655 = vunpack.c.l.b16 %v4519
        %v4656 = vunpack.c.l.b16 %v4520
        %v4657 = vunpack.c.l.b16 %v4521
        %v4658 = vunpack.c.l.b16 %v4522
        %v4659 = vunpack.c.l.b16 %v4523
        %v4660 = vunpack.c.l.b16 %v4524
        %v4661 = vunpack.c.l.b16 %v4525
        %v4662 = vunpack.c.l.b16 %v4526
        %v4663 = vunpack.c.l.b16 %v4527
        %v4664 = vunpack.c.l.b16 %v4528
        %v4665 = vunpack.c.l.b16 %v4529
        %v4666 = vunpack.c.l.b16 %v4530
        %v4667 = vunpack.c.l.b16 %v4531
        %v4668 = vunpack.c.l.b16 %v4532
        %v4669 = vunpack.c.l.b16 %v4533
        %v4670 = vunpack.c.l.b16 %v4534
        %v4671 = vunpack.c.l.b16 %v4535
        %v4672 = vunpack.c.l.b16 %v4536
        %v4673 = vunpack.c.l.b16 %v4537
        %v4674 = vunpack.c.l.b16 %v4538
        %v4675 = vunpack.c.l.b16 %v4539
        %v4676 = vunpack.c.l.b16 %v4540
        %v4677 = vunpack.c.l.b16 %v4541
        %v4678 = vunpack.c.l.b16 %v4542
        %v4679 = vunpack.c.l.b16 %v4543
        %v4680 = vunpack.c.l.b16 %v4544
        %v4681 = vunpack.c.l.b16 %v4545
        %v4682 = vunpack.c.l.b16 %v4546
        %v4683 = vunpack.c.l.b16 %v4547
        %v4684 = vunpack.c.l.b16 %v4548
        %v4685 = vunpack.c.l.b16 %v4549
        %v4686 = vunpack.c.l.b16 %v4550
        %v4687 = vunpack.c.l.b16 %v4551
        %v4688 = vunpack.c.l.b16 %v4552
        %v4689 = vunpack.c.l.b16 %v4553
        %v4690 = vunpack.c.l.b16 %v4554
        %v4691 = vunpack.c.l.b16 %v4555
        %v4692 = vunpack.c.l.b16 %v4556
        %v4693 = vunpack.c.l.b16 %v4557
        %v4694 = vunpack.c.l.b16 %v4558
        %v4695 = vunpack.c.l.b16 %v4559
        %v4696 = vunpack.c.l.b16 %v4560
        %v4697 = vunpack.c.l.b16 %v4561
        %v4698 = vunpack.c.l.b16 %v4562
        %v4699 = vunpack.c.l.b16 %v4563
        %v4700 = vunpack.c.l.b16 %v4564
        %v4701 = vunpack.c.l.b16 %v4565
        %v4702 = vunpack.c.l.b16 %v4566
        %v4703 = vunpack.c.l.b16 %v4567
        %v4704 = vunpack.c.l.b16 %v4568
        %v4705 = vunpack.c.l.b16 %v4569
        %v4706 = vunpack.c.l.b16 %v4570
        %v4707 = vunpack.c.l.b16 %v4571
        %v4708 = vunpack.c.l.b16 %v4572
        %v4709 = vpack.c.b16 %v4646, %v4645
        %v4710 = vpack.c.b16 %v4648, %v4647
        %v4711 = vpack.c.b16 %v4650, %v4649
        %v4712 = vpack.c.b16 %v4652, %v4651
        %v4713 = vpack.c.b16 %v4654, %v4653
        %v4714 = vpack.c.b16 %v4656, %v4655
        %v4715 = vpack.c.b16 %v4658, %v4657
        %v4716 = vpack.c.b16 %v4660, %v4659
        %v4717 = vpack.c.b16 %v4662, %v4661
        %v4718 = vpack.c.b16 %v4664, %v4663
        %v4719 = vpack.c.b16 %v4666, %v4665
        %v4720 = vpack.c.b16 %v4668, %v4667
        %v4721 = vpack.c.b16 %v4670, %v4669
        %v4722 = vpack.c.b16 %v4672, %v4671
        %v4723 = vpack.c.b16 %v4674, %v4673
        %v4724 = vpack.c.b16 %v4676, %v4675
        %v4725 = vpack.c.b16 %v4678, %v4677
        %v4726 = vpack.c.b16 %v4680, %v4679
        %v4727 = vpack.c.b16 %v4682, %v4681
        %v4728 = vpack.c.b16 %v4684, %v4683
        %v4729 = vpack.c.b16 %v4686, %v4685
        %v4730 = vpack.c.b16 %v4688, %v4687
        %v4731 = vpack.c.b16 %v4690, %v4689
        %v4732 = vpack.c.b16 %v4692, %v4691
        %v4733 = vpack.c.b16 %v4694, %v4693
        %v4734 = vpack.c.b16 %v4696, %v4695
        %v4735 = vpack.c.b16 %v4698, %v4697
        %v4736 = vpack.c.b16 %v4700, %v4699
        %v4737 = vpack.c.b16 %v4702, %v4701
        %v4738 = vpack.c.b16 %v4704, %v4703
        %v4739 = vpack.c.b16 %v4706, %v4705
        %v4740 = vpack.c.b16 %v4708, %v4707
        %4773 = vmatprep.subr.bf16.mxu0 0
        %4774 = vmatpush1.bf16.msra.mxu0 %v4709
        %4775 = vmatprep.subr.bf16.mxu0 0
        %4776 = vmatpush1.bf16.msra.mxu0 %v4710
        %4777 = vmatprep.subr.bf16.mxu0 0
        %4778 = vmatpush1.bf16.msra.mxu0 %v4711
        %4779 = vmatprep.subr.bf16.mxu0 0
        %4780 = vmatpush1.bf16.msra.mxu0 %v4712
        %4781 = vmatprep.subr.bf16.mxu0 0
        %4782 = vmatpush1.bf16.msra.mxu0 %v4713
        %4783 = vmatprep.subr.bf16.mxu0 0
        %4784 = vmatpush1.bf16.msra.mxu0 %v4714
        %4785 = vmatprep.subr.bf16.mxu0 0
        %4786 = vmatpush1.bf16.msra.mxu0 %v4715
        %4787 = vmatprep.subr.bf16.mxu0 0
        %4788 = vmatpush1.bf16.msra.mxu0 %v4716
        %4789 = vmatprep.subr.bf16.mxu0 0
        %4790 = vmatpush1.bf16.msra.mxu0 %v4717
        %4791 = vmatprep.subr.bf16.mxu0 0
        %4792 = vmatpush1.bf16.msra.mxu0 %v4718
        %4793 = vmatprep.subr.bf16.mxu0 0
        %4794 = vmatpush1.bf16.msra.mxu0 %v4719
        %4795 = vmatprep.subr.bf16.mxu0 0
        %4796 = vmatpush1.bf16.msra.mxu0 %v4720
        %4797 = vmatprep.subr.bf16.mxu0 0
        %4798 = vmatpush1.bf16.msra.mxu0 %v4721
        %4799 = vmatprep.subr.bf16.mxu0 0
        %4800 = vmatpush1.bf16.msra.mxu0 %v4722
        %4801 = vmatprep.subr.bf16.mxu0 0
        %4802 = vmatpush1.bf16.msra.mxu0 %v4723
        %4803 = vmatprep.subr.bf16.mxu0 0
        %4804 = vmatpush1.bf16.msra.mxu0 %v4724
        %4805 = vmatprep.mubr.bf16.mxu0 %v4501
        %4806 = vmatmul.mubr.bf16.gmra.mrb[0].mxu0 %v4500
        %v4807 = vpop.f32.mrb[0].mxu0
        %v4808 = vadd.f32 %v4579, %v4807
        %v4809 = vpop.f32.mrb[0].mxu0
        %v4810 = vpop.f32.mrb[0].mxu0
        %v4811 = vadd.f32 %v4579, %v4810
        %v4812 = vpop.f32.mrb[0].mxu0
        %4813 = vmatprep.mubr.bf16.mxu0 %v4505
        %4814 = vmatmul.mubr.bf16.gmra.mrb[0].mxu0 %v4504
        %v4815 = vpop.f32.mrb[0].mxu0
        %v4816 = vadd.f32 %v4579, %v4815
        %v4817 = vpop.f32.mrb[0].mxu0
        %v4818 = vpop.f32.mrb[0].mxu0
        %v4819 = vpop.f32.mrb[0].mxu0
        %4820 = vdwg.mxu0
        %4821 = vmatprep.subr.bf16.mxu0 0
        %4822 = vmatpush1.bf16.msra.mxu0 %v4725
        %4823 = vmatprep.subr.bf16.mxu0 0
        %4824 = vmatpush1.bf16.msra.mxu0 %v4726
        %4825 = vmatprep.subr.bf16.mxu0 0
        %4826 = vmatpush1.bf16.msra.mxu0 %v4727
        %4827 = vmatprep.subr.bf16.mxu0 0
        %4828 = vmatpush1.bf16.msra.mxu0 %v4728
        %4829 = vmatprep.subr.bf16.mxu0 0
        %4830 = vmatpush1.bf16.msra.mxu0 %v4729
        %4831 = vmatprep.subr.bf16.mxu0 0
        %4832 = vmatpush1.bf16.msra.mxu0 %v4730
        %4833 = vmatprep.subr.bf16.mxu0 0
        %4834 = vmatpush1.bf16.msra.mxu0 %v4731
        %4835 = vmatprep.subr.bf16.mxu0 0
        %4836 = vmatpush1.bf16.msra.mxu0 %v4732
        %4837 = vmatprep.subr.bf16.mxu0 0
        %4838 = vmatpush1.bf16.msra.mxu0 %v4733
        %4839 = vmatprep.subr.bf16.mxu0 0
        %4840 = vmatpush1.bf16.msra.mxu0 %v4734
        %4841 = vmatprep.subr.bf16.mxu0 0
        %4842 = vmatpush1.bf16.msra.mxu0 %v4735
        %4843 = vmatprep.subr.bf16.mxu0 0
        %4844 = vmatpush1.bf16.msra.mxu0 %v4736
        %4845 = vmatprep.subr.bf16.mxu0 0
        %4846 = vmatpush1.bf16.msra.mxu0 %v4737
        %4847 = vmatprep.subr.bf16.mxu0 0
        %4848 = vmatpush1.bf16.msra.mxu0 %v4738
        %4849 = vmatprep.subr.bf16.mxu0 0
        %4850 = vmatpush1.bf16.msra.mxu0 %v4739
        %4851 = vmatprep.subr.bf16.mxu0 0
        %4852 = vmatpush1.bf16.msra.mxu0 %v4740
        %4853 = vmatprep.mubr.bf16.mxu0 %v4503
        %4854 = vmatmul.mubr.bf16.gmra.mrb[0].mxu0 %v4502
        %v4855 = vpop.f32.mrb[0].mxu0
        %v4856 = vadd.f32 %v4808, %v4855
        %v4857 = vpop.f32.mrb[0].mxu0
        %v4858 = vpop.f32.mrb[0].mxu0
        %v4859 = vadd.f32 %v4811, %v4858
        %v4860 = vpop.f32.mrb[0].mxu0
        %4861 = vmatprep.mubr.bf16.mxu0 %v4507
        %4862 = vmatmul.mubr.bf16.gmra.mrb[0].mxu0 %v4506
        %v4863 = vpop.f32.mrb[0].mxu0
        %v4864 = vadd.f32 %v4816, %v4863
        %v4865 = vpop.f32.mrb[0].mxu0
        %v4866 = vpop.f32.mrb[0].mxu0
        %v4867 = vpop.f32.mrb[0].mxu0
        %4868 = vdwg.mxu0
        %v4869 = vadd.f32 %v4856, %v4165
        %v4870 = vadd.f32 %v4859, %v4166
        %v4871 = vadd.f32 %v4864, %v4167
        %s4872 = scalar_lea.vmem %s12, 1
        %v4873 = vld [vmem:[%s4872] sm:$0x1]
        %s4874 = scalar_lea.vmem %s13, 1
        %v4875 = vld [vmem:[%s4874] sm:$0x1]
        %4876 = vadd.xlane.f32.xlu0 %v4869
        %v4877 = vpop.xlane.xlu0 %4876
        %4878 = vadd.xlane.f32.xlu0 %v4870
        %v4879 = vpop.xlane.xlu0 %4878
        %v4880 = vsel %vm1482, %v4871, 0.0
        %4881 = vadd.xlane.f32.xlu0 %v4880
        %v4882 = vpop.xlane.xlu0 %4881
        %v4883 = vmul.f32 %v4877, %v2217
        %v4884 = vmul.f32 %v4879, %v2217
        %v4885 = vmul.f32 %v4882, %v2217
        %v4886 = vsub.f32 %v4869, %v4883
        %v4887 = vsub.f32 %v4870, %v4884
        %v4888 = vsub.f32 %v4871, %v4885
        %v4889 = vmul.f32 %v4886, %v4886
        %v4890 = vmul.f32 %v4887, %v4887
        %v4891 = vmul.f32 %v4888, %v4888
        %4892 = vadd.xlane.f32.xlu0 %v4889
        %v4893 = vpop.xlane.xlu0 %4892
        %4894 = vadd.xlane.f32.xlu0 %v4890
        %v4895 = vpop.xlane.xlu0 %4894
        %v4896 = vsel %vm1482, %v4891, 0.0
        %4897 = vadd.xlane.f32.xlu0 %v4896
        %v4898 = vpop.xlane.xlu0 %4897
        %v4899 = vmul.f32 %v4893, %v2217
        %v4900 = vmul.f32 %v4895, %v2217
        %v4901 = vmul.f32 %v4898, %v2217
        %v4902 = vadd.f32 %v4899, 1e-05
        %v4903 = vadd.f32 %v4900, 1e-05
        %v4904 = vadd.f32 %v4901, 1e-05
        %v4905 = vrsqrt.pop %v4902
        %v4906 = vrsqrt.pop %v4903
        %v4907 = vrsqrt.pop %v4904
        %v4908 = vmul.f32 %v4886, %v4905
        %v4909 = vmul.f32 %v4887, %v4906
        %v4910 = vmul.f32 %v4888, %v4907
        %v4912 = vlaneseq
        %v4913 = vshrl.u32 %v4912, 7
        %v4914 = vsub.s32 0, %v4913
        %v4915 = vrot.slane %v4873, %v4914
        %v4917 = vmul.f32 %v4908, %v4915
        %v4918 = vmul.f32 %v4909, %v4915
        %v4919 = vmul.f32 %v4910, %v4915
        %v4921 = vlaneseq
        %v4922 = vshrl.u32 %v4921, 7
        %v4923 = vsub.s32 0, %v4922
        %v4924 = vrot.slane %v4875, %v4923
        %v4926 = vadd.f32 %v4917, %v4924
        %v4927 = vadd.f32 %v4918, %v4924
        %v4928 = vadd.f32 %v4919, %v4924
        %v4929 = vadd.f32 %v4926, %v4927
        %v4930 = vsel %vm1482, %v4928, 0.0
        %v4931 = vadd.f32 %v4929, %v4930
        %v4932 = vrot.slane %v4931, 4
        %v4933 = vadd.f32 %v4931, %v4932
        %v4934 = vrot.slane %v4933, 2
        %v4935 = vadd.f32 %v4933, %v4934
        %v4936 = vrot.slane %v4935, 1
        %v4937 = vadd.f32 %v4935, %v4936
        %v4938 = vrcp.pop 17.0
        %v4939 = vmul.f32 %v4937, %v4938
        %v4940 = vld [vmem:[%s14] sm:$0xff]
        %v4941 = vld [vmem:[%s14 + $0x8] sm:$0xff]
        %v4942 = vld [vmem:[%s14 + $0x10] sm:$0xff]
        %v4943 = vld [vmem:[%s14 + $0x18] sm:$0xff]
        %v4944 = vld [vmem:[%s14 + $0x20] sm:$0xff]
        %v4945 = vld [vmem:[%s14 + $0x28] sm:$0xff]
        %v4946 = vld [vmem:[%s14 + $0x30] sm:$0xff]
        %v4947 = vld [vmem:[%s14 + $0x38] sm:$0xff]
        %v4948 = vld [vmem:[%s14 + $0x40] sm:$0xff]
        %v4949 = vld [vmem:[%s14 + $0x48] sm:$0xff]
        %v4950 = vld [vmem:[%s14 + $0x50] sm:$0xff]
        %v4951 = vld [vmem:[%s14 + $0x58] sm:$0xff]
        %v4952 = vld [vmem:[%s14 + $0x60] sm:$0xff]
        %v4953 = vld [vmem:[%s14 + $0x68] sm:$0xff]
        %v4954 = vld [vmem:[%s14 + $0x70] sm:$0xff]
        %v4955 = vld [vmem:[%s14 + $0x78] sm:$0xff]
        %v4956 = vld [vmem:[%s15] sm:$0x1]
        %4957 = vmatprep.subr.mxu0 0.0
        %4958 = vmatpush1.msra.mxu0 %v4940
        %4959 = vmatprep.subr.mxu0 0.0
        %4960 = vmatpush1.msra.mxu0 %v4941
        %4961 = vmatprep.subr.mxu0 0.0
        %4962 = vmatpush1.msra.mxu0 %v4942
        %4963 = vmatprep.subr.mxu0 0.0
        %4964 = vmatpush1.msra.mxu0 %v4943
        %4965 = vmatprep.subr.mxu0 0.0
        %4966 = vmatpush1.msra.mxu0 %v4944
        %4967 = vmatprep.subr.mxu0 0.0
        %4968 = vmatpush1.msra.mxu0 %v4945
        %4969 = vmatprep.subr.mxu0 0.0
        %4970 = vmatpush1.msra.mxu0 %v4946
        %4971 = vmatprep.subr.mxu0 0.0
        %4972 = vmatpush1.msra.mxu0 %v4947
        %4973 = vmatprep.subr.mxu0 0.0
        %4974 = vmatpush1.msra.mxu0 %v4948
        %4975 = vmatprep.subr.mxu0 0.0
        %4976 = vmatpush1.msra.mxu0 %v4949
        %4977 = vmatprep.subr.mxu0 0.0
        %4978 = vmatpush1.msra.mxu0 %v4950
        %4979 = vmatprep.subr.mxu0 0.0
        %4980 = vmatpush1.msra.mxu0 %v4951
        %4981 = vmatprep.subr.mxu0 0.0
        %4982 = vmatpush1.msra.mxu0 %v4952
        %4983 = vmatprep.subr.mxu0 0.0
        %4984 = vmatpush1.msra.mxu0 %v4953
        %4985 = vmatprep.subr.mxu0 0.0
        %4986 = vmatpush1.msra.mxu0 %v4954
        %4987 = vmatprep.subr.mxu0 0.0
        %4988 = vmatpush1.msra.mxu0 %v4955
        %4989 = vmatprep.subr.mxu0 0.0
        %4990 = vmatpush1.msra.mxu0 0.0
        %4991 = vmatprep.subr.mxu0 0.0
        %4992 = vmatpush1.msra.mxu0 0.0
        %4993 = vmatprep.subr.mxu0 0.0
        %4994 = vmatpush1.msra.mxu0 0.0
        %4995 = vmatprep.subr.mxu0 0.0
        %4996 = vmatpush1.msra.mxu0 0.0
        %4997 = vmatprep.subr.mxu0 0.0
        %4998 = vmatpush1.msra.mxu0 0.0
        %4999 = vmatprep.subr.mxu0 0.0
        %5000 = vmatpush1.msra.mxu0 0.0
        %5001 = vmatprep.subr.mxu0 0.0
        %5002 = vmatpush1.msra.mxu0 0.0
        %5003 = vmatprep.subr.mxu0 0.0
        %5004 = vmatpush1.msra.mxu0 0.0
        %5005 = vmatprep.subr.mxu0 0.0
        %5006 = vmatpush1.msra.mxu0 0.0
        %5007 = vmatprep.subr.mxu0 0.0
        %5008 = vmatpush1.msra.mxu0 0.0
        %5009 = vmatprep.subr.mxu0 0.0
        %5010 = vmatpush1.msra.mxu0 0.0
        %5011 = vmatprep.subr.mxu0 0.0
        %5012 = vmatpush1.msra.mxu0 0.0
        %5013 = vmatprep.subr.mxu0 0.0
        %5014 = vmatpush1.msra.mxu0 0.0
        %5015 = vmatprep.subr.mxu0 0.0
        %5016 = vmatpush1.msra.mxu0 0.0
        %5017 = vmatprep.subr.mxu0 0.0
        %5018 = vmatpush1.msra.mxu0 0.0
        %5019 = vmatprep.subr.mxu0 0.0
        %5020 = vmatpush1.msra.mxu0 0.0
        %5021 = vmatprep.mubr.f32.mxu0 0.0
        %5022 = vmatmul.mubr.f32.gmra.mrb[0].mxu0 %v4939
        %v5023 = vpop.f32.mrb[0].mxu0
        %v5024 = vadd.f32 %v4956, %v5023
        %v5025 = vpop.f32.mrb[0].mxu0
        %5026 = vdwg.mxu0
        %vm5027 = vcmask 24576
        %v5028 = vsel %vm5027, %v5024, -inf
        %5029 = vmax.xlane.f32.xlu0 %v5028
        %v5030 = vpop.xlane.xlu0 %5029
        %v5031 = vsub.f32 %v5024, %v5030
        %v5032 = vmul.f32 %v5031, 1.442695
        %v5033 = vpow.pop %v5032
        %v5034 = vsel %vm5027, %v5033, 0.0
        %5035 = vadd.xlane.f32.xlu0 %v5034
        %v5036 = vpop.xlane.xlu0 %5035
        %v5037 = vrcp.pop %v5036
        %v5038 = vmul.f32 %v5033, %v5037
        %5039 = vst.msk [vmem:[%s513] sm:$0x1] %vm5027, %v5038
        %s5040 = sand.u32 %s379, 1
        %s5041 = scalar_lea.sflag [#allocation3], %s5040
        %s5042 = sand.u32 %s379, 1
        %s5043 = scalar_lea.vmem [#allocation2], %s5042
        // Predicated region
        $region85: #{policy_network_forward.1} parent=83 // pred_check
          %p5044 = pneg %p389
        $region86: #{policy_network_forward.1} parent=83 // pred_check_branch
          %5046 = sbr.rel (%p5044) target = $region88
        $region87: #{policy_network_forward.1} parent=83 // pred_region
          %s5048 = ssub.s32 16, 16
          %5049 = vsyncadd %s5041, %s5048
          %s5050 = smul.addr %s30, 16
          %s5051 = scalar_lea.hbm %s16, %s5050
          %s5053 = sshll.u32 %s5043, 4
          %s5054 = int_to_ptr.vmem [resolvable:$true] %s5053
          %5056 = dma.vmem_to_hbm [thread:$0]  %s5054, 16, %s5051, %s5041
        $region88: #{policy_network_forward.1} parent=83 // pred_fallthru
          _
      $region84: #{policy_network_forward.1} parent=5 // pred_fallthru
        _
      %p5057 = scmp.le.s32.totalorder 2, %s25
      // Predicated region
      $region89: #{policy_network_forward.1} parent=5 // pred_check
        %p5058 = pneg %p5057
      $region90: #{policy_network_forward.1} parent=5 // pred_check_branch
        %5060 = sbr.rel (%p5058) target = $region92
      $region91: #{policy_network_forward.1} parent=5 // pred_region
        %s5061 = ssub.s32 %s25, 2
        // Predicated region
        $region93: #{policy_network_forward.1} parent=91 // pred_check
          %p5062 = pneg %p395
        $region94: #{policy_network_forward.1} parent=91 // pred_check_branch
          %5064 = sbr.rel (%p5062) target = $region96
        $region95: #{policy_network_forward.1} parent=91 // pred_region
          %s5065 = sand.u32 %s380, 1
          %s5066 = scalar_lea.sflag [#allocation3], %s5065
          %s5067 = sand.u32 %s380, 1
          %s5068 = scalar_lea.vmem [#allocation2], %s5067
          %5069 = dma.done %s5066, 16
        $region96: #{policy_network_forward.1} parent=91 // pred_fallthru
          _
      $region92: #{policy_network_forward.1} parent=5 // pred_fallthru
        _
    $region6: #{policy_network_forward.1} parent=1 // loop_footer
      %s29 = sadd.s32 1, %s25
    $region7: #{policy_network_forward.1} parent=1 // loop_footer_branch
      %24 = sbr.rel target = $region3
    $region8: #{policy_network_forward.1} parent=1 // loop_exit
      _
    %5070 = vsyncpa [#allocation3], 1
    %s5071 = scalar_lea.sflag [#allocation3], 1
    %5072 = vsyncpa %s5071, 1

</llo_original>
